<compile_context>
chip_gen: v6e
topology: v6e:2x2x1
jax: 0.10.0
libtpu: 0.0.40
codegen_flags: <defaults>
</compile_context>

<pallas_src>
import jax
import jax.numpy as jnp
from jax.experimental import pallas as pl
from jax.experimental.pallas import tpu as pltpu

EPS = 1e-5  # nn.BatchNorm1d default eps


def z_mapper_kernel(x_ref, w1_ref, w2_ref, p_ref, o_ref):
    """Fused: relu(bn2(fc2(relu(bn1(fc1(x)))))), all tiles VMEM-resident.

    x_ref : (B, F)  activations (f32 in HBM; cast to bf16 for the MXU here).
    w*_ref: (F, F)  weights pre-transposed to (F_in, F_out), stored bf16.
    p_ref : (4, F)  f32 packed per-feature BN params [gamma1, beta1, gamma2, beta2].
    """
    params = p_ref[...]                               # (4, F) f32
    # Cast activations in-kernel (keeps the input DMA a single pass; weights
    # are already bf16 so both dot operands are bf16 -> native MXU rate).
    x = x_ref[...].astype(jnp.bfloat16)

    def linear_bn_relu(h_in_bf16, w_ref, gamma, beta):
        # Pass 0 (MXU): Linear without bias, bf16 x bf16 -> f32 accumulate.
        h = jnp.dot(h_in_bf16, w_ref[...], preferred_element_type=jnp.float32)
        inv_n = 1.0 / h.shape[0]
        # Pass 1 (one read of h): per-feature sum and sum-of-squares, f32.
        s1 = jnp.sum(h, axis=0, keepdims=True)                  # (1, F)
        s2 = jnp.sum(h * h, axis=0, keepdims=True)              # (1, F)
        mean = s1 * inv_n
        var = jnp.maximum(s2 * inv_n - mean * mean, 0.0)        # biased var, clamped
        # Fold affine + mean into one per-feature scale/shift (tiny (1,F) math).
        scale = gamma * jax.lax.rsqrt(var + EPS)                 # (1, F)
        shift = beta - mean * scale                              # (1, F)
        # Pass 2: single FMA + ReLU per element; `diff` never materialized.
        return jnp.maximum(h * scale + shift, 0.0)               # f32

    h = linear_bn_relu(x, w1_ref, params[0:1, :], params[1:2, :])
    h = linear_bn_relu(h.astype(jnp.bfloat16), w2_ref,
                       params[2:3, :], params[3:4, :])
    o_ref[...] = h.astype(o_ref.dtype)


def z_mapper(x, w1t, w2t, bn_params):
    """x: (B, F) f32.  w1t/w2t: (F_in, F_out) bf16 (torch weight transposed and
    cast once at parameter-setup time).  bn_params: (4, F) f32 =
    [gamma1, beta1, gamma2, beta2].  Linear biases are intentionally not taken:
    under train-mode BN they have no effect on the output."""
    B, F = x.shape
    vmem = pl.BlockSpec(memory_space=pltpu.MemorySpace.VMEM)

    x_bytes = B * F * jnp.dtype(x.dtype).itemsize
    w_bytes = 2 * F * F * jnp.dtype(w1t.dtype).itemsize        # bf16 weights
    cost = pl.CostEstimate(
        flops=2 * (2 * B * F * F) + 12 * B * F,                # 2 matmuls + elementwise
        transcendentals=2 * F,                                 # rsqrt per feature/layer
        bytes_accessed=x_bytes            # x in
                       + x_bytes          # out (f32, same shape/dtype as x)
                       + w_bytes          # two bf16 weight matrices
                       + 4 * F * 4,       # packed BN params (f32)
    )

    return pl.pallas_call(
        z_mapper_kernel,
        out_shape=jax.ShapeDtypeStruct((B, F), x.dtype),
        in_specs=[vmem, vmem, vmem, vmem],
        out_specs=vmem,
        cost_estimate=cost,
    )(x, w1t, w2t, bn_params)


def z_mapper_ref(x, w1, b1, g1, bt1, w2, b2, g2, bt2, matmul_dtype=jnp.float32):
    """Pure-JAX reference mirroring the PyTorch forward (torch-layout weights,
    Linear bias included, train-mode BN with biased variance).  `matmul_dtype`
    lets us build a reference with the same bf16 operand rounding as the kernel
    (accumulation stays f32) for a tight check, plus a full-f32 sanity check."""
    def block(h, w, b, g, bt):
        h = jnp.dot(h.astype(matmul_dtype), w.T.astype(matmul_dtype),
                    preferred_element_type=jnp.float32) + b
        mean = jnp.mean(h, axis=0, keepdims=True)
        var = jnp.mean((h - mean) ** 2, axis=0, keepdims=True)
        h = (h - mean) * jax.lax.rsqrt(var + EPS) * g + bt
        return jnp.maximum(h, 0.0)
    h = block(x.astype(jnp.float32), w1, b1, g1, bt1)
    h = block(h, w2, b2, g2, bt2)
    return h.astype(x.dtype)


if __name__ == "__main__":
    # Module default f_dims=512; B=256 rows fills the MXU row dimension on
    # v6e/v7x while keeping the whole problem comfortably VMEM-resident.
    B, F = 256, 512
    key = jax.random.PRNGKey(0)
    kx, kw1, kb1, kw2, kb2, kg1, kbt1, kg2, kbt2 = jax.random.split(key, 9)

    x = jax.random.normal(kx, (B, F), dtype=jnp.float32)

    # Torch-layout parameters (Linear: (F_out, F_in) weight + bias; BN: gamma/beta).
    scale = 1.0 / jnp.sqrt(jnp.float32(F))
    w1 = jax.random.uniform(kw1, (F, F), jnp.float32, -scale, scale)
    b1 = jax.random.uniform(kb1, (F,), jnp.float32, -scale, scale)
    w2 = jax.random.uniform(kw2, (F, F), jnp.float32, -scale, scale)
    b2 = jax.random.uniform(kb2, (F,), jnp.float32, -scale, scale)
    # Non-trivial BN affine so the check is meaningful (not the 1/0 init).
    g1 = jax.random.uniform(kg1, (F,), jnp.float32, 0.5, 1.5)
    bt1 = 0.1 * jax.random.normal(kbt1, (F,), jnp.float32)
    g2 = jax.random.uniform(kg2, (F,), jnp.float32, 0.5, 1.5)
    bt2 = 0.1 * jax.random.normal(kbt2, (F,), jnp.float32)

    # One-time parameter preparation (kept out of the per-call hot path):
    w1t = jnp.transpose(w1).astype(jnp.bfloat16)               # (F_in, F_out) bf16
    w2t = jnp.transpose(w2).astype(jnp.bfloat16)
    bn_params = jnp.stack([g1, bt1, g2, bt2], axis=0)          # (4, F) f32

    out = z_mapper(x, w1t, w2t, bn_params)
    out = jax.block_until_ready(out)
    assert out.shape == (B, F)

    # Tight check: reference with the SAME bf16 matmul operand rounding (f32
    # accumulate) -> isolates BN-fusion / bias-cancellation logic.
    ref_bf16 = z_mapper_ref(x, w1, b1, g1, bt1, w2, b2, g2, bt2,
                            matmul_dtype=jnp.bfloat16)
    assert jnp.allclose(out, ref_bf16, atol=1e-2, rtol=1e-2), \
        "mismatch vs bf16-matmul JAX reference"

    # Loose sanity check vs the full-precision torch-semantics reference
    # (bounds the bf16 operand-rounding error on the normalized outputs).
    ref_f32 = z_mapper_ref(x, w1, b1, g1, bt1, w2, b2, g2, bt2,
                           matmul_dtype=jnp.float32)
    max_err = jnp.max(jnp.abs(out - ref_f32))
    assert max_err < 0.1, f"bf16 drift too large vs f32 reference: {max_err}"

    print("KERNEL_OK")
</pallas_src>

<mosaic_0001>
module attributes {stable_mosaic.version = 11 : i64} {
  func.func @z_mapper_kernel(%arg0: memref<256x512xf32, #tpu.memory_space<vmem>>, %arg1: memref<512x512xbf16, #tpu.memory_space<vmem>>, %arg2: memref<512x512xbf16, #tpu.memory_space<vmem>>, %arg3: memref<4x512xf32, #tpu.memory_space<vmem>>, %arg4: memref<256x512xf32, #tpu.memory_space<vmem>>) attributes {dimension_semantics = [], scalar_prefetch = 0 : i64, scratch_operands = 0 : i64, tpu.core_type = #tpu.core_type<tc>} {
    %c0 = arith.constant 0 : index
    %c0_0 = arith.constant 0 : index
    %0 = vector.load %arg3[%c0, %c0_0] : memref<4x512xf32, #tpu.memory_space<vmem>>, vector<4x512xf32>
    %c0_1 = arith.constant 0 : index
    %c0_2 = arith.constant 0 : index
    %1 = vector.load %arg0[%c0_1, %c0_2] : memref<256x512xf32, #tpu.memory_space<vmem>>, vector<256x512xf32>
    %2 = arith.truncf %1 : vector<256x512xf32> to vector<256x512xbf16>
    %3 = vector.extract_strided_slice %0 {offsets = [0, 0], sizes = [1, 512], strides = [1, 1]} : vector<4x512xf32> to vector<1x512xf32>
    %4 = vector.extract_strided_slice %0 {offsets = [1, 0], sizes = [1, 512], strides = [1, 1]} : vector<4x512xf32> to vector<1x512xf32>
    %c0_3 = arith.constant 0 : index
    %c0_4 = arith.constant 0 : index
    %5 = vector.load %arg1[%c0_3, %c0_4] : memref<512x512xbf16, #tpu.memory_space<vmem>>, vector<512x512xbf16>
    %cst = arith.constant dense<0.000000e+00> : vector<256x512xf32>
    %6 = tpu.matmul %2, %5, %cst {dimension_numbers = #tpu.dot_dimension_numbers<[1], [0], [0], [1], [0, 0, 1, 1], [], []>} : vector<256x512xbf16>, vector<512x512xbf16>, vector<256x512xf32> -> vector<256x512xf32>
    %cst_5 = arith.constant dense<0.000000e+00> : vector<512xf32>
    %7 = vector.multi_reduction <add>, %6, %cst_5 [0] : vector<256x512xf32> to vector<512xf32>
    %8 = vector.shape_cast %7 : vector<512xf32> to vector<1x512xf32>
    %9 = arith.mulf %6, %6 : vector<256x512xf32>
    %cst_6 = arith.constant dense<0.000000e+00> : vector<512xf32>
    %10 = vector.multi_reduction <add>, %9, %cst_6 [0] : vector<256x512xf32> to vector<512xf32>
    %11 = vector.shape_cast %10 : vector<512xf32> to vector<1x512xf32>
    %cst_7 = arith.constant 3.906250e-03 : f32
    %12 = vector.broadcast %cst_7 : f32 to vector<1x512xf32>
    %13 = arith.mulf %8, %12 : vector<1x512xf32>
    %cst_8 = arith.constant 3.906250e-03 : f32
    %14 = vector.broadcast %cst_8 : f32 to vector<1x512xf32>
    %15 = arith.mulf %11, %14 : vector<1x512xf32>
    %16 = arith.mulf %13, %13 : vector<1x512xf32>
    %17 = arith.subf %15, %16 : vector<1x512xf32>
    %cst_9 = arith.constant 0.000000e+00 : f32
    %18 = vector.broadcast %cst_9 : f32 to vector<1x512xf32>
    %19 = arith.maximumf %17, %18 : vector<1x512xf32>
    %cst_10 = arith.constant 9.99999974E-6 : f32
    %20 = vector.broadcast %cst_10 : f32 to vector<1x512xf32>
    %21 = arith.addf %19, %20 : vector<1x512xf32>
    %22 = math.rsqrt %21 : vector<1x512xf32>
    %23 = arith.mulf %3, %22 : vector<1x512xf32>
    %24 = arith.mulf %13, %23 : vector<1x512xf32>
    %25 = arith.subf %4, %24 : vector<1x512xf32>
    %26 = vector.broadcast %23 : vector<1x512xf32> to vector<256x512xf32>
    %27 = arith.mulf %6, %26 : vector<256x512xf32>
    %28 = vector.broadcast %25 : vector<1x512xf32> to vector<256x512xf32>
    %29 = arith.addf %27, %28 : vector<256x512xf32>
    %cst_11 = arith.constant 0.000000e+00 : f32
    %30 = vector.broadcast %cst_11 : f32 to vector<256x512xf32>
    %31 = arith.maximumf %29, %30 : vector<256x512xf32>
    %32 = arith.truncf %31 : vector<256x512xf32> to vector<256x512xbf16>
    %33 = vector.extract_strided_slice %0 {offsets = [2, 0], sizes = [1, 512], strides = [1, 1]} : vector<4x512xf32> to vector<1x512xf32>
    %34 = vector.extract_strided_slice %0 {offsets = [3, 0], sizes = [1, 512], strides = [1, 1]} : vector<4x512xf32> to vector<1x512xf32>
    %c0_12 = arith.constant 0 : index
    %c0_13 = arith.constant 0 : index
    %35 = vector.load %arg2[%c0_12, %c0_13] : memref<512x512xbf16, #tpu.memory_space<vmem>>, vector<512x512xbf16>
    %cst_14 = arith.constant dense<0.000000e+00> : vector<256x512xf32>
    %36 = tpu.matmul %32, %35, %cst_14 {dimension_numbers = #tpu.dot_dimension_numbers<[1], [0], [0], [1], [0, 0, 1, 1], [], []>} : vector<256x512xbf16>, vector<512x512xbf16>, vector<256x512xf32> -> vector<256x512xf32>
    %cst_15 = arith.constant dense<0.000000e+00> : vector<512xf32>
    %37 = vector.multi_reduction <add>, %36, %cst_15 [0] : vector<256x512xf32> to vector<512xf32>
    %38 = vector.shape_cast %37 : vector<512xf32> to vector<1x512xf32>
    %39 = arith.mulf %36, %36 : vector<256x512xf32>
    %cst_16 = arith.constant dense<0.000000e+00> : vector<512xf32>
    %40 = vector.multi_reduction <add>, %39, %cst_16 [0] : vector<256x512xf32> to vector<512xf32>
    %41 = vector.shape_cast %40 : vector<512xf32> to vector<1x512xf32>
    %cst_17 = arith.constant 3.906250e-03 : f32
    %42 = vector.broadcast %cst_17 : f32 to vector<1x512xf32>
    %43 = arith.mulf %38, %42 : vector<1x512xf32>
    %cst_18 = arith.constant 3.906250e-03 : f32
    %44 = vector.broadcast %cst_18 : f32 to vector<1x512xf32>
    %45 = arith.mulf %41, %44 : vector<1x512xf32>
    %46 = arith.mulf %43, %43 : vector<1x512xf32>
    %47 = arith.subf %45, %46 : vector<1x512xf32>
    %cst_19 = arith.constant 0.000000e+00 : f32
    %48 = vector.broadcast %cst_19 : f32 to vector<1x512xf32>
    %49 = arith.maximumf %47, %48 : vector<1x512xf32>
    %cst_20 = arith.constant 9.99999974E-6 : f32
    %50 = vector.broadcast %cst_20 : f32 to vector<1x512xf32>
    %51 = arith.addf %49, %50 : vector<1x512xf32>
    %52 = math.rsqrt %51 : vector<1x512xf32>
    %53 = arith.mulf %33, %52 : vector<1x512xf32>
    %54 = arith.mulf %43, %53 : vector<1x512xf32>
    %55 = arith.subf %34, %54 : vector<1x512xf32>
    %56 = vector.broadcast %53 : vector<1x512xf32> to vector<256x512xf32>
    %57 = arith.mulf %36, %56 : vector<256x512xf32>
    %58 = vector.broadcast %55 : vector<1x512xf32> to vector<256x512xf32>
    %59 = arith.addf %57, %58 : vector<256x512xf32>
    %cst_21 = arith.constant 0.000000e+00 : f32
    %60 = vector.broadcast %cst_21 : f32 to vector<256x512xf32>
    %61 = arith.maximumf %59, %60 : vector<256x512xf32>
    %c0_22 = arith.constant 0 : index
    %c0_23 = arith.constant 0 : index
    %62 = vector.load %arg4[%c0_22, %c0_23] : memref<256x512xf32, #tpu.memory_space<vmem>>, vector<256x512xf32>
    tpu.vector_store %arg4[%c0_22, %c0_23], %61 {strides = array<i32>} : memref<256x512xf32, #tpu.memory_space<vmem>>, vector<256x512xf32>,
    return
  }
}

</mosaic_0001>

<llo_original>
// kernel: tpu_custom_call.1
$region0: #{tpu_custom_call.1}
  #allocation0 [shape = 'u32[]', space=smem, size = 0x4, offset = 0x4, fixed_abs, tag = 'smem constant byte address 0x4 - core index']
  #allocation1 [shape = 'u32[144,128]{1,0:T(1,128)}', space=vmem, size = 0x12000, scoped, tag = 'internal scratch']
  %s0 = inlined_call_operand.hbm [shape: f32[256,512], index: 0, kind: input, shape index: {}]
  %s1 = inlined_call_operand.hbm [shape: bf16[512,512], index: 1, kind: input, shape index: {}]
  %s2 = inlined_call_operand.hbm [shape: bf16[512,512], index: 2, kind: input, shape index: {}]
  %s3 = inlined_call_operand.hbm [shape: f32[4,512], index: 3, kind: input, shape index: {}]
  %s4 = inlined_call_operand.hbm [shape: f32[256,512], index: 4, kind: output, shape index: {}]
  %s5 = sld [smem:[#allocation0]]
  $region42: #{tpu_custom_call.1} parent=0
    _
  %s7 = ssub.s32 1, %s5
  %s8 = scalar_select 0, %s7, %s5
  $region1: #{tpu_custom_call.1} parent=0
    #allocation2 [shape = 'u8[524288]{0}', space=vmem, size = 0x80000, scoped, tag = 'input window, operand 0, single buffered']
    #allocation3 [shape = 's32[1]{0}', space=sflag, size = 0x4, scoped, tag = 'scoped memory for tpu_custom_call.1']
    #allocation4 [shape = 's32[1]{0}', space=sflag, size = 0x4, scoped, tag = 'scoped memory for tpu_custom_call.1']
    #allocation5 [shape = 'u8[524288]{0}', space=vmem, size = 0x80000, scoped, tag = 'input window, operand 1, single buffered']
    #allocation6 [shape = 's32[1]{0}', space=sflag, size = 0x4, scoped, tag = 'scoped memory for tpu_custom_call.1']
    #allocation7 [shape = 'u8[524288]{0}', space=vmem, size = 0x80000, scoped, tag = 'input window, operand 2, single buffered']
    #allocation8 [shape = 'u8[8192]{0}', space=vmem, size = 0x2000, scoped, tag = 'input window, operand 3, single buffered']
    #allocation9 [shape = 's32[1]{0}', space=sflag, size = 0x4, scoped, tag = 'scoped memory for tpu_custom_call.1']
    #allocation10 [shape = 'u8[524288]{0}', space=vmem, size = 0x80000, scoped, tag = 'output window, operand 0, single buffered']
    %9 = vsyncpa [#allocation3], 0
    %10 = vsyncpa [#allocation6], 0
    %11 = vsyncpa [#allocation9], 0
    %12 = vsyncpa [#allocation4], 0
    // Predicated region
    $region2: #{tpu_custom_call.1} parent=1 // pred_check
      _
    $region3: #{tpu_custom_call.1} parent=1 // pred_check_branch
      %14 = sbr.rel (0) target = $region5
    $region4: #{tpu_custom_call.1} parent=1 // pred_region
      %s16 = ssub.s32 16384, 16384
      %17 = vsyncadd [#allocation3], %s16
      %s18 = sshll.u32 [#allocation2], 4
      %s19 = int_to_ptr.vmem [resolvable:$true] %s18
      %24 = dma.hbm_to_vmem [thread:$0]  %s0, 16384, %s19, [#allocation3], 512, 512, 32
    $region5: #{tpu_custom_call.1} parent=1 // pred_fallthru
      _
    // Predicated region
    $region6: #{tpu_custom_call.1} parent=1 // pred_check
      _
    $region7: #{tpu_custom_call.1} parent=1 // pred_check_branch
      %26 = sbr.rel (0) target = $region9
    $region8: #{tpu_custom_call.1} parent=1 // pred_region
      %s28 = ssub.s32 16384, 16384
      %29 = vsyncadd [#allocation6], %s28
      %s30 = sshll.u32 [#allocation5], 4
      %s31 = int_to_ptr.vmem [resolvable:$true] %s30
      %36 = dma.hbm_to_vmem [thread:$0]  %s1, 16384, %s31, [#allocation6], 256, 256, 16
    $region9: #{tpu_custom_call.1} parent=1 // pred_fallthru
      _
    // Predicated region
    $region10: #{tpu_custom_call.1} parent=1 // pred_check
      _
    $region11: #{tpu_custom_call.1} parent=1 // pred_check_branch
      %38 = sbr.rel (0) target = $region13
    $region12: #{tpu_custom_call.1} parent=1 // pred_region
      %s40 = ssub.s32 16384, 16384
      %41 = vsyncadd [#allocation6], %s40
      %s42 = sshll.u32 [#allocation7], 4
      %s43 = int_to_ptr.vmem [resolvable:$true] %s42
      %48 = dma.hbm_to_vmem [thread:$0]  %s2, 16384, %s43, [#allocation6], 256, 256, 16
    $region13: #{tpu_custom_call.1} parent=1 // pred_fallthru
      _
    // Predicated region
    $region14: #{tpu_custom_call.1} parent=1 // pred_check
      _
    $region15: #{tpu_custom_call.1} parent=1 // pred_check_branch
      %50 = sbr.rel (0) target = $region17
    $region16: #{tpu_custom_call.1} parent=1 // pred_region
      %s52 = ssub.s32 256, 256
      %53 = vsyncadd [#allocation9], %s52
      %s55 = sshll.u32 [#allocation8], 4
      %s56 = int_to_ptr.vmem [resolvable:$true] %s55
      %58 = dma.hbm_to_vmem [thread:$0]  %s3, 256, %s56, [#allocation9]
    $region17: #{tpu_custom_call.1} parent=1 // pred_fallthru
      _
    // Predicated region
    $region18: #{tpu_custom_call.1} parent=1 // pred_check
      _
    $region19: #{tpu_custom_call.1} parent=1 // pred_check_branch
      %60 = sbr.rel (0) target = $region21
    $region20: #{tpu_custom_call.1} parent=1 // pred_region
      %61 = dma.done [#allocation3], 16384
    $region21: #{tpu_custom_call.1} parent=1 // pred_fallthru
      _
    // Predicated region
    $region22: #{tpu_custom_call.1} parent=1 // pred_check
      _
    $region23: #{tpu_custom_call.1} parent=1 // pred_check_branch
      %63 = sbr.rel (0) target = $region25
    $region24: #{tpu_custom_call.1} parent=1 // pred_region
      %64 = dma.done [#allocation6], 16384
    $region25: #{tpu_custom_call.1} parent=1 // pred_fallthru
      _
    // Predicated region
    $region26: #{tpu_custom_call.1} parent=1 // pred_check
      _
    $region27: #{tpu_custom_call.1} parent=1 // pred_check_branch
      %66 = sbr.rel (0) target = $region29
    $region28: #{tpu_custom_call.1} parent=1 // pred_region
      %67 = dma.done [#allocation6], 16384
    $region29: #{tpu_custom_call.1} parent=1 // pred_fallthru
      _
    // Predicated region
    $region30: #{tpu_custom_call.1} parent=1 // pred_check
      _
    $region31: #{tpu_custom_call.1} parent=1 // pred_check_branch
      %69 = sbr.rel (0) target = $region33
    $region32: #{tpu_custom_call.1} parent=1 // pred_region
      %70 = dma.done [#allocation9], 256
    $region33: #{tpu_custom_call.1} parent=1 // pred_fallthru
      _
    %v71 = vld [vmem:[#allocation8] sm:$0xff]
    %v72 = vld [vmem:[#allocation8 + $0x8] sm:$0xff]
    %v73 = vld [vmem:[#allocation2] sm:$0xff]
    %v74 = vld [vmem:[#allocation2 + $0x8] sm:$0xff]
    %v75 = vld [vmem:[#allocation2 + $0x10] sm:$0xff]
    %v76 = vld [vmem:[#allocation2 + $0x18] sm:$0xff]
    %v77 = vld [vmem:[#allocation2 + $0x20] sm:$0xff]
    %v78 = vld [vmem:[#allocation2 + $0x28] sm:$0xff]
    %v79 = vld [vmem:[#allocation2 + $0x30] sm:$0xff]
    %v80 = vld [vmem:[#allocation2 + $0x38] sm:$0xff]
    %v81 = vld [vmem:[#allocation2 + $0x40] sm:$0xff]
    %v82 = vld [vmem:[#allocation2 + $0x48] sm:$0xff]
    %v83 = vld [vmem:[#allocation2 + $0x50] sm:$0xff]
    %v84 = vld [vmem:[#allocation2 + $0x58] sm:$0xff]
    %v85 = vld [vmem:[#allocation2 + $0x60] sm:$0xff]
    %v86 = vld [vmem:[#allocation2 + $0x68] sm:$0xff]
    %v87 = vld [vmem:[#allocation2 + $0x70] sm:$0xff]
    %v88 = vld [vmem:[#allocation2 + $0x78] sm:$0xff]
    %v89 = vld [vmem:[#allocation2 + $0x80] sm:$0xff]
    %v90 = vld [vmem:[#allocation2 + $0x88] sm:$0xff]
    %v91 = vld [vmem:[#allocation2 + $0x90] sm:$0xff]
    %v92 = vld [vmem:[#allocation2 + $0x98] sm:$0xff]
    %v93 = vld [vmem:[#allocation2 + $0xa0] sm:$0xff]
    %v94 = vld [vmem:[#allocation2 + $0xa8] sm:$0xff]
    %v95 = vld [vmem:[#allocation2 + $0xb0] sm:$0xff]
    %v96 = vld [vmem:[#allocation2 + $0xb8] sm:$0xff]
    %v97 = vld [vmem:[#allocation2 + $0xc0] sm:$0xff]
    %v98 = vld [vmem:[#allocation2 + $0xc8] sm:$0xff]
    %v99 = vld [vmem:[#allocation2 + $0xd0] sm:$0xff]
    %v100 = vld [vmem:[#allocation2 + $0xd8] sm:$0xff]
    %v101 = vld [vmem:[#allocation2 + $0xe0] sm:$0xff]
    %v102 = vld [vmem:[#allocation2 + $0xe8] sm:$0xff]
    %v103 = vld [vmem:[#allocation2 + $0xf0] sm:$0xff]
    %v104 = vld [vmem:[#allocation2 + $0xf8] sm:$0xff]
    %v105 = vld [vmem:[#allocation2 + $0x100] sm:$0xff]
    %v106 = vld [vmem:[#allocation2 + $0x108] sm:$0xff]
    %v107 = vld [vmem:[#allocation2 + $0x110] sm:$0xff]
    %v108 = vld [vmem:[#allocation2 + $0x118] sm:$0xff]
    %v109 = vld [vmem:[#allocation2 + $0x120] sm:$0xff]
    %v110 = vld [vmem:[#allocation2 + $0x128] sm:$0xff]
    %v111 = vld [vmem:[#allocation2 + $0x130] sm:$0xff]
    %v112 = vld [vmem:[#allocation2 + $0x138] sm:$0xff]
    %v113 = vld [vmem:[#allocation2 + $0x140] sm:$0xff]
    %v114 = vld [vmem:[#allocation2 + $0x148] sm:$0xff]
    %v115 = vld [vmem:[#allocation2 + $0x150] sm:$0xff]
    %v116 = vld [vmem:[#allocation2 + $0x158] sm:$0xff]
    %v117 = vld [vmem:[#allocation2 + $0x160] sm:$0xff]
    %v118 = vld [vmem:[#allocation2 + $0x168] sm:$0xff]
    %v119 = vld [vmem:[#allocation2 + $0x170] sm:$0xff]
    %v120 = vld [vmem:[#allocation2 + $0x178] sm:$0xff]
    %v121 = vld [vmem:[#allocation2 + $0x180] sm:$0xff]
    %v122 = vld [vmem:[#allocation2 + $0x188] sm:$0xff]
    %v123 = vld [vmem:[#allocation2 + $0x190] sm:$0xff]
    %v124 = vld [vmem:[#allocation2 + $0x198] sm:$0xff]
    %v125 = vld [vmem:[#allocation2 + $0x1a0] sm:$0xff]
    %v126 = vld [vmem:[#allocation2 + $0x1a8] sm:$0xff]
    %v127 = vld [vmem:[#allocation2 + $0x1b0] sm:$0xff]
    %v128 = vld [vmem:[#allocation2 + $0x1b8] sm:$0xff]
    %v129 = vld [vmem:[#allocation2 + $0x1c0] sm:$0xff]
    %v130 = vld [vmem:[#allocation2 + $0x1c8] sm:$0xff]
    %v131 = vld [vmem:[#allocation2 + $0x1d0] sm:$0xff]
    %v132 = vld [vmem:[#allocation2 + $0x1d8] sm:$0xff]
    %v133 = vld [vmem:[#allocation2 + $0x1e0] sm:$0xff]
    %v134 = vld [vmem:[#allocation2 + $0x1e8] sm:$0xff]
    %v135 = vld [vmem:[#allocation2 + $0x1f0] sm:$0xff]
    %v136 = vld [vmem:[#allocation2 + $0x1f8] sm:$0xff]
    %v137 = vld [vmem:[#allocation2 + $0x200] sm:$0xff]
    %v138 = vld [vmem:[#allocation2 + $0x208] sm:$0xff]
    %v139 = vld [vmem:[#allocation2 + $0x210] sm:$0xff]
    %v140 = vld [vmem:[#allocation2 + $0x218] sm:$0xff]
    %v141 = vld [vmem:[#allocation2 + $0x220] sm:$0xff]
    %v142 = vld [vmem:[#allocation2 + $0x228] sm:$0xff]
    %v143 = vld [vmem:[#allocation2 + $0x230] sm:$0xff]
    %v144 = vld [vmem:[#allocation2 + $0x238] sm:$0xff]
    %v145 = vld [vmem:[#allocation2 + $0x240] sm:$0xff]
    %v146 = vld [vmem:[#allocation2 + $0x248] sm:$0xff]
    %v147 = vld [vmem:[#allocation2 + $0x250] sm:$0xff]
    %v148 = vld [vmem:[#allocation2 + $0x258] sm:$0xff]
    %v149 = vld [vmem:[#allocation2 + $0x260] sm:$0xff]
    %v150 = vld [vmem:[#allocation2 + $0x268] sm:$0xff]
    %v151 = vld [vmem:[#allocation2 + $0x270] sm:$0xff]
    %v152 = vld [vmem:[#allocation2 + $0x278] sm:$0xff]
    %v153 = vld [vmem:[#allocation2 + $0x280] sm:$0xff]
    %v154 = vld [vmem:[#allocation2 + $0x288] sm:$0xff]
    %v155 = vld [vmem:[#allocation2 + $0x290] sm:$0xff]
    %v156 = vld [vmem:[#allocation2 + $0x298] sm:$0xff]
    %v157 = vld [vmem:[#allocation2 + $0x2a0] sm:$0xff]
    %v158 = vld [vmem:[#allocation2 + $0x2a8] sm:$0xff]
    %v159 = vld [vmem:[#allocation2 + $0x2b0] sm:$0xff]
    %v160 = vld [vmem:[#allocation2 + $0x2b8] sm:$0xff]
    %v161 = vld [vmem:[#allocation2 + $0x2c0] sm:$0xff]
    %v162 = vld [vmem:[#allocation2 + $0x2c8] sm:$0xff]
    %v163 = vld [vmem:[#allocation2 + $0x2d0] sm:$0xff]
    %v164 = vld [vmem:[#allocation2 + $0x2d8] sm:$0xff]
    %v165 = vld [vmem:[#allocation2 + $0x2e0] sm:$0xff]
    %v166 = vld [vmem:[#allocation2 + $0x2e8] sm:$0xff]
    %v167 = vld [vmem:[#allocation2 + $0x2f0] sm:$0xff]
    %v168 = vld [vmem:[#allocation2 + $0x2f8] sm:$0xff]
    %v169 = vld [vmem:[#allocation2 + $0x300] sm:$0xff]
    %v170 = vld [vmem:[#allocation2 + $0x308] sm:$0xff]
    %v171 = vld [vmem:[#allocation2 + $0x310] sm:$0xff]
    %v172 = vld [vmem:[#allocation2 + $0x318] sm:$0xff]
    %v173 = vld [vmem:[#allocation2 + $0x320] sm:$0xff]
    %v174 = vld [vmem:[#allocation2 + $0x328] sm:$0xff]
    %v175 = vld [vmem:[#allocation2 + $0x330] sm:$0xff]
    %v176 = vld [vmem:[#allocation2 + $0x338] sm:$0xff]
    %v177 = vld [vmem:[#allocation2 + $0x340] sm:$0xff]
    %v178 = vld [vmem:[#allocation2 + $0x348] sm:$0xff]
    %v179 = vld [vmem:[#allocation2 + $0x350] sm:$0xff]
    %v180 = vld [vmem:[#allocation2 + $0x358] sm:$0xff]
    %v181 = vld [vmem:[#allocation2 + $0x360] sm:$0xff]
    %v182 = vld [vmem:[#allocation2 + $0x368] sm:$0xff]
    %v183 = vld [vmem:[#allocation2 + $0x370] sm:$0xff]
    %v184 = vld [vmem:[#allocation2 + $0x378] sm:$0xff]
    %v185 = vld [vmem:[#allocation2 + $0x380] sm:$0xff]
    %v186 = vld [vmem:[#allocation2 + $0x388] sm:$0xff]
    %v187 = vld [vmem:[#allocation2 + $0x390] sm:$0xff]
    %v188 = vld [vmem:[#allocation2 + $0x398] sm:$0xff]
    %v189 = vld [vmem:[#allocation2 + $0x3a0] sm:$0xff]
    %v190 = vld [vmem:[#allocation2 + $0x3a8] sm:$0xff]
    %v191 = vld [vmem:[#allocation2 + $0x3b0] sm:$0xff]
    %v192 = vld [vmem:[#allocation2 + $0x3b8] sm:$0xff]
    %v193 = vld [vmem:[#allocation2 + $0x3c0] sm:$0xff]
    %v194 = vld [vmem:[#allocation2 + $0x3c8] sm:$0xff]
    %v195 = vld [vmem:[#allocation2 + $0x3d0] sm:$0xff]
    %v196 = vld [vmem:[#allocation2 + $0x3d8] sm:$0xff]
    %v197 = vld [vmem:[#allocation2 + $0x3e0] sm:$0xff]
    %v198 = vld [vmem:[#allocation2 + $0x3e8] sm:$0xff]
    %v199 = vld [vmem:[#allocation2 + $0x3f0] sm:$0xff]
    %v200 = vld [vmem:[#allocation2 + $0x3f8] sm:$0xff]
    %v201 = vpack.c.bf16 %v77, %v73
    %v202 = vpack.c.bf16 %v78, %v74
    %v203 = vpack.c.bf16 %v79, %v75
    %v204 = vpack.c.bf16 %v80, %v76
    %v205 = vpack.c.bf16 %v85, %v81
    %v206 = vpack.c.bf16 %v86, %v82
    %v207 = vpack.c.bf16 %v87, %v83
    %v208 = vpack.c.bf16 %v88, %v84
    %v209 = vpack.c.bf16 %v93, %v89
    %v210 = vpack.c.bf16 %v94, %v90
    %v211 = vpack.c.bf16 %v95, %v91
    %v212 = vpack.c.bf16 %v96, %v92
    %v213 = vpack.c.bf16 %v101, %v97
    %v214 = vpack.c.bf16 %v102, %v98
    %v215 = vpack.c.bf16 %v103, %v99
    %v216 = vpack.c.bf16 %v104, %v100
    %v217 = vpack.c.bf16 %v109, %v105
    %v218 = vpack.c.bf16 %v110, %v106
    %v219 = vpack.c.bf16 %v111, %v107
    %v220 = vpack.c.bf16 %v112, %v108
    %v221 = vpack.c.bf16 %v117, %v113
    %v222 = vpack.c.bf16 %v118, %v114
    %v223 = vpack.c.bf16 %v119, %v115
    %v224 = vpack.c.bf16 %v120, %v116
    %v225 = vpack.c.bf16 %v125, %v121
    %v226 = vpack.c.bf16 %v126, %v122
    %v227 = vpack.c.bf16 %v127, %v123
    %v228 = vpack.c.bf16 %v128, %v124
    %v229 = vpack.c.bf16 %v133, %v129
    %v230 = vpack.c.bf16 %v134, %v130
    %v231 = vpack.c.bf16 %v135, %v131
    %v232 = vpack.c.bf16 %v136, %v132
    %v233 = vpack.c.bf16 %v141, %v137
    %v234 = vpack.c.bf16 %v142, %v138
    %v235 = vpack.c.bf16 %v143, %v139
    %v236 = vpack.c.bf16 %v144, %v140
    %v237 = vpack.c.bf16 %v149, %v145
    %v238 = vpack.c.bf16 %v150, %v146
    %v239 = vpack.c.bf16 %v151, %v147
    %v240 = vpack.c.bf16 %v152, %v148
    %v241 = vpack.c.bf16 %v157, %v153
    %v242 = vpack.c.bf16 %v158, %v154
    %v243 = vpack.c.bf16 %v159, %v155
    %v244 = vpack.c.bf16 %v160, %v156
    %v245 = vpack.c.bf16 %v165, %v161
    %v246 = vpack.c.bf16 %v166, %v162
    %v247 = vpack.c.bf16 %v167, %v163
    %v248 = vpack.c.bf16 %v168, %v164
    %v249 = vpack.c.bf16 %v173, %v169
    %v250 = vpack.c.bf16 %v174, %v170
    %v251 = vpack.c.bf16 %v175, %v171
    %v252 = vpack.c.bf16 %v176, %v172
    %v253 = vpack.c.bf16 %v181, %v177
    %v254 = vpack.c.bf16 %v182, %v178
    %v255 = vpack.c.bf16 %v183, %v179
    %v256 = vpack.c.bf16 %v184, %v180
    %v257 = vpack.c.bf16 %v189, %v185
    %v258 = vpack.c.bf16 %v190, %v186
    %v259 = vpack.c.bf16 %v191, %v187
    %v260 = vpack.c.bf16 %v192, %v188
    %v261 = vpack.c.bf16 %v197, %v193
    %v262 = vpack.c.bf16 %v198, %v194
    %v263 = vpack.c.bf16 %v199, %v195
    %v264 = vpack.c.bf16 %v200, %v196
    %v265 = vld [vmem:[#allocation5] sm:$0xff]
    %v266 = vld [vmem:[#allocation5 + $0x8] sm:$0xff]
    %v267 = vld [vmem:[#allocation5 + $0x10] sm:$0xff]
    %v268 = vld [vmem:[#allocation5 + $0x18] sm:$0xff]
    %v269 = vld [vmem:[#allocation5 + $0x20] sm:$0xff]
    %v270 = vld [vmem:[#allocation5 + $0x28] sm:$0xff]
    %v271 = vld [vmem:[#allocation5 + $0x30] sm:$0xff]
    %v272 = vld [vmem:[#allocation5 + $0x38] sm:$0xff]
    %v273 = vld [vmem:[#allocation5 + $0x40] sm:$0xff]
    %v274 = vld [vmem:[#allocation5 + $0x48] sm:$0xff]
    %v275 = vld [vmem:[#allocation5 + $0x50] sm:$0xff]
    %v276 = vld [vmem:[#allocation5 + $0x58] sm:$0xff]
    %v277 = vld [vmem:[#allocation5 + $0x60] sm:$0xff]
    %v278 = vld [vmem:[#allocation5 + $0x68] sm:$0xff]
    %v279 = vld [vmem:[#allocation5 + $0x70] sm:$0xff]
    %v280 = vld [vmem:[#allocation5 + $0x78] sm:$0xff]
    %v281 = vld [vmem:[#allocation5 + $0x80] sm:$0xff]
    %v282 = vld [vmem:[#allocation5 + $0x88] sm:$0xff]
    %v283 = vld [vmem:[#allocation5 + $0x90] sm:$0xff]
    %v284 = vld [vmem:[#allocation5 + $0x98] sm:$0xff]
    %v285 = vld [vmem:[#allocation5 + $0xa0] sm:$0xff]
    %v286 = vld [vmem:[#allocation5 + $0xa8] sm:$0xff]
    %v287 = vld [vmem:[#allocation5 + $0xb0] sm:$0xff]
    %v288 = vld [vmem:[#allocation5 + $0xb8] sm:$0xff]
    %v289 = vld [vmem:[#allocation5 + $0xc0] sm:$0xff]
    %v290 = vld [vmem:[#allocation5 + $0xc8] sm:$0xff]
    %v291 = vld [vmem:[#allocation5 + $0xd0] sm:$0xff]
    %v292 = vld [vmem:[#allocation5 + $0xd8] sm:$0xff]
    %v293 = vld [vmem:[#allocation5 + $0xe0] sm:$0xff]
    %v294 = vld [vmem:[#allocation5 + $0xe8] sm:$0xff]
    %v295 = vld [vmem:[#allocation5 + $0xf0] sm:$0xff]
    %v296 = vld [vmem:[#allocation5 + $0xf8] sm:$0xff]
    %v297 = vld [vmem:[#allocation5 + $0x100] sm:$0xff]
    %v298 = vld [vmem:[#allocation5 + $0x108] sm:$0xff]
    %v299 = vld [vmem:[#allocation5 + $0x110] sm:$0xff]
    %v300 = vld [vmem:[#allocation5 + $0x118] sm:$0xff]
    %v301 = vld [vmem:[#allocation5 + $0x120] sm:$0xff]
    %v302 = vld [vmem:[#allocation5 + $0x128] sm:$0xff]
    %v303 = vld [vmem:[#allocation5 + $0x130] sm:$0xff]
    %v304 = vld [vmem:[#allocation5 + $0x138] sm:$0xff]
    %v305 = vld [vmem:[#allocation5 + $0x140] sm:$0xff]
    %v306 = vld [vmem:[#allocation5 + $0x148] sm:$0xff]
    %v307 = vld [vmem:[#allocation5 + $0x150] sm:$0xff]
    %v308 = vld [vmem:[#allocation5 + $0x158] sm:$0xff]
    %v309 = vld [vmem:[#allocation5 + $0x160] sm:$0xff]
    %v310 = vld [vmem:[#allocation5 + $0x168] sm:$0xff]
    %v311 = vld [vmem:[#allocation5 + $0x170] sm:$0xff]
    %v312 = vld [vmem:[#allocation5 + $0x178] sm:$0xff]
    %v313 = vld [vmem:[#allocation5 + $0x180] sm:$0xff]
    %v314 = vld [vmem:[#allocation5 + $0x188] sm:$0xff]
    %v315 = vld [vmem:[#allocation5 + $0x190] sm:$0xff]
    %v316 = vld [vmem:[#allocation5 + $0x198] sm:$0xff]
    %v317 = vld [vmem:[#allocation5 + $0x1a0] sm:$0xff]
    %v318 = vld [vmem:[#allocation5 + $0x1a8] sm:$0xff]
    %v319 = vld [vmem:[#allocation5 + $0x1b0] sm:$0xff]
    %v320 = vld [vmem:[#allocation5 + $0x1b8] sm:$0xff]
    %v321 = vld [vmem:[#allocation5 + $0x1c0] sm:$0xff]
    %v322 = vld [vmem:[#allocation5 + $0x1c8] sm:$0xff]
    %v323 = vld [vmem:[#allocation5 + $0x1d0] sm:$0xff]
    %v324 = vld [vmem:[#allocation5 + $0x1d8] sm:$0xff]
    %v325 = vld [vmem:[#allocation5 + $0x1e0] sm:$0xff]
    %v326 = vld [vmem:[#allocation5 + $0x1e8] sm:$0xff]
    %v327 = vld [vmem:[#allocation5 + $0x1f0] sm:$0xff]
    %v328 = vld [vmem:[#allocation5 + $0x1f8] sm:$0xff]
    %v329 = vld [vmem:[#allocation5 + $0x200] sm:$0xff]
    %v330 = vld [vmem:[#allocation5 + $0x208] sm:$0xff]
    %v331 = vld [vmem:[#allocation5 + $0x210] sm:$0xff]
    %v332 = vld [vmem:[#allocation5 + $0x218] sm:$0xff]
    %v333 = vld [vmem:[#allocation5 + $0x220] sm:$0xff]
    %v334 = vld [vmem:[#allocation5 + $0x228] sm:$0xff]
    %v335 = vld [vmem:[#allocation5 + $0x230] sm:$0xff]
    %v336 = vld [vmem:[#allocation5 + $0x238] sm:$0xff]
    %v337 = vld [vmem:[#allocation5 + $0x240] sm:$0xff]
    %v338 = vld [vmem:[#allocation5 + $0x248] sm:$0xff]
    %v339 = vld [vmem:[#allocation5 + $0x250] sm:$0xff]
    %v340 = vld [vmem:[#allocation5 + $0x258] sm:$0xff]
    %v341 = vld [vmem:[#allocation5 + $0x260] sm:$0xff]
    %v342 = vld [vmem:[#allocation5 + $0x268] sm:$0xff]
    %v343 = vld [vmem:[#allocation5 + $0x270] sm:$0xff]
    %v344 = vld [vmem:[#allocation5 + $0x278] sm:$0xff]
    %v345 = vld [vmem:[#allocation5 + $0x280] sm:$0xff]
    %v346 = vld [vmem:[#allocation5 + $0x288] sm:$0xff]
    %v347 = vld [vmem:[#allocation5 + $0x290] sm:$0xff]
    %v348 = vld [vmem:[#allocation5 + $0x298] sm:$0xff]
    %v349 = vld [vmem:[#allocation5 + $0x2a0] sm:$0xff]
    %v350 = vld [vmem:[#allocation5 + $0x2a8] sm:$0xff]
    %v351 = vld [vmem:[#allocation5 + $0x2b0] sm:$0xff]
    %v352 = vld [vmem:[#allocation5 + $0x2b8] sm:$0xff]
    %v353 = vld [vmem:[#allocation5 + $0x2c0] sm:$0xff]
    %v354 = vld [vmem:[#allocation5 + $0x2c8] sm:$0xff]
    %v355 = vld [vmem:[#allocation5 + $0x2d0] sm:$0xff]
    %v356 = vld [vmem:[#allocation5 + $0x2d8] sm:$0xff]
    %v357 = vld [vmem:[#allocation5 + $0x2e0] sm:$0xff]
    %v358 = vld [vmem:[#allocation5 + $0x2e8] sm:$0xff]
    %v359 = vld [vmem:[#allocation5 + $0x2f0] sm:$0xff]
    %v360 = vld [vmem:[#allocation5 + $0x2f8] sm:$0xff]
    %v361 = vld [vmem:[#allocation5 + $0x300] sm:$0xff]
    %v362 = vld [vmem:[#allocation5 + $0x308] sm:$0xff]
    %v363 = vld [vmem:[#allocation5 + $0x310] sm:$0xff]
    %v364 = vld [vmem:[#allocation5 + $0x318] sm:$0xff]
    %v365 = vld [vmem:[#allocation5 + $0x320] sm:$0xff]
    %v366 = vld [vmem:[#allocation5 + $0x328] sm:$0xff]
    %v367 = vld [vmem:[#allocation5 + $0x330] sm:$0xff]
    %v368 = vld [vmem:[#allocation5 + $0x338] sm:$0xff]
    %v369 = vld [vmem:[#allocation5 + $0x340] sm:$0xff]
    %v370 = vld [vmem:[#allocation5 + $0x348] sm:$0xff]
    %v371 = vld [vmem:[#allocation5 + $0x350] sm:$0xff]
    %v372 = vld [vmem:[#allocation5 + $0x358] sm:$0xff]
    %v373 = vld [vmem:[#allocation5 + $0x360] sm:$0xff]
    %v374 = vld [vmem:[#allocation5 + $0x368] sm:$0xff]
    %v375 = vld [vmem:[#allocation5 + $0x370] sm:$0xff]
    %v376 = vld [vmem:[#allocation5 + $0x378] sm:$0xff]
    %v377 = vld [vmem:[#allocation5 + $0x380] sm:$0xff]
    %v378 = vld [vmem:[#allocation5 + $0x388] sm:$0xff]
    %v379 = vld [vmem:[#allocation5 + $0x390] sm:$0xff]
    %v380 = vld [vmem:[#allocation5 + $0x398] sm:$0xff]
    %v381 = vld [vmem:[#allocation5 + $0x3a0] sm:$0xff]
    %v382 = vld [vmem:[#allocation5 + $0x3a8] sm:$0xff]
    %v383 = vld [vmem:[#allocation5 + $0x3b0] sm:$0xff]
    %v384 = vld [vmem:[#allocation5 + $0x3b8] sm:$0xff]
    %v385 = vld [vmem:[#allocation5 + $0x3c0] sm:$0xff]
    %v386 = vld [vmem:[#allocation5 + $0x3c8] sm:$0xff]
    %v387 = vld [vmem:[#allocation5 + $0x3d0] sm:$0xff]
    %v388 = vld [vmem:[#allocation5 + $0x3d8] sm:$0xff]
    %v389 = vld [vmem:[#allocation5 + $0x3e0] sm:$0xff]
    %v390 = vld [vmem:[#allocation5 + $0x3e8] sm:$0xff]
    %v391 = vld [vmem:[#allocation5 + $0x3f0] sm:$0xff]
    %v392 = vld [vmem:[#allocation5 + $0x3f8] sm:$0xff]
    %v521 = vunpack.c.l.b16 %v265
    %v522 = vunpack.c.h.b16 %v265
    %v523 = vunpack.c.l.b16 %v266
    %v524 = vunpack.c.h.b16 %v266
    %v525 = vunpack.c.l.b16 %v267
    %v526 = vunpack.c.h.b16 %v267
    %v527 = vunpack.c.l.b16 %v268
    %v528 = vunpack.c.h.b16 %v268
    %v529 = vunpack.c.l.b16 %v269
    %v530 = vunpack.c.h.b16 %v269
    %v531 = vunpack.c.l.b16 %v270
    %v532 = vunpack.c.h.b16 %v270
    %v533 = vunpack.c.l.b16 %v271
    %v534 = vunpack.c.h.b16 %v271
    %v535 = vunpack.c.l.b16 %v272
    %v536 = vunpack.c.h.b16 %v272
    %v537 = vunpack.c.l.b16 %v273
    %v538 = vunpack.c.h.b16 %v273
    %v539 = vunpack.c.l.b16 %v274
    %v540 = vunpack.c.h.b16 %v274
    %v541 = vunpack.c.l.b16 %v275
    %v542 = vunpack.c.h.b16 %v275
    %v543 = vunpack.c.l.b16 %v276
    %v544 = vunpack.c.h.b16 %v276
    %v545 = vunpack.c.l.b16 %v277
    %v546 = vunpack.c.h.b16 %v277
    %v547 = vunpack.c.l.b16 %v278
    %v548 = vunpack.c.h.b16 %v278
    %v549 = vunpack.c.l.b16 %v279
    %v550 = vunpack.c.h.b16 %v279
    %v551 = vunpack.c.l.b16 %v280
    %v552 = vunpack.c.h.b16 %v280
    %v553 = vunpack.c.l.b16 %v281
    %v554 = vunpack.c.h.b16 %v281
    %v555 = vunpack.c.l.b16 %v282
    %v556 = vunpack.c.h.b16 %v282
    %v557 = vunpack.c.l.b16 %v283
    %v558 = vunpack.c.h.b16 %v283
    %v559 = vunpack.c.l.b16 %v284
    %v560 = vunpack.c.h.b16 %v284
    %v561 = vunpack.c.l.b16 %v285
    %v562 = vunpack.c.h.b16 %v285
    %v563 = vunpack.c.l.b16 %v286
    %v564 = vunpack.c.h.b16 %v286
    %v565 = vunpack.c.l.b16 %v287
    %v566 = vunpack.c.h.b16 %v287
    %v567 = vunpack.c.l.b16 %v288
    %v568 = vunpack.c.h.b16 %v288
    %v569 = vunpack.c.l.b16 %v289
    %v570 = vunpack.c.h.b16 %v289
    %v571 = vunpack.c.l.b16 %v290
    %v572 = vunpack.c.h.b16 %v290
    %v573 = vunpack.c.l.b16 %v291
    %v574 = vunpack.c.h.b16 %v291
    %v575 = vunpack.c.l.b16 %v292
    %v576 = vunpack.c.h.b16 %v292
    %v577 = vunpack.c.l.b16 %v293
    %v578 = vunpack.c.h.b16 %v293
    %v579 = vunpack.c.l.b16 %v294
    %v580 = vunpack.c.h.b16 %v294
    %v581 = vunpack.c.l.b16 %v295
    %v582 = vunpack.c.h.b16 %v295
    %v583 = vunpack.c.l.b16 %v296
    %v584 = vunpack.c.h.b16 %v296
    %v585 = vunpack.c.l.b16 %v297
    %v586 = vunpack.c.h.b16 %v297
    %v587 = vunpack.c.l.b16 %v298
    %v588 = vunpack.c.h.b16 %v298
    %v589 = vunpack.c.l.b16 %v299
    %v590 = vunpack.c.h.b16 %v299
    %v591 = vunpack.c.l.b16 %v300
    %v592 = vunpack.c.h.b16 %v300
    %v593 = vunpack.c.l.b16 %v301
    %v594 = vunpack.c.h.b16 %v301
    %v595 = vunpack.c.l.b16 %v302
    %v596 = vunpack.c.h.b16 %v302
    %v597 = vunpack.c.l.b16 %v303
    %v598 = vunpack.c.h.b16 %v303
    %v599 = vunpack.c.l.b16 %v304
    %v600 = vunpack.c.h.b16 %v304
    %v601 = vunpack.c.l.b16 %v305
    %v602 = vunpack.c.h.b16 %v305
    %v603 = vunpack.c.l.b16 %v306
    %v604 = vunpack.c.h.b16 %v306
    %v605 = vunpack.c.l.b16 %v307
    %v606 = vunpack.c.h.b16 %v307
    %v607 = vunpack.c.l.b16 %v308
    %v608 = vunpack.c.h.b16 %v308
    %v609 = vunpack.c.l.b16 %v309
    %v610 = vunpack.c.h.b16 %v309
    %v611 = vunpack.c.l.b16 %v310
    %v612 = vunpack.c.h.b16 %v310
    %v613 = vunpack.c.l.b16 %v311
    %v614 = vunpack.c.h.b16 %v311
    %v615 = vunpack.c.l.b16 %v312
    %v616 = vunpack.c.h.b16 %v312
    %v617 = vunpack.c.l.b16 %v313
    %v618 = vunpack.c.h.b16 %v313
    %v619 = vunpack.c.l.b16 %v314
    %v620 = vunpack.c.h.b16 %v314
    %v621 = vunpack.c.l.b16 %v315
    %v622 = vunpack.c.h.b16 %v315
    %v623 = vunpack.c.l.b16 %v316
    %v624 = vunpack.c.h.b16 %v316
    %v625 = vunpack.c.l.b16 %v317
    %v626 = vunpack.c.h.b16 %v317
    %v627 = vunpack.c.l.b16 %v318
    %v628 = vunpack.c.h.b16 %v318
    %v629 = vunpack.c.l.b16 %v319
    %v630 = vunpack.c.h.b16 %v319
    %v631 = vunpack.c.l.b16 %v320
    %v632 = vunpack.c.h.b16 %v320
    %v633 = vunpack.c.l.b16 %v321
    %v634 = vunpack.c.h.b16 %v321
    %v635 = vunpack.c.l.b16 %v322
    %v636 = vunpack.c.h.b16 %v322
    %v637 = vunpack.c.l.b16 %v323
    %v638 = vunpack.c.h.b16 %v323
    %v639 = vunpack.c.l.b16 %v324
    %v640 = vunpack.c.h.b16 %v324
    %v641 = vunpack.c.l.b16 %v325
    %v642 = vunpack.c.h.b16 %v325
    %v643 = vunpack.c.l.b16 %v326
    %v644 = vunpack.c.h.b16 %v326
    %v645 = vunpack.c.l.b16 %v327
    %v646 = vunpack.c.h.b16 %v327
    %v647 = vunpack.c.l.b16 %v328
    %v648 = vunpack.c.h.b16 %v328
    %v649 = vunpack.c.l.b16 %v329
    %v650 = vunpack.c.h.b16 %v329
    %v651 = vunpack.c.l.b16 %v330
    %v652 = vunpack.c.h.b16 %v330
    %v653 = vunpack.c.l.b16 %v331
    %v654 = vunpack.c.h.b16 %v331
    %v655 = vunpack.c.l.b16 %v332
    %v656 = vunpack.c.h.b16 %v332
    %v657 = vunpack.c.l.b16 %v333
    %v658 = vunpack.c.h.b16 %v333
    %v659 = vunpack.c.l.b16 %v334
    %v660 = vunpack.c.h.b16 %v334
    %v661 = vunpack.c.l.b16 %v335
    %v662 = vunpack.c.h.b16 %v335
    %v663 = vunpack.c.l.b16 %v336
    %v664 = vunpack.c.h.b16 %v336
    %v665 = vunpack.c.l.b16 %v337
    %v666 = vunpack.c.h.b16 %v337
    %v667 = vunpack.c.l.b16 %v338
    %v668 = vunpack.c.h.b16 %v338
    %v669 = vunpack.c.l.b16 %v339
    %v670 = vunpack.c.h.b16 %v339
    %v671 = vunpack.c.l.b16 %v340
    %v672 = vunpack.c.h.b16 %v340
    %v673 = vunpack.c.l.b16 %v341
    %v674 = vunpack.c.h.b16 %v341
    %v675 = vunpack.c.l.b16 %v342
    %v676 = vunpack.c.h.b16 %v342
    %v677 = vunpack.c.l.b16 %v343
    %v678 = vunpack.c.h.b16 %v343
    %v679 = vunpack.c.l.b16 %v344
    %v680 = vunpack.c.h.b16 %v344
    %v681 = vunpack.c.l.b16 %v345
    %v682 = vunpack.c.h.b16 %v345
    %v683 = vunpack.c.l.b16 %v346
    %v684 = vunpack.c.h.b16 %v346
    %v685 = vunpack.c.l.b16 %v347
    %v686 = vunpack.c.h.b16 %v347
    %v687 = vunpack.c.l.b16 %v348
    %v688 = vunpack.c.h.b16 %v348
    %v689 = vunpack.c.l.b16 %v349
    %v690 = vunpack.c.h.b16 %v349
    %v691 = vunpack.c.l.b16 %v350
    %v692 = vunpack.c.h.b16 %v350
    %v693 = vunpack.c.l.b16 %v351
    %v694 = vunpack.c.h.b16 %v351
    %v695 = vunpack.c.l.b16 %v352
    %v696 = vunpack.c.h.b16 %v352
    %v697 = vunpack.c.l.b16 %v353
    %v698 = vunpack.c.h.b16 %v353
    %v699 = vunpack.c.l.b16 %v354
    %v700 = vunpack.c.h.b16 %v354
    %v701 = vunpack.c.l.b16 %v355
    %v702 = vunpack.c.h.b16 %v355
    %v703 = vunpack.c.l.b16 %v356
    %v704 = vunpack.c.h.b16 %v356
    %v705 = vunpack.c.l.b16 %v357
    %v706 = vunpack.c.h.b16 %v357
    %v707 = vunpack.c.l.b16 %v358
    %v708 = vunpack.c.h.b16 %v358
    %v709 = vunpack.c.l.b16 %v359
    %v710 = vunpack.c.h.b16 %v359
    %v711 = vunpack.c.l.b16 %v360
    %v712 = vunpack.c.h.b16 %v360
    %v713 = vunpack.c.l.b16 %v361
    %v714 = vunpack.c.h.b16 %v361
    %v715 = vunpack.c.l.b16 %v362
    %v716 = vunpack.c.h.b16 %v362
    %v717 = vunpack.c.l.b16 %v363
    %v718 = vunpack.c.h.b16 %v363
    %v719 = vunpack.c.l.b16 %v364
    %v720 = vunpack.c.h.b16 %v364
    %v721 = vunpack.c.l.b16 %v365
    %v722 = vunpack.c.h.b16 %v365
    %v723 = vunpack.c.l.b16 %v366
    %v724 = vunpack.c.h.b16 %v366
    %v725 = vunpack.c.l.b16 %v367
    %v726 = vunpack.c.h.b16 %v367
    %v727 = vunpack.c.l.b16 %v368
    %v728 = vunpack.c.h.b16 %v368
    %v729 = vunpack.c.l.b16 %v369
    %v730 = vunpack.c.h.b16 %v369
    %v731 = vunpack.c.l.b16 %v370
    %v732 = vunpack.c.h.b16 %v370
    %v733 = vunpack.c.l.b16 %v371
    %v734 = vunpack.c.h.b16 %v371
    %v735 = vunpack.c.l.b16 %v372
    %v736 = vunpack.c.h.b16 %v372
    %v737 = vunpack.c.l.b16 %v373
    %v738 = vunpack.c.h.b16 %v373
    %v739 = vunpack.c.l.b16 %v374
    %v740 = vunpack.c.h.b16 %v374
    %v741 = vunpack.c.l.b16 %v375
    %v742 = vunpack.c.h.b16 %v375
    %v743 = vunpack.c.l.b16 %v376
    %v744 = vunpack.c.h.b16 %v376
    %v745 = vunpack.c.l.b16 %v377
    %v746 = vunpack.c.h.b16 %v377
    %v747 = vunpack.c.l.b16 %v378
    %v748 = vunpack.c.h.b16 %v378
    %v749 = vunpack.c.l.b16 %v379
    %v750 = vunpack.c.h.b16 %v379
    %v751 = vunpack.c.l.b16 %v380
    %v752 = vunpack.c.h.b16 %v380
    %v753 = vunpack.c.l.b16 %v381
    %v754 = vunpack.c.h.b16 %v381
    %v755 = vunpack.c.l.b16 %v382
    %v756 = vunpack.c.h.b16 %v382
    %v757 = vunpack.c.l.b16 %v383
    %v758 = vunpack.c.h.b16 %v383
    %v759 = vunpack.c.l.b16 %v384
    %v760 = vunpack.c.h.b16 %v384
    %v761 = vunpack.c.l.b16 %v385
    %v762 = vunpack.c.h.b16 %v385
    %v763 = vunpack.c.l.b16 %v386
    %v764 = vunpack.c.h.b16 %v386
    %v765 = vunpack.c.l.b16 %v387
    %v766 = vunpack.c.h.b16 %v387
    %v767 = vunpack.c.l.b16 %v388
    %v768 = vunpack.c.h.b16 %v388
    %v769 = vunpack.c.l.b16 %v389
    %v770 = vunpack.c.h.b16 %v389
    %v771 = vunpack.c.l.b16 %v390
    %v772 = vunpack.c.h.b16 %v390
    %v773 = vunpack.c.l.b16 %v391
    %v774 = vunpack.c.h.b16 %v391
    %v775 = vunpack.c.l.b16 %v392
    %v776 = vunpack.c.h.b16 %v392
    %v777 = vpack.c.b16 %v525, %v521
    %v778 = vpack.c.b16 %v526, %v522
    %v779 = vpack.c.b16 %v527, %v523
    %v780 = vpack.c.b16 %v528, %v524
    %v781 = vpack.c.b16 %v533, %v529
    %v782 = vpack.c.b16 %v534, %v530
    %v783 = vpack.c.b16 %v535, %v531
    %v784 = vpack.c.b16 %v536, %v532
    %v785 = vpack.c.b16 %v541, %v537
    %v786 = vpack.c.b16 %v542, %v538
    %v787 = vpack.c.b16 %v543, %v539
    %v788 = vpack.c.b16 %v544, %v540
    %v789 = vpack.c.b16 %v549, %v545
    %v790 = vpack.c.b16 %v550, %v546
    %v791 = vpack.c.b16 %v551, %v547
    %v792 = vpack.c.b16 %v552, %v548
    %v793 = vpack.c.b16 %v557, %v553
    %v794 = vpack.c.b16 %v558, %v554
    %v795 = vpack.c.b16 %v559, %v555
    %v796 = vpack.c.b16 %v560, %v556
    %v797 = vpack.c.b16 %v565, %v561
    %v798 = vpack.c.b16 %v566, %v562
    %v799 = vpack.c.b16 %v567, %v563
    %v800 = vpack.c.b16 %v568, %v564
    %v801 = vpack.c.b16 %v573, %v569
    %v802 = vpack.c.b16 %v574, %v570
    %v803 = vpack.c.b16 %v575, %v571
    %v804 = vpack.c.b16 %v576, %v572
    %v805 = vpack.c.b16 %v581, %v577
    %v806 = vpack.c.b16 %v582, %v578
    %v807 = vpack.c.b16 %v583, %v579
    %v808 = vpack.c.b16 %v584, %v580
    %v809 = vpack.c.b16 %v589, %v585
    %v810 = vpack.c.b16 %v590, %v586
    %v811 = vpack.c.b16 %v591, %v587
    %v812 = vpack.c.b16 %v592, %v588
    %v813 = vpack.c.b16 %v597, %v593
    %v814 = vpack.c.b16 %v598, %v594
    %v815 = vpack.c.b16 %v599, %v595
    %v816 = vpack.c.b16 %v600, %v596
    %v817 = vpack.c.b16 %v605, %v601
    %v818 = vpack.c.b16 %v606, %v602
    %v819 = vpack.c.b16 %v607, %v603
    %v820 = vpack.c.b16 %v608, %v604
    %v821 = vpack.c.b16 %v613, %v609
    %v822 = vpack.c.b16 %v614, %v610
    %v823 = vpack.c.b16 %v615, %v611
    %v824 = vpack.c.b16 %v616, %v612
    %v825 = vpack.c.b16 %v621, %v617
    %v826 = vpack.c.b16 %v622, %v618
    %v827 = vpack.c.b16 %v623, %v619
    %v828 = vpack.c.b16 %v624, %v620
    %v829 = vpack.c.b16 %v629, %v625
    %v830 = vpack.c.b16 %v630, %v626
    %v831 = vpack.c.b16 %v631, %v627
    %v832 = vpack.c.b16 %v632, %v628
    %v833 = vpack.c.b16 %v637, %v633
    %v834 = vpack.c.b16 %v638, %v634
    %v835 = vpack.c.b16 %v639, %v635
    %v836 = vpack.c.b16 %v640, %v636
    %v837 = vpack.c.b16 %v645, %v641
    %v838 = vpack.c.b16 %v646, %v642
    %v839 = vpack.c.b16 %v647, %v643
    %v840 = vpack.c.b16 %v648, %v644
    %v841 = vpack.c.b16 %v653, %v649
    %v842 = vpack.c.b16 %v654, %v650
    %v843 = vpack.c.b16 %v655, %v651
    %v844 = vpack.c.b16 %v656, %v652
    %v845 = vpack.c.b16 %v661, %v657
    %v846 = vpack.c.b16 %v662, %v658
    %v847 = vpack.c.b16 %v663, %v659
    %v848 = vpack.c.b16 %v664, %v660
    %v849 = vpack.c.b16 %v669, %v665
    %v850 = vpack.c.b16 %v670, %v666
    %v851 = vpack.c.b16 %v671, %v667
    %v852 = vpack.c.b16 %v672, %v668
    %v853 = vpack.c.b16 %v677, %v673
    %v854 = vpack.c.b16 %v678, %v674
    %v855 = vpack.c.b16 %v679, %v675
    %v856 = vpack.c.b16 %v680, %v676
    %v857 = vpack.c.b16 %v685, %v681
    %v858 = vpack.c.b16 %v686, %v682
    %v859 = vpack.c.b16 %v687, %v683
    %v860 = vpack.c.b16 %v688, %v684
    %v861 = vpack.c.b16 %v693, %v689
    %v862 = vpack.c.b16 %v694, %v690
    %v863 = vpack.c.b16 %v695, %v691
    %v864 = vpack.c.b16 %v696, %v692
    %v865 = vpack.c.b16 %v701, %v697
    %v866 = vpack.c.b16 %v702, %v698
    %v867 = vpack.c.b16 %v703, %v699
    %v868 = vpack.c.b16 %v704, %v700
    %v869 = vpack.c.b16 %v709, %v705
    %v870 = vpack.c.b16 %v710, %v706
    %v871 = vpack.c.b16 %v711, %v707
    %v872 = vpack.c.b16 %v712, %v708
    %v873 = vpack.c.b16 %v717, %v713
    %v874 = vpack.c.b16 %v718, %v714
    %v875 = vpack.c.b16 %v719, %v715
    %v876 = vpack.c.b16 %v720, %v716
    %v877 = vpack.c.b16 %v725, %v721
    %v878 = vpack.c.b16 %v726, %v722
    %v879 = vpack.c.b16 %v727, %v723
    %v880 = vpack.c.b16 %v728, %v724
    %v881 = vpack.c.b16 %v733, %v729
    %v882 = vpack.c.b16 %v734, %v730
    %v883 = vpack.c.b16 %v735, %v731
    %v884 = vpack.c.b16 %v736, %v732
    %v885 = vpack.c.b16 %v741, %v737
    %v886 = vpack.c.b16 %v742, %v738
    %v887 = vpack.c.b16 %v743, %v739
    %v888 = vpack.c.b16 %v744, %v740
    %v889 = vpack.c.b16 %v749, %v745
    %v890 = vpack.c.b16 %v750, %v746
    %v891 = vpack.c.b16 %v751, %v747
    %v892 = vpack.c.b16 %v752, %v748
    %v893 = vpack.c.b16 %v757, %v753
    %v894 = vpack.c.b16 %v758, %v754
    %v895 = vpack.c.b16 %v759, %v755
    %v896 = vpack.c.b16 %v760, %v756
    %v897 = vpack.c.b16 %v765, %v761
    %v898 = vpack.c.b16 %v766, %v762
    %v899 = vpack.c.b16 %v767, %v763
    %v900 = vpack.c.b16 %v768, %v764
    %v901 = vpack.c.b16 %v773, %v769
    %v902 = vpack.c.b16 %v774, %v770
    %v903 = vpack.c.b16 %v775, %v771
    %v904 = vpack.c.b16 %v776, %v772
    %1033 = vmatprep.subr.bf16.mxu0 %v806
    %1034 = vmatpush1.bf16.msra.mxu0 %v805
    %1035 = vmatprep.subr.bf16.mxu0 %v802
    %1036 = vmatpush1.bf16.msra.mxu0 %v801
    %1037 = vmatprep.subr.bf16.mxu0 %v798
    %1038 = vmatpush1.bf16.msra.mxu0 %v797
    %1039 = vmatprep.subr.bf16.mxu0 %v794
    %1040 = vmatpush1.bf16.msra.mxu0 %v793
    %1041 = vmatprep.subr.bf16.mxu0 %v790
    %1042 = vmatpush1.bf16.msra.mxu0 %v789
    %1043 = vmatprep.subr.bf16.mxu0 %v786
    %1044 = vmatpush1.bf16.msra.mxu0 %v785
    %1045 = vmatprep.subr.bf16.mxu0 %v782
    %1046 = vmatpush1.bf16.msra.mxu0 %v781
    %1047 = vmatprep.subr.bf16.mxu0 %v778
    %1048 = vmatpush1.bf16.msra.mxu0 %v777
    %1049 = vmatprep.subr.bf16.mxu0 %v838
    %1050 = vmatpush2.bf16.msra.mxu0 %v837
    %1051 = vmatprep.subr.bf16.mxu0 %v834
    %1052 = vmatpush2.bf16.msra.mxu0 %v833
    %1053 = vmatprep.subr.bf16.mxu0 %v830
    %1054 = vmatpush2.bf16.msra.mxu0 %v829
    %1055 = vmatprep.subr.bf16.mxu0 %v826
    %1056 = vmatpush2.bf16.msra.mxu0 %v825
    %1057 = vmatprep.subr.bf16.mxu0 %v822
    %1058 = vmatpush2.bf16.msra.mxu0 %v821
    %1059 = vmatprep.subr.bf16.mxu0 %v818
    %1060 = vmatpush2.bf16.msra.mxu0 %v817
    %1061 = vmatprep.subr.bf16.mxu0 %v814
    %1062 = vmatpush2.bf16.msra.mxu0 %v813
    %1063 = vmatprep.subr.bf16.mxu0 %v810
    %1064 = vmatpush2.bf16.msra.mxu0 %v809
    %1065 = vmatprep.mubr.bf16.mxu0 %v202
    %1066 = vmatmul.mubr.bf16.gmra.mxu0 %v201
    %v1067 = vpop.f32.mrf.mxu0
    %v1068 = vadd.f32 0.0, %v1067
    %v1069 = vpop.f32.mrf.mxu0
    %v1070 = vadd.f32 0.0, %v1069
    %v1071 = vpop.f32.mrf.mxu0
    %v1072 = vadd.f32 0.0, %v1071
    %v1073 = vpop.f32.mrf.mxu0
    %v1074 = vadd.f32 0.0, %v1073
    %1075 = vmatprep.mubr.bf16.mxu0 %v206
    %1076 = vmatmul.mubr.bf16.gmra.mxu0 %v205
    %v1077 = vpop.f32.mrf.mxu0
    %v1078 = vadd.f32 0.0, %v1077
    %v1079 = vpop.f32.mrf.mxu0
    %v1080 = vadd.f32 0.0, %v1079
    %v1081 = vpop.f32.mrf.mxu0
    %v1082 = vadd.f32 0.0, %v1081
    %v1083 = vpop.f32.mrf.mxu0
    %v1084 = vadd.f32 0.0, %v1083
    %1085 = vmatprep.mubr.bf16.mxu0 %v210
    %1086 = vmatmul.mubr.bf16.gmra.mxu0 %v209
    %v1087 = vpop.f32.mrf.mxu0
    %v1088 = vadd.f32 0.0, %v1087
    %v1089 = vpop.f32.mrf.mxu0
    %v1090 = vadd.f32 0.0, %v1089
    %v1091 = vpop.f32.mrf.mxu0
    %v1092 = vadd.f32 0.0, %v1091
    %v1093 = vpop.f32.mrf.mxu0
    %v1094 = vadd.f32 0.0, %v1093
    %1095 = vmatprep.mubr.bf16.mxu0 %v214
    %1096 = vmatmul.mubr.bf16.gmra.mxu0 %v213
    %v1097 = vpop.f32.mrf.mxu0
    %v1098 = vadd.f32 0.0, %v1097
    %v1099 = vpop.f32.mrf.mxu0
    %v1100 = vadd.f32 0.0, %v1099
    %v1101 = vpop.f32.mrf.mxu0
    %v1102 = vadd.f32 0.0, %v1101
    %v1103 = vpop.f32.mrf.mxu0
    %v1104 = vadd.f32 0.0, %v1103
    %1105 = vmatprep.mubr.bf16.mxu0 %v218
    %1106 = vmatmul.mubr.bf16.gmra.mxu0 %v217
    %v1107 = vpop.f32.mrf.mxu0
    %v1108 = vadd.f32 0.0, %v1107
    %v1109 = vpop.f32.mrf.mxu0
    %v1110 = vadd.f32 0.0, %v1109
    %v1111 = vpop.f32.mrf.mxu0
    %v1112 = vadd.f32 0.0, %v1111
    %v1113 = vpop.f32.mrf.mxu0
    %v1114 = vadd.f32 0.0, %v1113
    %1115 = vmatprep.mubr.bf16.mxu0 %v222
    %1116 = vmatmul.mubr.bf16.gmra.mxu0 %v221
    %v1117 = vpop.f32.mrf.mxu0
    %v1118 = vadd.f32 0.0, %v1117
    %v1119 = vpop.f32.mrf.mxu0
    %v1120 = vadd.f32 0.0, %v1119
    %v1121 = vpop.f32.mrf.mxu0
    %v1122 = vadd.f32 0.0, %v1121
    %v1123 = vpop.f32.mrf.mxu0
    %v1124 = vadd.f32 0.0, %v1123
    %1125 = vmatprep.mubr.bf16.mxu0 %v226
    %1126 = vmatmul.mubr.bf16.gmra.mxu0 %v225
    %v1127 = vpop.f32.mrf.mxu0
    %v1128 = vadd.f32 0.0, %v1127
    %v1129 = vpop.f32.mrf.mxu0
    %v1130 = vadd.f32 0.0, %v1129
    %v1131 = vpop.f32.mrf.mxu0
    %v1132 = vadd.f32 0.0, %v1131
    %v1133 = vpop.f32.mrf.mxu0
    %v1134 = vadd.f32 0.0, %v1133
    %1135 = vmatprep.mubr.bf16.mxu0 %v230
    %1136 = vmatmul.mubr.bf16.gmra.mxu0 %v229
    %v1137 = vpop.f32.mrf.mxu0
    %v1138 = vadd.f32 0.0, %v1137
    %v1139 = vpop.f32.mrf.mxu0
    %v1140 = vadd.f32 0.0, %v1139
    %v1141 = vpop.f32.mrf.mxu0
    %v1142 = vadd.f32 0.0, %v1141
    %v1143 = vpop.f32.mrf.mxu0
    %v1144 = vadd.f32 0.0, %v1143
    %1145 = vmatprep.mubr.bf16.mxu0 %v234
    %1146 = vmatmul.mubr.bf16.gmra.mxu0 %v233
    %v1147 = vpop.f32.mrf.mxu0
    %v1148 = vadd.f32 0.0, %v1147
    %v1149 = vpop.f32.mrf.mxu0
    %v1150 = vadd.f32 0.0, %v1149
    %v1151 = vpop.f32.mrf.mxu0
    %v1152 = vadd.f32 0.0, %v1151
    %v1153 = vpop.f32.mrf.mxu0
    %v1154 = vadd.f32 0.0, %v1153
    %1155 = vmatprep.mubr.bf16.mxu0 %v238
    %1156 = vmatmul.mubr.bf16.gmra.mxu0 %v237
    %v1157 = vpop.f32.mrf.mxu0
    %v1158 = vadd.f32 0.0, %v1157
    %v1159 = vpop.f32.mrf.mxu0
    %v1160 = vadd.f32 0.0, %v1159
    %v1161 = vpop.f32.mrf.mxu0
    %v1162 = vadd.f32 0.0, %v1161
    %v1163 = vpop.f32.mrf.mxu0
    %v1164 = vadd.f32 0.0, %v1163
    %1165 = vmatprep.mubr.bf16.mxu0 %v242
    %1166 = vmatmul.mubr.bf16.gmra.mxu0 %v241
    %v1167 = vpop.f32.mrf.mxu0
    %v1168 = vadd.f32 0.0, %v1167
    %v1169 = vpop.f32.mrf.mxu0
    %v1170 = vadd.f32 0.0, %v1169
    %v1171 = vpop.f32.mrf.mxu0
    %v1172 = vadd.f32 0.0, %v1171
    %v1173 = vpop.f32.mrf.mxu0
    %v1174 = vadd.f32 0.0, %v1173
    %1175 = vmatprep.mubr.bf16.mxu0 %v246
    %1176 = vmatmul.mubr.bf16.gmra.mxu0 %v245
    %v1177 = vpop.f32.mrf.mxu0
    %v1178 = vadd.f32 0.0, %v1177
    %v1179 = vpop.f32.mrf.mxu0
    %v1180 = vadd.f32 0.0, %v1179
    %v1181 = vpop.f32.mrf.mxu0
    %v1182 = vadd.f32 0.0, %v1181
    %v1183 = vpop.f32.mrf.mxu0
    %v1184 = vadd.f32 0.0, %v1183
    %1185 = vmatprep.mubr.bf16.mxu0 %v250
    %1186 = vmatmul.mubr.bf16.gmra.mxu0 %v249
    %v1187 = vpop.f32.mrf.mxu0
    %v1188 = vadd.f32 0.0, %v1187
    %v1189 = vpop.f32.mrf.mxu0
    %v1190 = vadd.f32 0.0, %v1189
    %v1191 = vpop.f32.mrf.mxu0
    %v1192 = vadd.f32 0.0, %v1191
    %v1193 = vpop.f32.mrf.mxu0
    %v1194 = vadd.f32 0.0, %v1193
    %1195 = vmatprep.mubr.bf16.mxu0 %v254
    %1196 = vmatmul.mubr.bf16.gmra.mxu0 %v253
    %v1197 = vpop.f32.mrf.mxu0
    %v1198 = vadd.f32 0.0, %v1197
    %v1199 = vpop.f32.mrf.mxu0
    %v1200 = vadd.f32 0.0, %v1199
    %v1201 = vpop.f32.mrf.mxu0
    %v1202 = vadd.f32 0.0, %v1201
    %v1203 = vpop.f32.mrf.mxu0
    %v1204 = vadd.f32 0.0, %v1203
    %1205 = vmatprep.mubr.bf16.mxu0 %v258
    %1206 = vmatmul.mubr.bf16.gmra.mxu0 %v257
    %v1207 = vpop.f32.mrf.mxu0
    %v1208 = vadd.f32 0.0, %v1207
    %v1209 = vpop.f32.mrf.mxu0
    %v1210 = vadd.f32 0.0, %v1209
    %v1211 = vpop.f32.mrf.mxu0
    %v1212 = vadd.f32 0.0, %v1211
    %v1213 = vpop.f32.mrf.mxu0
    %v1214 = vadd.f32 0.0, %v1213
    %1215 = vmatprep.mubr.bf16.mxu0 %v262
    %1216 = vmatmul.mubr.bf16.gmra.mxu0 %v261
    %v1217 = vpop.f32.mrf.mxu0
    %v1218 = vadd.f32 0.0, %v1217
    %v1219 = vpop.f32.mrf.mxu0
    %v1220 = vadd.f32 0.0, %v1219
    %v1221 = vpop.f32.mrf.mxu0
    %v1222 = vadd.f32 0.0, %v1221
    %v1223 = vpop.f32.mrf.mxu0
    %v1224 = vadd.f32 0.0, %v1223
    %1225 = vdwg.mxu0
    %1226 = vmatprep.subr.bf16.mxu0 %v870
    %1227 = vmatpush1.bf16.msra.mxu0 %v869
    %1228 = vmatprep.subr.bf16.mxu0 %v866
    %1229 = vmatpush1.bf16.msra.mxu0 %v865
    %1230 = vmatprep.subr.bf16.mxu0 %v862
    %1231 = vmatpush1.bf16.msra.mxu0 %v861
    %1232 = vmatprep.subr.bf16.mxu0 %v858
    %1233 = vmatpush1.bf16.msra.mxu0 %v857
    %1234 = vmatprep.subr.bf16.mxu0 %v854
    %1235 = vmatpush1.bf16.msra.mxu0 %v853
    %1236 = vmatprep.subr.bf16.mxu0 %v850
    %1237 = vmatpush1.bf16.msra.mxu0 %v849
    %1238 = vmatprep.subr.bf16.mxu0 %v846
    %1239 = vmatpush1.bf16.msra.mxu0 %v845
    %1240 = vmatprep.subr.bf16.mxu0 %v842
    %1241 = vmatpush1.bf16.msra.mxu0 %v841
    %1242 = vmatprep.subr.bf16.mxu0 %v902
    %1243 = vmatpush2.bf16.msra.mxu0 %v901
    %1244 = vmatprep.subr.bf16.mxu0 %v898
    %1245 = vmatpush2.bf16.msra.mxu0 %v897
    %1246 = vmatprep.subr.bf16.mxu0 %v894
    %1247 = vmatpush2.bf16.msra.mxu0 %v893
    %1248 = vmatprep.subr.bf16.mxu0 %v890
    %1249 = vmatpush2.bf16.msra.mxu0 %v889
    %1250 = vmatprep.subr.bf16.mxu0 %v886
    %1251 = vmatpush2.bf16.msra.mxu0 %v885
    %1252 = vmatprep.subr.bf16.mxu0 %v882
    %1253 = vmatpush2.bf16.msra.mxu0 %v881
    %1254 = vmatprep.subr.bf16.mxu0 %v878
    %1255 = vmatpush2.bf16.msra.mxu0 %v877
    %1256 = vmatprep.subr.bf16.mxu0 %v874
    %1257 = vmatpush2.bf16.msra.mxu0 %v873
    %1258 = vmatprep.mubr.bf16.mxu0 %v204
    %1259 = vmatmul.mubr.bf16.gmra.mxu0 %v203
    %v1260 = vpop.f32.mrf.mxu0
    %v1261 = vadd.f32 %v1068, %v1260
    %v1262 = vpop.f32.mrf.mxu0
    %v1263 = vadd.f32 %v1070, %v1262
    %v1264 = vpop.f32.mrf.mxu0
    %v1265 = vadd.f32 %v1072, %v1264
    %v1266 = vpop.f32.mrf.mxu0
    %v1267 = vadd.f32 %v1074, %v1266
    %1268 = vmatprep.mubr.bf16.mxu0 %v208
    %1269 = vmatmul.mubr.bf16.gmra.mxu0 %v207
    %v1270 = vpop.f32.mrf.mxu0
    %v1271 = vadd.f32 %v1078, %v1270
    %v1272 = vpop.f32.mrf.mxu0
    %v1273 = vadd.f32 %v1080, %v1272
    %v1274 = vpop.f32.mrf.mxu0
    %v1275 = vadd.f32 %v1082, %v1274
    %v1276 = vpop.f32.mrf.mxu0
    %v1277 = vadd.f32 %v1084, %v1276
    %1278 = vmatprep.mubr.bf16.mxu0 %v212
    %1279 = vmatmul.mubr.bf16.gmra.mxu0 %v211
    %v1280 = vpop.f32.mrf.mxu0
    %v1281 = vadd.f32 %v1088, %v1280
    %v1282 = vpop.f32.mrf.mxu0
    %v1283 = vadd.f32 %v1090, %v1282
    %v1284 = vpop.f32.mrf.mxu0
    %v1285 = vadd.f32 %v1092, %v1284
    %v1286 = vpop.f32.mrf.mxu0
    %v1287 = vadd.f32 %v1094, %v1286
    %1288 = vmatprep.mubr.bf16.mxu0 %v216
    %1289 = vmatmul.mubr.bf16.gmra.mxu0 %v215
    %v1290 = vpop.f32.mrf.mxu0
    %v1291 = vadd.f32 %v1098, %v1290
    %v1292 = vpop.f32.mrf.mxu0
    %v1293 = vadd.f32 %v1100, %v1292
    %v1294 = vpop.f32.mrf.mxu0
    %v1295 = vadd.f32 %v1102, %v1294
    %v1296 = vpop.f32.mrf.mxu0
    %v1297 = vadd.f32 %v1104, %v1296
    %1298 = vmatprep.mubr.bf16.mxu0 %v220
    %1299 = vmatmul.mubr.bf16.gmra.mxu0 %v219
    %v1300 = vpop.f32.mrf.mxu0
    %v1301 = vadd.f32 %v1108, %v1300
    %v1302 = vpop.f32.mrf.mxu0
    %v1303 = vadd.f32 %v1110, %v1302
    %v1304 = vpop.f32.mrf.mxu0
    %v1305 = vadd.f32 %v1112, %v1304
    %v1306 = vpop.f32.mrf.mxu0
    %v1307 = vadd.f32 %v1114, %v1306
    %1308 = vmatprep.mubr.bf16.mxu0 %v224
    %1309 = vmatmul.mubr.bf16.gmra.mxu0 %v223
    %v1310 = vpop.f32.mrf.mxu0
    %v1311 = vadd.f32 %v1118, %v1310
    %v1312 = vpop.f32.mrf.mxu0
    %v1313 = vadd.f32 %v1120, %v1312
    %v1314 = vpop.f32.mrf.mxu0
    %v1315 = vadd.f32 %v1122, %v1314
    %v1316 = vpop.f32.mrf.mxu0
    %v1317 = vadd.f32 %v1124, %v1316
    %1318 = vmatprep.mubr.bf16.mxu0 %v228
    %1319 = vmatmul.mubr.bf16.gmra.mxu0 %v227
    %v1320 = vpop.f32.mrf.mxu0
    %v1321 = vadd.f32 %v1128, %v1320
    %v1322 = vpop.f32.mrf.mxu0
    %v1323 = vadd.f32 %v1130, %v1322
    %v1324 = vpop.f32.mrf.mxu0
    %v1325 = vadd.f32 %v1132, %v1324
    %v1326 = vpop.f32.mrf.mxu0
    %v1327 = vadd.f32 %v1134, %v1326
    %1328 = vmatprep.mubr.bf16.mxu0 %v232
    %1329 = vmatmul.mubr.bf16.gmra.mxu0 %v231
    %v1330 = vpop.f32.mrf.mxu0
    %v1331 = vadd.f32 %v1138, %v1330
    %v1332 = vpop.f32.mrf.mxu0
    %v1333 = vadd.f32 %v1140, %v1332
    %v1334 = vpop.f32.mrf.mxu0
    %v1335 = vadd.f32 %v1142, %v1334
    %v1336 = vpop.f32.mrf.mxu0
    %v1337 = vadd.f32 %v1144, %v1336
    %1338 = vmatprep.mubr.bf16.mxu0 %v236
    %1339 = vmatmul.mubr.bf16.gmra.mxu0 %v235
    %v1340 = vpop.f32.mrf.mxu0
    %v1341 = vadd.f32 %v1148, %v1340
    %v1342 = vpop.f32.mrf.mxu0
    %v1343 = vadd.f32 %v1150, %v1342
    %v1344 = vpop.f32.mrf.mxu0
    %v1345 = vadd.f32 %v1152, %v1344
    %v1346 = vpop.f32.mrf.mxu0
    %v1347 = vadd.f32 %v1154, %v1346
    %1348 = vmatprep.mubr.bf16.mxu0 %v240
    %1349 = vmatmul.mubr.bf16.gmra.mxu0 %v239
    %v1350 = vpop.f32.mrf.mxu0
    %v1351 = vadd.f32 %v1158, %v1350
    %v1352 = vpop.f32.mrf.mxu0
    %v1353 = vadd.f32 %v1160, %v1352
    %v1354 = vpop.f32.mrf.mxu0
    %v1355 = vadd.f32 %v1162, %v1354
    %v1356 = vpop.f32.mrf.mxu0
    %v1357 = vadd.f32 %v1164, %v1356
    %1358 = vmatprep.mubr.bf16.mxu0 %v244
    %1359 = vmatmul.mubr.bf16.gmra.mxu0 %v243
    %v1360 = vpop.f32.mrf.mxu0
    %v1361 = vadd.f32 %v1168, %v1360
    %v1362 = vpop.f32.mrf.mxu0
    %v1363 = vadd.f32 %v1170, %v1362
    %v1364 = vpop.f32.mrf.mxu0
    %v1365 = vadd.f32 %v1172, %v1364
    %v1366 = vpop.f32.mrf.mxu0
    %v1367 = vadd.f32 %v1174, %v1366
    %1368 = vmatprep.mubr.bf16.mxu0 %v248
    %1369 = vmatmul.mubr.bf16.gmra.mxu0 %v247
    %v1370 = vpop.f32.mrf.mxu0
    %v1371 = vadd.f32 %v1178, %v1370
    %v1372 = vpop.f32.mrf.mxu0
    %v1373 = vadd.f32 %v1180, %v1372
    %v1374 = vpop.f32.mrf.mxu0
    %v1375 = vadd.f32 %v1182, %v1374
    %v1376 = vpop.f32.mrf.mxu0
    %v1377 = vadd.f32 %v1184, %v1376
    %1378 = vmatprep.mubr.bf16.mxu0 %v252
    %1379 = vmatmul.mubr.bf16.gmra.mxu0 %v251
    %v1380 = vpop.f32.mrf.mxu0
    %v1381 = vadd.f32 %v1188, %v1380
    %v1382 = vpop.f32.mrf.mxu0
    %v1383 = vadd.f32 %v1190, %v1382
    %v1384 = vpop.f32.mrf.mxu0
    %v1385 = vadd.f32 %v1192, %v1384
    %v1386 = vpop.f32.mrf.mxu0
    %v1387 = vadd.f32 %v1194, %v1386
    %1388 = vmatprep.mubr.bf16.mxu0 %v256
    %1389 = vmatmul.mubr.bf16.gmra.mxu0 %v255
    %v1390 = vpop.f32.mrf.mxu0
    %v1391 = vadd.f32 %v1198, %v1390
    %v1392 = vpop.f32.mrf.mxu0
    %v1393 = vadd.f32 %v1200, %v1392
    %v1394 = vpop.f32.mrf.mxu0
    %v1395 = vadd.f32 %v1202, %v1394
    %v1396 = vpop.f32.mrf.mxu0
    %v1397 = vadd.f32 %v1204, %v1396
    %1398 = vmatprep.mubr.bf16.mxu0 %v260
    %1399 = vmatmul.mubr.bf16.gmra.mxu0 %v259
    %v1400 = vpop.f32.mrf.mxu0
    %v1401 = vadd.f32 %v1208, %v1400
    %v1402 = vpop.f32.mrf.mxu0
    %v1403 = vadd.f32 %v1210, %v1402
    %v1404 = vpop.f32.mrf.mxu0
    %v1405 = vadd.f32 %v1212, %v1404
    %v1406 = vpop.f32.mrf.mxu0
    %v1407 = vadd.f32 %v1214, %v1406
    %1408 = vmatprep.mubr.bf16.mxu0 %v264
    %1409 = vmatmul.mubr.bf16.gmra.mxu0 %v263
    %v1410 = vpop.f32.mrf.mxu0
    %v1411 = vadd.f32 %v1218, %v1410
    %v1412 = vpop.f32.mrf.mxu0
    %v1413 = vadd.f32 %v1220, %v1412
    %v1414 = vpop.f32.mrf.mxu0
    %v1415 = vadd.f32 %v1222, %v1414
    %v1416 = vpop.f32.mrf.mxu0
    %v1417 = vadd.f32 %v1224, %v1416
    %1418 = vdwg.mxu0
    %1419 = vmatprep.subr.bf16.mxu0 %v808
    %1420 = vmatpush1.bf16.msra.mxu0 %v807
    %1421 = vmatprep.subr.bf16.mxu0 %v804
    %1422 = vmatpush1.bf16.msra.mxu0 %v803
    %1423 = vmatprep.subr.bf16.mxu0 %v800
    %1424 = vmatpush1.bf16.msra.mxu0 %v799
    %1425 = vmatprep.subr.bf16.mxu0 %v796
    %1426 = vmatpush1.bf16.msra.mxu0 %v795
    %1427 = vmatprep.subr.bf16.mxu0 %v792
    %1428 = vmatpush1.bf16.msra.mxu0 %v791
    %1429 = vmatprep.subr.bf16.mxu0 %v788
    %1430 = vmatpush1.bf16.msra.mxu0 %v787
    %1431 = vmatprep.subr.bf16.mxu0 %v784
    %1432 = vmatpush1.bf16.msra.mxu0 %v783
    %1433 = vmatprep.subr.bf16.mxu0 %v780
    %1434 = vmatpush1.bf16.msra.mxu0 %v779
    %1435 = vmatprep.subr.bf16.mxu0 %v840
    %1436 = vmatpush2.bf16.msra.mxu0 %v839
    %1437 = vmatprep.subr.bf16.mxu0 %v836
    %1438 = vmatpush2.bf16.msra.mxu0 %v835
    %1439 = vmatprep.subr.bf16.mxu0 %v832
    %1440 = vmatpush2.bf16.msra.mxu0 %v831
    %1441 = vmatprep.subr.bf16.mxu0 %v828
    %1442 = vmatpush2.bf16.msra.mxu0 %v827
    %1443 = vmatprep.subr.bf16.mxu0 %v824
    %1444 = vmatpush2.bf16.msra.mxu0 %v823
    %1445 = vmatprep.subr.bf16.mxu0 %v820
    %1446 = vmatpush2.bf16.msra.mxu0 %v819
    %1447 = vmatprep.subr.bf16.mxu0 %v816
    %1448 = vmatpush2.bf16.msra.mxu0 %v815
    %1449 = vmatprep.subr.bf16.mxu0 %v812
    %1450 = vmatpush2.bf16.msra.mxu0 %v811
    %1451 = vmatprep.mubr.bf16.mxu0 %v202
    %1452 = vmatmul.mubr.bf16.gmra.mxu0 %v201
    %v1453 = vpop.f32.mrf.mxu0
    %v1454 = vadd.f32 0.0, %v1453
    %v1455 = vpop.f32.mrf.mxu0
    %v1456 = vadd.f32 0.0, %v1455
    %v1457 = vpop.f32.mrf.mxu0
    %v1458 = vadd.f32 0.0, %v1457
    %v1459 = vpop.f32.mrf.mxu0
    %v1460 = vadd.f32 0.0, %v1459
    %1461 = vmatprep.mubr.bf16.mxu0 %v206
    %1462 = vmatmul.mubr.bf16.gmra.mxu0 %v205
    %v1463 = vpop.f32.mrf.mxu0
    %v1464 = vadd.f32 0.0, %v1463
    %v1465 = vpop.f32.mrf.mxu0
    %v1466 = vadd.f32 0.0, %v1465
    %v1467 = vpop.f32.mrf.mxu0
    %v1468 = vadd.f32 0.0, %v1467
    %v1469 = vpop.f32.mrf.mxu0
    %v1470 = vadd.f32 0.0, %v1469
    %1471 = vmatprep.mubr.bf16.mxu0 %v210
    %1472 = vmatmul.mubr.bf16.gmra.mxu0 %v209
    %v1473 = vpop.f32.mrf.mxu0
    %v1474 = vadd.f32 0.0, %v1473
    %v1475 = vpop.f32.mrf.mxu0
    %v1476 = vadd.f32 0.0, %v1475
    %v1477 = vpop.f32.mrf.mxu0
    %v1478 = vadd.f32 0.0, %v1477
    %v1479 = vpop.f32.mrf.mxu0
    %v1480 = vadd.f32 0.0, %v1479
    %1481 = vmatprep.mubr.bf16.mxu0 %v214
    %1482 = vmatmul.mubr.bf16.gmra.mxu0 %v213
    %v1483 = vpop.f32.mrf.mxu0
    %v1484 = vadd.f32 0.0, %v1483
    %v1485 = vpop.f32.mrf.mxu0
    %v1486 = vadd.f32 0.0, %v1485
    %v1487 = vpop.f32.mrf.mxu0
    %v1488 = vadd.f32 0.0, %v1487
    %v1489 = vpop.f32.mrf.mxu0
    %v1490 = vadd.f32 0.0, %v1489
    %1491 = vmatprep.mubr.bf16.mxu0 %v218
    %1492 = vmatmul.mubr.bf16.gmra.mxu0 %v217
    %v1493 = vpop.f32.mrf.mxu0
    %v1494 = vadd.f32 0.0, %v1493
    %v1495 = vpop.f32.mrf.mxu0
    %v1496 = vadd.f32 0.0, %v1495
    %v1497 = vpop.f32.mrf.mxu0
    %v1498 = vadd.f32 0.0, %v1497
    %v1499 = vpop.f32.mrf.mxu0
    %v1500 = vadd.f32 0.0, %v1499
    %1501 = vmatprep.mubr.bf16.mxu0 %v222
    %1502 = vmatmul.mubr.bf16.gmra.mxu0 %v221
    %v1503 = vpop.f32.mrf.mxu0
    %v1504 = vadd.f32 0.0, %v1503
    %v1505 = vpop.f32.mrf.mxu0
    %v1506 = vadd.f32 0.0, %v1505
    %v1507 = vpop.f32.mrf.mxu0
    %v1508 = vadd.f32 0.0, %v1507
    %v1509 = vpop.f32.mrf.mxu0
    %v1510 = vadd.f32 0.0, %v1509
    %1511 = vmatprep.mubr.bf16.mxu0 %v226
    %1512 = vmatmul.mubr.bf16.gmra.mxu0 %v225
    %v1513 = vpop.f32.mrf.mxu0
    %v1514 = vadd.f32 0.0, %v1513
    %v1515 = vpop.f32.mrf.mxu0
    %v1516 = vadd.f32 0.0, %v1515
    %v1517 = vpop.f32.mrf.mxu0
    %v1518 = vadd.f32 0.0, %v1517
    %v1519 = vpop.f32.mrf.mxu0
    %v1520 = vadd.f32 0.0, %v1519
    %1521 = vmatprep.mubr.bf16.mxu0 %v230
    %1522 = vmatmul.mubr.bf16.gmra.mxu0 %v229
    %v1523 = vpop.f32.mrf.mxu0
    %v1524 = vadd.f32 0.0, %v1523
    %v1525 = vpop.f32.mrf.mxu0
    %v1526 = vadd.f32 0.0, %v1525
    %v1527 = vpop.f32.mrf.mxu0
    %v1528 = vadd.f32 0.0, %v1527
    %v1529 = vpop.f32.mrf.mxu0
    %v1530 = vadd.f32 0.0, %v1529
    %1531 = vmatprep.mubr.bf16.mxu0 %v234
    %1532 = vmatmul.mubr.bf16.gmra.mxu0 %v233
    %v1533 = vpop.f32.mrf.mxu0
    %v1534 = vadd.f32 0.0, %v1533
    %v1535 = vpop.f32.mrf.mxu0
    %v1536 = vadd.f32 0.0, %v1535
    %v1537 = vpop.f32.mrf.mxu0
    %v1538 = vadd.f32 0.0, %v1537
    %v1539 = vpop.f32.mrf.mxu0
    %v1540 = vadd.f32 0.0, %v1539
    %1541 = vmatprep.mubr.bf16.mxu0 %v238
    %1542 = vmatmul.mubr.bf16.gmra.mxu0 %v237
    %v1543 = vpop.f32.mrf.mxu0
    %v1544 = vadd.f32 0.0, %v1543
    %v1545 = vpop.f32.mrf.mxu0
    %v1546 = vadd.f32 0.0, %v1545
    %v1547 = vpop.f32.mrf.mxu0
    %v1548 = vadd.f32 0.0, %v1547
    %v1549 = vpop.f32.mrf.mxu0
    %v1550 = vadd.f32 0.0, %v1549
    %1551 = vmatprep.mubr.bf16.mxu0 %v242
    %1552 = vmatmul.mubr.bf16.gmra.mxu0 %v241
    %v1553 = vpop.f32.mrf.mxu0
    %v1554 = vadd.f32 0.0, %v1553
    %v1555 = vpop.f32.mrf.mxu0
    %v1556 = vadd.f32 0.0, %v1555
    %v1557 = vpop.f32.mrf.mxu0
    %v1558 = vadd.f32 0.0, %v1557
    %v1559 = vpop.f32.mrf.mxu0
    %v1560 = vadd.f32 0.0, %v1559
    %1561 = vmatprep.mubr.bf16.mxu0 %v246
    %1562 = vmatmul.mubr.bf16.gmra.mxu0 %v245
    %v1563 = vpop.f32.mrf.mxu0
    %v1564 = vadd.f32 0.0, %v1563
    %v1565 = vpop.f32.mrf.mxu0
    %v1566 = vadd.f32 0.0, %v1565
    %v1567 = vpop.f32.mrf.mxu0
    %v1568 = vadd.f32 0.0, %v1567
    %v1569 = vpop.f32.mrf.mxu0
    %v1570 = vadd.f32 0.0, %v1569
    %1571 = vmatprep.mubr.bf16.mxu0 %v250
    %1572 = vmatmul.mubr.bf16.gmra.mxu0 %v249
    %v1573 = vpop.f32.mrf.mxu0
    %v1574 = vadd.f32 0.0, %v1573
    %v1575 = vpop.f32.mrf.mxu0
    %v1576 = vadd.f32 0.0, %v1575
    %v1577 = vpop.f32.mrf.mxu0
    %v1578 = vadd.f32 0.0, %v1577
    %v1579 = vpop.f32.mrf.mxu0
    %v1580 = vadd.f32 0.0, %v1579
    %1581 = vmatprep.mubr.bf16.mxu0 %v254
    %1582 = vmatmul.mubr.bf16.gmra.mxu0 %v253
    %v1583 = vpop.f32.mrf.mxu0
    %v1584 = vadd.f32 0.0, %v1583
    %v1585 = vpop.f32.mrf.mxu0
    %v1586 = vadd.f32 0.0, %v1585
    %v1587 = vpop.f32.mrf.mxu0
    %v1588 = vadd.f32 0.0, %v1587
    %v1589 = vpop.f32.mrf.mxu0
    %v1590 = vadd.f32 0.0, %v1589
    %1591 = vmatprep.mubr.bf16.mxu0 %v258
    %1592 = vmatmul.mubr.bf16.gmra.mxu0 %v257
    %v1593 = vpop.f32.mrf.mxu0
    %v1594 = vadd.f32 0.0, %v1593
    %v1595 = vpop.f32.mrf.mxu0
    %v1596 = vadd.f32 0.0, %v1595
    %v1597 = vpop.f32.mrf.mxu0
    %v1598 = vadd.f32 0.0, %v1597
    %v1599 = vpop.f32.mrf.mxu0
    %v1600 = vadd.f32 0.0, %v1599
    %1601 = vmatprep.mubr.bf16.mxu0 %v262
    %1602 = vmatmul.mubr.bf16.gmra.mxu0 %v261
    %v1603 = vpop.f32.mrf.mxu0
    %v1604 = vadd.f32 0.0, %v1603
    %v1605 = vpop.f32.mrf.mxu0
    %v1606 = vadd.f32 0.0, %v1605
    %v1607 = vpop.f32.mrf.mxu0
    %v1608 = vadd.f32 0.0, %v1607
    %v1609 = vpop.f32.mrf.mxu0
    %v1610 = vadd.f32 0.0, %v1609
    %1611 = vdwg.mxu0
    %1612 = vmatprep.subr.bf16.mxu0 %v872
    %1613 = vmatpush1.bf16.msra.mxu0 %v871
    %1614 = vmatprep.subr.bf16.mxu0 %v868
    %1615 = vmatpush1.bf16.msra.mxu0 %v867
    %1616 = vmatprep.subr.bf16.mxu0 %v864
    %1617 = vmatpush1.bf16.msra.mxu0 %v863
    %1618 = vmatprep.subr.bf16.mxu0 %v860
    %1619 = vmatpush1.bf16.msra.mxu0 %v859
    %1620 = vmatprep.subr.bf16.mxu0 %v856
    %1621 = vmatpush1.bf16.msra.mxu0 %v855
    %1622 = vmatprep.subr.bf16.mxu0 %v852
    %1623 = vmatpush1.bf16.msra.mxu0 %v851
    %1624 = vmatprep.subr.bf16.mxu0 %v848
    %1625 = vmatpush1.bf16.msra.mxu0 %v847
    %1626 = vmatprep.subr.bf16.mxu0 %v844
    %1627 = vmatpush1.bf16.msra.mxu0 %v843
    %1628 = vmatprep.subr.bf16.mxu0 %v904
    %1629 = vmatpush2.bf16.msra.mxu0 %v903
    %1630 = vmatprep.subr.bf16.mxu0 %v900
    %1631 = vmatpush2.bf16.msra.mxu0 %v899
    %1632 = vmatprep.subr.bf16.mxu0 %v896
    %1633 = vmatpush2.bf16.msra.mxu0 %v895
    %1634 = vmatprep.subr.bf16.mxu0 %v892
    %1635 = vmatpush2.bf16.msra.mxu0 %v891
    %1636 = vmatprep.subr.bf16.mxu0 %v888
    %1637 = vmatpush2.bf16.msra.mxu0 %v887
    %1638 = vmatprep.subr.bf16.mxu0 %v884
    %1639 = vmatpush2.bf16.msra.mxu0 %v883
    %1640 = vmatprep.subr.bf16.mxu0 %v880
    %1641 = vmatpush2.bf16.msra.mxu0 %v879
    %1642 = vmatprep.subr.bf16.mxu0 %v876
    %1643 = vmatpush2.bf16.msra.mxu0 %v875
    %1644 = vmatprep.mubr.bf16.mxu0 %v204
    %1645 = vmatmul.mubr.bf16.gmra.mxu0 %v203
    %v1646 = vpop.f32.mrf.mxu0
    %v1647 = vadd.f32 %v1454, %v1646
    %v1648 = vpop.f32.mrf.mxu0
    %v1649 = vadd.f32 %v1456, %v1648
    %v1650 = vpop.f32.mrf.mxu0
    %v1651 = vadd.f32 %v1458, %v1650
    %v1652 = vpop.f32.mrf.mxu0
    %v1653 = vadd.f32 %v1460, %v1652
    %1654 = vmatprep.mubr.bf16.mxu0 %v208
    %1655 = vmatmul.mubr.bf16.gmra.mxu0 %v207
    %v1656 = vpop.f32.mrf.mxu0
    %v1657 = vadd.f32 %v1464, %v1656
    %v1658 = vpop.f32.mrf.mxu0
    %v1659 = vadd.f32 %v1466, %v1658
    %v1660 = vpop.f32.mrf.mxu0
    %v1661 = vadd.f32 %v1468, %v1660
    %v1662 = vpop.f32.mrf.mxu0
    %v1663 = vadd.f32 %v1470, %v1662
    %1664 = vmatprep.mubr.bf16.mxu0 %v212
    %1665 = vmatmul.mubr.bf16.gmra.mxu0 %v211
    %v1666 = vpop.f32.mrf.mxu0
    %v1667 = vadd.f32 %v1474, %v1666
    %v1668 = vpop.f32.mrf.mxu0
    %v1669 = vadd.f32 %v1476, %v1668
    %v1670 = vpop.f32.mrf.mxu0
    %v1671 = vadd.f32 %v1478, %v1670
    %v1672 = vpop.f32.mrf.mxu0
    %v1673 = vadd.f32 %v1480, %v1672
    %1674 = vmatprep.mubr.bf16.mxu0 %v216
    %1675 = vmatmul.mubr.bf16.gmra.mxu0 %v215
    %v1676 = vpop.f32.mrf.mxu0
    %v1677 = vadd.f32 %v1484, %v1676
    %v1678 = vpop.f32.mrf.mxu0
    %v1679 = vadd.f32 %v1486, %v1678
    %v1680 = vpop.f32.mrf.mxu0
    %v1681 = vadd.f32 %v1488, %v1680
    %v1682 = vpop.f32.mrf.mxu0
    %v1683 = vadd.f32 %v1490, %v1682
    %1684 = vmatprep.mubr.bf16.mxu0 %v220
    %1685 = vmatmul.mubr.bf16.gmra.mxu0 %v219
    %v1686 = vpop.f32.mrf.mxu0
    %v1687 = vadd.f32 %v1494, %v1686
    %v1688 = vpop.f32.mrf.mxu0
    %v1689 = vadd.f32 %v1496, %v1688
    %v1690 = vpop.f32.mrf.mxu0
    %v1691 = vadd.f32 %v1498, %v1690
    %v1692 = vpop.f32.mrf.mxu0
    %v1693 = vadd.f32 %v1500, %v1692
    %1694 = vmatprep.mubr.bf16.mxu0 %v224
    %1695 = vmatmul.mubr.bf16.gmra.mxu0 %v223
    %v1696 = vpop.f32.mrf.mxu0
    %v1697 = vadd.f32 %v1504, %v1696
    %v1698 = vpop.f32.mrf.mxu0
    %v1699 = vadd.f32 %v1506, %v1698
    %v1700 = vpop.f32.mrf.mxu0
    %v1701 = vadd.f32 %v1508, %v1700
    %v1702 = vpop.f32.mrf.mxu0
    %v1703 = vadd.f32 %v1510, %v1702
    %1704 = vmatprep.mubr.bf16.mxu0 %v228
    %1705 = vmatmul.mubr.bf16.gmra.mxu0 %v227
    %v1706 = vpop.f32.mrf.mxu0
    %v1707 = vadd.f32 %v1514, %v1706
    %v1708 = vpop.f32.mrf.mxu0
    %v1709 = vadd.f32 %v1516, %v1708
    %v1710 = vpop.f32.mrf.mxu0
    %v1711 = vadd.f32 %v1518, %v1710
    %v1712 = vpop.f32.mrf.mxu0
    %v1713 = vadd.f32 %v1520, %v1712
    %1714 = vmatprep.mubr.bf16.mxu0 %v232
    %1715 = vmatmul.mubr.bf16.gmra.mxu0 %v231
    %v1716 = vpop.f32.mrf.mxu0
    %v1717 = vadd.f32 %v1524, %v1716
    %v1718 = vpop.f32.mrf.mxu0
    %v1719 = vadd.f32 %v1526, %v1718
    %v1720 = vpop.f32.mrf.mxu0
    %v1721 = vadd.f32 %v1528, %v1720
    %v1722 = vpop.f32.mrf.mxu0
    %v1723 = vadd.f32 %v1530, %v1722
    %1724 = vmatprep.mubr.bf16.mxu0 %v236
    %1725 = vmatmul.mubr.bf16.gmra.mxu0 %v235
    %v1726 = vpop.f32.mrf.mxu0
    %v1727 = vadd.f32 %v1534, %v1726
    %v1728 = vpop.f32.mrf.mxu0
    %v1729 = vadd.f32 %v1536, %v1728
    %v1730 = vpop.f32.mrf.mxu0
    %v1731 = vadd.f32 %v1538, %v1730
    %v1732 = vpop.f32.mrf.mxu0
    %v1733 = vadd.f32 %v1540, %v1732
    %1734 = vmatprep.mubr.bf16.mxu0 %v240
    %1735 = vmatmul.mubr.bf16.gmra.mxu0 %v239
    %v1736 = vpop.f32.mrf.mxu0
    %v1737 = vadd.f32 %v1544, %v1736
    %v1738 = vpop.f32.mrf.mxu0
    %v1739 = vadd.f32 %v1546, %v1738
    %v1740 = vpop.f32.mrf.mxu0
    %v1741 = vadd.f32 %v1548, %v1740
    %v1742 = vpop.f32.mrf.mxu0
    %v1743 = vadd.f32 %v1550, %v1742
    %1744 = vmatprep.mubr.bf16.mxu0 %v244
    %1745 = vmatmul.mubr.bf16.gmra.mxu0 %v243
    %v1746 = vpop.f32.mrf.mxu0
    %v1747 = vadd.f32 %v1554, %v1746
    %v1748 = vpop.f32.mrf.mxu0
    %v1749 = vadd.f32 %v1556, %v1748
    %v1750 = vpop.f32.mrf.mxu0
    %v1751 = vadd.f32 %v1558, %v1750
    %v1752 = vpop.f32.mrf.mxu0
    %v1753 = vadd.f32 %v1560, %v1752
    %1754 = vmatprep.mubr.bf16.mxu0 %v248
    %1755 = vmatmul.mubr.bf16.gmra.mxu0 %v247
    %v1756 = vpop.f32.mrf.mxu0
    %v1757 = vadd.f32 %v1564, %v1756
    %v1758 = vpop.f32.mrf.mxu0
    %v1759 = vadd.f32 %v1566, %v1758
    %v1760 = vpop.f32.mrf.mxu0
    %v1761 = vadd.f32 %v1568, %v1760
    %v1762 = vpop.f32.mrf.mxu0
    %v1763 = vadd.f32 %v1570, %v1762
    %1764 = vmatprep.mubr.bf16.mxu0 %v252
    %1765 = vmatmul.mubr.bf16.gmra.mxu0 %v251
    %v1766 = vpop.f32.mrf.mxu0
    %v1767 = vadd.f32 %v1574, %v1766
    %v1768 = vpop.f32.mrf.mxu0
    %v1769 = vadd.f32 %v1576, %v1768
    %v1770 = vpop.f32.mrf.mxu0
    %v1771 = vadd.f32 %v1578, %v1770
    %v1772 = vpop.f32.mrf.mxu0
    %v1773 = vadd.f32 %v1580, %v1772
    %1774 = vmatprep.mubr.bf16.mxu0 %v256
    %1775 = vmatmul.mubr.bf16.gmra.mxu0 %v255
    %v1776 = vpop.f32.mrf.mxu0
    %v1777 = vadd.f32 %v1584, %v1776
    %v1778 = vpop.f32.mrf.mxu0
    %v1779 = vadd.f32 %v1586, %v1778
    %v1780 = vpop.f32.mrf.mxu0
    %v1781 = vadd.f32 %v1588, %v1780
    %v1782 = vpop.f32.mrf.mxu0
    %v1783 = vadd.f32 %v1590, %v1782
    %1784 = vmatprep.mubr.bf16.mxu0 %v260
    %1785 = vmatmul.mubr.bf16.gmra.mxu0 %v259
    %v1786 = vpop.f32.mrf.mxu0
    %v1787 = vadd.f32 %v1594, %v1786
    %v1788 = vpop.f32.mrf.mxu0
    %v1789 = vadd.f32 %v1596, %v1788
    %v1790 = vpop.f32.mrf.mxu0
    %v1791 = vadd.f32 %v1598, %v1790
    %v1792 = vpop.f32.mrf.mxu0
    %v1793 = vadd.f32 %v1600, %v1792
    %1794 = vmatprep.mubr.bf16.mxu0 %v264
    %1795 = vmatmul.mubr.bf16.gmra.mxu0 %v263
    %v1796 = vpop.f32.mrf.mxu0
    %v1797 = vadd.f32 %v1604, %v1796
    %v1798 = vpop.f32.mrf.mxu0
    %v1799 = vadd.f32 %v1606, %v1798
    %v1800 = vpop.f32.mrf.mxu0
    %v1801 = vadd.f32 %v1608, %v1800
    %v1802 = vpop.f32.mrf.mxu0
    %v1803 = vadd.f32 %v1610, %v1802
    %1804 = vdwg.mxu0
    %v1805 = vadd.f32 %v1261, %v1265
    %v1806 = vadd.f32 %v1805, %v1271
    %v1807 = vadd.f32 %v1806, %v1275
    %v1808 = vadd.f32 %v1807, %v1281
    %v1809 = vadd.f32 %v1808, %v1285
    %v1810 = vadd.f32 %v1809, %v1291
    %v1811 = vadd.f32 %v1810, %v1295
    %v1812 = vadd.f32 %v1811, %v1301
    %v1813 = vadd.f32 %v1812, %v1305
    %v1814 = vadd.f32 %v1813, %v1311
    %v1815 = vadd.f32 %v1814, %v1315
    %v1816 = vadd.f32 %v1815, %v1321
    %v1817 = vadd.f32 %v1816, %v1325
    %v1818 = vadd.f32 %v1817, %v1331
    %v1819 = vadd.f32 %v1818, %v1335
    %v1820 = vadd.f32 %v1819, %v1341
    %v1821 = vadd.f32 %v1820, %v1345
    %v1822 = vadd.f32 %v1821, %v1351
    %v1823 = vadd.f32 %v1822, %v1355
    %v1824 = vadd.f32 %v1823, %v1361
    %v1825 = vadd.f32 %v1824, %v1365
    %v1826 = vadd.f32 %v1825, %v1371
    %v1827 = vadd.f32 %v1826, %v1375
    %v1828 = vadd.f32 %v1827, %v1381
    %v1829 = vadd.f32 %v1828, %v1385
    %v1830 = vadd.f32 %v1829, %v1391
    %v1831 = vadd.f32 %v1830, %v1395
    %v1832 = vadd.f32 %v1831, %v1401
    %v1833 = vadd.f32 %v1832, %v1405
    %v1834 = vadd.f32 %v1833, %v1411
    %v1835 = vadd.f32 %v1834, %v1415
    %v1836 = vrot.slane %v1835, 4
    %v1837 = vadd.f32 %v1835, %v1836
    %v1838 = vrot.slane %v1837, 2
    %v1839 = vadd.f32 %v1837, %v1838
    %v1840 = vrot.slane %v1839, 1
    %v1841 = vadd.f32 %v1839, %v1840
    %v1842 = vadd.f32 %v1263, %v1267
    %v1843 = vadd.f32 %v1842, %v1273
    %v1844 = vadd.f32 %v1843, %v1277
    %v1845 = vadd.f32 %v1844, %v1283
    %v1846 = vadd.f32 %v1845, %v1287
    %v1847 = vadd.f32 %v1846, %v1293
    %v1848 = vadd.f32 %v1847, %v1297
    %v1849 = vadd.f32 %v1848, %v1303
    %v1850 = vadd.f32 %v1849, %v1307
    %v1851 = vadd.f32 %v1850, %v1313
    %v1852 = vadd.f32 %v1851, %v1317
    %v1853 = vadd.f32 %v1852, %v1323
    %v1854 = vadd.f32 %v1853, %v1327
    %v1855 = vadd.f32 %v1854, %v1333
    %v1856 = vadd.f32 %v1855, %v1337
    %v1857 = vadd.f32 %v1856, %v1343
    %v1858 = vadd.f32 %v1857, %v1347
    %v1859 = vadd.f32 %v1858, %v1353
    %v1860 = vadd.f32 %v1859, %v1357
    %v1861 = vadd.f32 %v1860, %v1363
    %v1862 = vadd.f32 %v1861, %v1367
    %v1863 = vadd.f32 %v1862, %v1373
    %v1864 = vadd.f32 %v1863, %v1377
    %v1865 = vadd.f32 %v1864, %v1383
    %v1866 = vadd.f32 %v1865, %v1387
    %v1867 = vadd.f32 %v1866, %v1393
    %v1868 = vadd.f32 %v1867, %v1397
    %v1869 = vadd.f32 %v1868, %v1403
    %v1870 = vadd.f32 %v1869, %v1407
    %v1871 = vadd.f32 %v1870, %v1413
    %v1872 = vadd.f32 %v1871, %v1417
    %v1873 = vrot.slane %v1872, 4
    %v1874 = vadd.f32 %v1872, %v1873
    %v1875 = vrot.slane %v1874, 2
    %v1876 = vadd.f32 %v1874, %v1875
    %v1877 = vrot.slane %v1876, 1
    %v1878 = vadd.f32 %v1876, %v1877
    %v1879 = vadd.f32 %v1647, %v1651
    %v1880 = vadd.f32 %v1879, %v1657
    %v1881 = vadd.f32 %v1880, %v1661
    %v1882 = vadd.f32 %v1881, %v1667
    %v1883 = vadd.f32 %v1882, %v1671
    %v1884 = vadd.f32 %v1883, %v1677
    %v1885 = vadd.f32 %v1884, %v1681
    %v1886 = vadd.f32 %v1885, %v1687
    %v1887 = vadd.f32 %v1886, %v1691
    %v1888 = vadd.f32 %v1887, %v1697
    %v1889 = vadd.f32 %v1888, %v1701
    %v1890 = vadd.f32 %v1889, %v1707
    %v1891 = vadd.f32 %v1890, %v1711
    %v1892 = vadd.f32 %v1891, %v1717
    %v1893 = vadd.f32 %v1892, %v1721
    %v1894 = vadd.f32 %v1893, %v1727
    %v1895 = vadd.f32 %v1894, %v1731
    %v1896 = vadd.f32 %v1895, %v1737
    %v1897 = vadd.f32 %v1896, %v1741
    %v1898 = vadd.f32 %v1897, %v1747
    %v1899 = vadd.f32 %v1898, %v1751
    %v1900 = vadd.f32 %v1899, %v1757
    %v1901 = vadd.f32 %v1900, %v1761
    %v1902 = vadd.f32 %v1901, %v1767
    %v1903 = vadd.f32 %v1902, %v1771
    %v1904 = vadd.f32 %v1903, %v1777
    %v1905 = vadd.f32 %v1904, %v1781
    %v1906 = vadd.f32 %v1905, %v1787
    %v1907 = vadd.f32 %v1906, %v1791
    %v1908 = vadd.f32 %v1907, %v1797
    %v1909 = vadd.f32 %v1908, %v1801
    %v1910 = vrot.slane %v1909, 4
    %v1911 = vadd.f32 %v1909, %v1910
    %v1912 = vrot.slane %v1911, 2
    %v1913 = vadd.f32 %v1911, %v1912
    %v1914 = vrot.slane %v1913, 1
    %v1915 = vadd.f32 %v1913, %v1914
    %v1916 = vadd.f32 %v1649, %v1653
    %v1917 = vadd.f32 %v1916, %v1659
    %v1918 = vadd.f32 %v1917, %v1663
    %v1919 = vadd.f32 %v1918, %v1669
    %v1920 = vadd.f32 %v1919, %v1673
    %v1921 = vadd.f32 %v1920, %v1679
    %v1922 = vadd.f32 %v1921, %v1683
    %v1923 = vadd.f32 %v1922, %v1689
    %v1924 = vadd.f32 %v1923, %v1693
    %v1925 = vadd.f32 %v1924, %v1699
    %v1926 = vadd.f32 %v1925, %v1703
    %v1927 = vadd.f32 %v1926, %v1709
    %v1928 = vadd.f32 %v1927, %v1713
    %v1929 = vadd.f32 %v1928, %v1719
    %v1930 = vadd.f32 %v1929, %v1723
    %v1931 = vadd.f32 %v1930, %v1729
    %v1932 = vadd.f32 %v1931, %v1733
    %v1933 = vadd.f32 %v1932, %v1739
    %v1934 = vadd.f32 %v1933, %v1743
    %v1935 = vadd.f32 %v1934, %v1749
    %v1936 = vadd.f32 %v1935, %v1753
    %v1937 = vadd.f32 %v1936, %v1759
    %v1938 = vadd.f32 %v1937, %v1763
    %v1939 = vadd.f32 %v1938, %v1769
    %v1940 = vadd.f32 %v1939, %v1773
    %v1941 = vadd.f32 %v1940, %v1779
    %v1942 = vadd.f32 %v1941, %v1783
    %v1943 = vadd.f32 %v1942, %v1789
    %v1944 = vadd.f32 %v1943, %v1793
    %v1945 = vadd.f32 %v1944, %v1799
    %v1946 = vadd.f32 %v1945, %v1803
    %v1947 = vrot.slane %v1946, 4
    %v1948 = vadd.f32 %v1946, %v1947
    %v1949 = vrot.slane %v1948, 2
    %v1950 = vadd.f32 %v1948, %v1949
    %v1951 = vrot.slane %v1950, 1
    %v1952 = vadd.f32 %v1950, %v1951
    %v1953 = vmul.f32 %v1261, %v1261
    %v1954 = vmul.f32 %v1263, %v1263
    %v1955 = vmul.f32 %v1647, %v1647
    %v1956 = vmul.f32 %v1649, %v1649
    %v1957 = vmul.f32 %v1265, %v1265
    %v1958 = vmul.f32 %v1267, %v1267
    %v1959 = vmul.f32 %v1651, %v1651
    %v1960 = vmul.f32 %v1653, %v1653
    %v1961 = vmul.f32 %v1271, %v1271
    %v1962 = vmul.f32 %v1273, %v1273
    %v1963 = vmul.f32 %v1657, %v1657
    %v1964 = vmul.f32 %v1659, %v1659
    %v1965 = vmul.f32 %v1275, %v1275
    %v1966 = vmul.f32 %v1277, %v1277
    %v1967 = vmul.f32 %v1661, %v1661
    %v1968 = vmul.f32 %v1663, %v1663
    %v1969 = vmul.f32 %v1281, %v1281
    %v1970 = vmul.f32 %v1283, %v1283
    %v1971 = vmul.f32 %v1667, %v1667
    %v1972 = vmul.f32 %v1669, %v1669
    %v1973 = vmul.f32 %v1285, %v1285
    %v1974 = vmul.f32 %v1287, %v1287
    %v1975 = vmul.f32 %v1671, %v1671
    %v1976 = vmul.f32 %v1673, %v1673
    %v1977 = vmul.f32 %v1291, %v1291
    %v1978 = vmul.f32 %v1293, %v1293
    %v1979 = vmul.f32 %v1677, %v1677
    %v1980 = vmul.f32 %v1679, %v1679
    %v1981 = vmul.f32 %v1295, %v1295
    %v1982 = vmul.f32 %v1297, %v1297
    %v1983 = vmul.f32 %v1681, %v1681
    %v1984 = vmul.f32 %v1683, %v1683
    %v1985 = vmul.f32 %v1301, %v1301
    %v1986 = vmul.f32 %v1303, %v1303
    %v1987 = vmul.f32 %v1687, %v1687
    %v1988 = vmul.f32 %v1689, %v1689
    %v1989 = vmul.f32 %v1305, %v1305
    %v1990 = vmul.f32 %v1307, %v1307
    %v1991 = vmul.f32 %v1691, %v1691
    %v1992 = vmul.f32 %v1693, %v1693
    %v1993 = vmul.f32 %v1311, %v1311
    %v1994 = vmul.f32 %v1313, %v1313
    %v1995 = vmul.f32 %v1697, %v1697
    %v1996 = vmul.f32 %v1699, %v1699
    %v1997 = vmul.f32 %v1315, %v1315
    %v1998 = vmul.f32 %v1317, %v1317
    %v1999 = vmul.f32 %v1701, %v1701
    %v2000 = vmul.f32 %v1703, %v1703
    %v2001 = vmul.f32 %v1321, %v1321
    %v2002 = vmul.f32 %v1323, %v1323
    %v2003 = vmul.f32 %v1707, %v1707
    %v2004 = vmul.f32 %v1709, %v1709
    %v2005 = vmul.f32 %v1325, %v1325
    %v2006 = vmul.f32 %v1327, %v1327
    %v2007 = vmul.f32 %v1711, %v1711
    %v2008 = vmul.f32 %v1713, %v1713
    %v2009 = vmul.f32 %v1331, %v1331
    %v2010 = vmul.f32 %v1333, %v1333
    %v2011 = vmul.f32 %v1717, %v1717
    %v2012 = vmul.f32 %v1719, %v1719
    %v2013 = vmul.f32 %v1335, %v1335
    %v2014 = vmul.f32 %v1337, %v1337
    %v2015 = vmul.f32 %v1721, %v1721
    %v2016 = vmul.f32 %v1723, %v1723
    %v2017 = vmul.f32 %v1341, %v1341
    %v2018 = vmul.f32 %v1343, %v1343
    %v2019 = vmul.f32 %v1727, %v1727
    %v2020 = vmul.f32 %v1729, %v1729
    %v2021 = vmul.f32 %v1345, %v1345
    %v2022 = vmul.f32 %v1347, %v1347
    %v2023 = vmul.f32 %v1731, %v1731
    %v2024 = vmul.f32 %v1733, %v1733
    %v2025 = vmul.f32 %v1351, %v1351
    %v2026 = vmul.f32 %v1353, %v1353
    %v2027 = vmul.f32 %v1737, %v1737
    %v2028 = vmul.f32 %v1739, %v1739
    %v2029 = vmul.f32 %v1355, %v1355
    %v2030 = vmul.f32 %v1357, %v1357
    %v2031 = vmul.f32 %v1741, %v1741
    %v2032 = vmul.f32 %v1743, %v1743
    %v2033 = vmul.f32 %v1361, %v1361
    %v2034 = vmul.f32 %v1363, %v1363
    %v2035 = vmul.f32 %v1747, %v1747
    %v2036 = vmul.f32 %v1749, %v1749
    %v2037 = vmul.f32 %v1365, %v1365
    %v2038 = vmul.f32 %v1367, %v1367
    %v2039 = vmul.f32 %v1751, %v1751
    %v2040 = vmul.f32 %v1753, %v1753
    %v2041 = vmul.f32 %v1371, %v1371
    %v2042 = vmul.f32 %v1373, %v1373
    %v2043 = vmul.f32 %v1757, %v1757
    %v2044 = vmul.f32 %v1759, %v1759
    %v2045 = vmul.f32 %v1375, %v1375
    %v2046 = vmul.f32 %v1377, %v1377
    %v2047 = vmul.f32 %v1761, %v1761
    %v2048 = vmul.f32 %v1763, %v1763
    %v2049 = vmul.f32 %v1381, %v1381
    %v2050 = vmul.f32 %v1383, %v1383
    %v2051 = vmul.f32 %v1767, %v1767
    %v2052 = vmul.f32 %v1769, %v1769
    %v2053 = vmul.f32 %v1385, %v1385
    %v2054 = vmul.f32 %v1387, %v1387
    %v2055 = vmul.f32 %v1771, %v1771
    %v2056 = vmul.f32 %v1773, %v1773
    %v2057 = vmul.f32 %v1391, %v1391
    %v2058 = vmul.f32 %v1393, %v1393
    %v2059 = vmul.f32 %v1777, %v1777
    %v2060 = vmul.f32 %v1779, %v1779
    %v2061 = vmul.f32 %v1395, %v1395
    %v2062 = vmul.f32 %v1397, %v1397
    %v2063 = vmul.f32 %v1781, %v1781
    %v2064 = vmul.f32 %v1783, %v1783
    %v2065 = vmul.f32 %v1401, %v1401
    %v2066 = vmul.f32 %v1403, %v1403
    %v2067 = vmul.f32 %v1787, %v1787
    %v2068 = vmul.f32 %v1789, %v1789
    %v2069 = vmul.f32 %v1405, %v1405
    %v2070 = vmul.f32 %v1407, %v1407
    %v2071 = vmul.f32 %v1791, %v1791
    %v2072 = vmul.f32 %v1793, %v1793
    %v2073 = vmul.f32 %v1411, %v1411
    %v2074 = vmul.f32 %v1413, %v1413
    %v2075 = vmul.f32 %v1797, %v1797
    %v2076 = vmul.f32 %v1799, %v1799
    %v2077 = vmul.f32 %v1415, %v1415
    %v2078 = vmul.f32 %v1417, %v1417
    %v2079 = vmul.f32 %v1801, %v1801
    %v2080 = vmul.f32 %v1803, %v1803
    %v2081 = vadd.f32 %v1953, %v1957
    %v2082 = vadd.f32 %v2081, %v1961
    %v2083 = vadd.f32 %v2082, %v1965
    %v2084 = vadd.f32 %v2083, %v1969
    %v2085 = vadd.f32 %v2084, %v1973
    %v2086 = vadd.f32 %v2085, %v1977
    %v2087 = vadd.f32 %v2086, %v1981
    %v2088 = vadd.f32 %v2087, %v1985
    %v2089 = vadd.f32 %v2088, %v1989
    %v2090 = vadd.f32 %v2089, %v1993
    %v2091 = vadd.f32 %v2090, %v1997
    %v2092 = vadd.f32 %v2091, %v2001
    %v2093 = vadd.f32 %v2092, %v2005
    %v2094 = vadd.f32 %v2093, %v2009
    %v2095 = vadd.f32 %v2094, %v2013
    %v2096 = vadd.f32 %v2095, %v2017
    %v2097 = vadd.f32 %v2096, %v2021
    %v2098 = vadd.f32 %v2097, %v2025
    %v2099 = vadd.f32 %v2098, %v2029
    %v2100 = vadd.f32 %v2099, %v2033
    %v2101 = vadd.f32 %v2100, %v2037
    %v2102 = vadd.f32 %v2101, %v2041
    %v2103 = vadd.f32 %v2102, %v2045
    %v2104 = vadd.f32 %v2103, %v2049
    %v2105 = vadd.f32 %v2104, %v2053
    %v2106 = vadd.f32 %v2105, %v2057
    %v2107 = vadd.f32 %v2106, %v2061
    %v2108 = vadd.f32 %v2107, %v2065
    %v2109 = vadd.f32 %v2108, %v2069
    %v2110 = vadd.f32 %v2109, %v2073
    %v2111 = vadd.f32 %v2110, %v2077
    %v2112 = vrot.slane %v2111, 4
    %v2113 = vadd.f32 %v2111, %v2112
    %v2114 = vrot.slane %v2113, 2
    %v2115 = vadd.f32 %v2113, %v2114
    %v2116 = vrot.slane %v2115, 1
    %v2117 = vadd.f32 %v2115, %v2116
    %v2118 = vadd.f32 %v1954, %v1958
    %v2119 = vadd.f32 %v2118, %v1962
    %v2120 = vadd.f32 %v2119, %v1966
    %v2121 = vadd.f32 %v2120, %v1970
    %v2122 = vadd.f32 %v2121, %v1974
    %v2123 = vadd.f32 %v2122, %v1978
    %v2124 = vadd.f32 %v2123, %v1982
    %v2125 = vadd.f32 %v2124, %v1986
    %v2126 = vadd.f32 %v2125, %v1990
    %v2127 = vadd.f32 %v2126, %v1994
    %v2128 = vadd.f32 %v2127, %v1998
    %v2129 = vadd.f32 %v2128, %v2002
    %v2130 = vadd.f32 %v2129, %v2006
    %v2131 = vadd.f32 %v2130, %v2010
    %v2132 = vadd.f32 %v2131, %v2014
    %v2133 = vadd.f32 %v2132, %v2018
    %v2134 = vadd.f32 %v2133, %v2022
    %v2135 = vadd.f32 %v2134, %v2026
    %v2136 = vadd.f32 %v2135, %v2030
    %v2137 = vadd.f32 %v2136, %v2034
    %v2138 = vadd.f32 %v2137, %v2038
    %v2139 = vadd.f32 %v2138, %v2042
    %v2140 = vadd.f32 %v2139, %v2046
    %v2141 = vadd.f32 %v2140, %v2050
    %v2142 = vadd.f32 %v2141, %v2054
    %v2143 = vadd.f32 %v2142, %v2058
    %v2144 = vadd.f32 %v2143, %v2062
    %v2145 = vadd.f32 %v2144, %v2066
    %v2146 = vadd.f32 %v2145, %v2070
    %v2147 = vadd.f32 %v2146, %v2074
    %v2148 = vadd.f32 %v2147, %v2078
    %v2149 = vrot.slane %v2148, 4
    %v2150 = vadd.f32 %v2148, %v2149
    %v2151 = vrot.slane %v2150, 2
    %v2152 = vadd.f32 %v2150, %v2151
    %v2153 = vrot.slane %v2152, 1
    %v2154 = vadd.f32 %v2152, %v2153
    %v2155 = vadd.f32 %v1955, %v1959
    %v2156 = vadd.f32 %v2155, %v1963
    %v2157 = vadd.f32 %v2156, %v1967
    %v2158 = vadd.f32 %v2157, %v1971
    %v2159 = vadd.f32 %v2158, %v1975
    %v2160 = vadd.f32 %v2159, %v1979
    %v2161 = vadd.f32 %v2160, %v1983
    %v2162 = vadd.f32 %v2161, %v1987
    %v2163 = vadd.f32 %v2162, %v1991
    %v2164 = vadd.f32 %v2163, %v1995
    %v2165 = vadd.f32 %v2164, %v1999
    %v2166 = vadd.f32 %v2165, %v2003
    %v2167 = vadd.f32 %v2166, %v2007
    %v2168 = vadd.f32 %v2167, %v2011
    %v2169 = vadd.f32 %v2168, %v2015
    %v2170 = vadd.f32 %v2169, %v2019
    %v2171 = vadd.f32 %v2170, %v2023
    %v2172 = vadd.f32 %v2171, %v2027
    %v2173 = vadd.f32 %v2172, %v2031
    %v2174 = vadd.f32 %v2173, %v2035
    %v2175 = vadd.f32 %v2174, %v2039
    %v2176 = vadd.f32 %v2175, %v2043
    %v2177 = vadd.f32 %v2176, %v2047
    %v2178 = vadd.f32 %v2177, %v2051
    %v2179 = vadd.f32 %v2178, %v2055
    %v2180 = vadd.f32 %v2179, %v2059
    %v2181 = vadd.f32 %v2180, %v2063
    %v2182 = vadd.f32 %v2181, %v2067
    %v2183 = vadd.f32 %v2182, %v2071
    %v2184 = vadd.f32 %v2183, %v2075
    %v2185 = vadd.f32 %v2184, %v2079
    %v2186 = vrot.slane %v2185, 4
    %v2187 = vadd.f32 %v2185, %v2186
    %v2188 = vrot.slane %v2187, 2
    %v2189 = vadd.f32 %v2187, %v2188
    %v2190 = vrot.slane %v2189, 1
    %v2191 = vadd.f32 %v2189, %v2190
    %v2192 = vadd.f32 %v1956, %v1960
    %v2193 = vadd.f32 %v2192, %v1964
    %v2194 = vadd.f32 %v2193, %v1968
    %v2195 = vadd.f32 %v2194, %v1972
    %v2196 = vadd.f32 %v2195, %v1976
    %v2197 = vadd.f32 %v2196, %v1980
    %v2198 = vadd.f32 %v2197, %v1984
    %v2199 = vadd.f32 %v2198, %v1988
    %v2200 = vadd.f32 %v2199, %v1992
    %v2201 = vadd.f32 %v2200, %v1996
    %v2202 = vadd.f32 %v2201, %v2000
    %v2203 = vadd.f32 %v2202, %v2004
    %v2204 = vadd.f32 %v2203, %v2008
    %v2205 = vadd.f32 %v2204, %v2012
    %v2206 = vadd.f32 %v2205, %v2016
    %v2207 = vadd.f32 %v2206, %v2020
    %v2208 = vadd.f32 %v2207, %v2024
    %v2209 = vadd.f32 %v2208, %v2028
    %v2210 = vadd.f32 %v2209, %v2032
    %v2211 = vadd.f32 %v2210, %v2036
    %v2212 = vadd.f32 %v2211, %v2040
    %v2213 = vadd.f32 %v2212, %v2044
    %v2214 = vadd.f32 %v2213, %v2048
    %v2215 = vadd.f32 %v2214, %v2052
    %v2216 = vadd.f32 %v2215, %v2056
    %v2217 = vadd.f32 %v2216, %v2060
    %v2218 = vadd.f32 %v2217, %v2064
    %v2219 = vadd.f32 %v2218, %v2068
    %v2220 = vadd.f32 %v2219, %v2072
    %v2221 = vadd.f32 %v2220, %v2076
    %v2222 = vadd.f32 %v2221, %v2080
    %v2223 = vrot.slane %v2222, 4
    %v2224 = vadd.f32 %v2222, %v2223
    %v2225 = vrot.slane %v2224, 2
    %v2226 = vadd.f32 %v2224, %v2225
    %v2227 = vrot.slane %v2226, 1
    %v2228 = vadd.f32 %v2226, %v2227
    %v2229 = vmul.f32 %v1841, 0.00390625
    %v2230 = vmul.f32 %v1878, 0.00390625
    %v2231 = vmul.f32 %v1915, 0.00390625
    %v2232 = vmul.f32 %v1952, 0.00390625
    %v2233 = vmul.f32 %v2117, 0.00390625
    %v2234 = vmul.f32 %v2154, 0.00390625
    %v2235 = vmul.f32 %v2191, 0.00390625
    %v2236 = vmul.f32 %v2228, 0.00390625
    %v2237 = vmul.f32 %v2229, %v2229
    %v2238 = vmul.f32 %v2230, %v2230
    %v2239 = vmul.f32 %v2231, %v2231
    %v2240 = vmul.f32 %v2232, %v2232
    %v2241 = vsub.f32 %v2233, %v2237
    %v2242 = vsub.f32 %v2234, %v2238
    %v2243 = vsub.f32 %v2235, %v2239
    %v2244 = vsub.f32 %v2236, %v2240
    %v2245 = vmax.f32 %v2241, 0.0
    %v2246 = vmax.f32 %v2242, 0.0
    %v2247 = vmax.f32 %v2243, 0.0
    %v2248 = vmax.f32 %v2244, 0.0
    %v2249 = vadd.f32 %v2245, 1e-05
    %v2250 = vadd.f32 %v2246, 1e-05
    %v2251 = vadd.f32 %v2247, 1e-05
    %v2252 = vadd.f32 %v2248, 1e-05
    %v2253 = vrsqrt.pop %v2249
    %v2254 = vrsqrt.pop %v2250
    %v2255 = vrsqrt.pop %v2251
    %v2256 = vrsqrt.pop %v2252
    %v2261 = vcombine.low %v2253, %v2254
    %v2262 = vcombine.low %v2255, %v2256
    %v2265 = vmul.f32 %v71, %v2261
    %v2266 = vmul.f32 %v72, %v2262
    %v2269 = vlaneseq
    %v2270 = vshrl.u32 %v2269, 7
    %v2271 = vsub.s32 0, %v2270
    %v2272 = vrot.slane %v2265, %v2271
    %v2273 = vlaneseq
    %v2274 = vshrl.u32 %v2273, 7
    %v2275 = vsub.s32 4, %v2274
    %v2276 = vrot.slane %v2265, %v2275
    %v2277 = vlaneseq
    %v2278 = vshrl.u32 %v2277, 7
    %v2279 = vsub.s32 0, %v2278
    %v2280 = vrot.slane %v2266, %v2279
    %v2281 = vlaneseq
    %v2282 = vshrl.u32 %v2281, 7
    %v2283 = vsub.s32 4, %v2282
    %v2284 = vrot.slane %v2266, %v2283
    %v2289 = vmul.f32 %v2229, %v2272
    %v2290 = vmul.f32 %v2230, %v2276
    %v2291 = vmul.f32 %v2231, %v2280
    %v2292 = vmul.f32 %v2232, %v2284
    %v2297 = vcombine.low %v2289, %v2290
    %v2298 = vcombine.low %v2291, %v2292
    %v2299 = vrot.slane %v2297, 7
    %v2300 = vrot.slane %v2298, 7
    %v2303 = vsub.f32 %v71, %v2299
    %v2304 = vsub.f32 %v72, %v2300
    %v2305 = vlaneseq
    %v2306 = vshrl.u32 %v2305, 7
    %v2307 = vsub.s32 0, %v2306
    %v2308 = vrot.slane %v2272, %v2307
    %v2309 = vlaneseq
    %v2310 = vshrl.u32 %v2309, 7
    %v2311 = vsub.s32 0, %v2310
    %v2312 = vrot.slane %v2276, %v2311
    %v2313 = vlaneseq
    %v2314 = vshrl.u32 %v2313, 7
    %v2315 = vsub.s32 0, %v2314
    %v2316 = vrot.slane %v2280, %v2315
    %v2317 = vlaneseq
    %v2318 = vshrl.u32 %v2317, 7
    %v2319 = vsub.s32 0, %v2318
    %v2320 = vrot.slane %v2284, %v2319
    %v2321 = vmul.f32 %v1261, %v2308
    %v2322 = vmul.f32 %v1263, %v2312
    %v2323 = vmul.f32 %v1647, %v2316
    %v2324 = vmul.f32 %v1649, %v2320
    %v2325 = vmul.f32 %v1265, %v2308
    %v2326 = vmul.f32 %v1267, %v2312
    %v2327 = vmul.f32 %v1651, %v2316
    %v2328 = vmul.f32 %v1653, %v2320
    %v2329 = vmul.f32 %v1271, %v2308
    %v2330 = vmul.f32 %v1273, %v2312
    %v2331 = vmul.f32 %v1657, %v2316
    %v2332 = vmul.f32 %v1659, %v2320
    %v2333 = vmul.f32 %v1275, %v2308
    %v2334 = vmul.f32 %v1277, %v2312
    %v2335 = vmul.f32 %v1661, %v2316
    %v2336 = vmul.f32 %v1663, %v2320
    %v2337 = vmul.f32 %v1281, %v2308
    %v2338 = vmul.f32 %v1283, %v2312
    %v2339 = vmul.f32 %v1667, %v2316
    %v2340 = vmul.f32 %v1669, %v2320
    %v2341 = vmul.f32 %v1285, %v2308
    %v2342 = vmul.f32 %v1287, %v2312
    %v2343 = vmul.f32 %v1671, %v2316
    %v2344 = vmul.f32 %v1673, %v2320
    %v2345 = vmul.f32 %v1291, %v2308
    %v2346 = vmul.f32 %v1293, %v2312
    %v2347 = vmul.f32 %v1677, %v2316
    %v2348 = vmul.f32 %v1679, %v2320
    %v2349 = vmul.f32 %v1295, %v2308
    %v2350 = vmul.f32 %v1297, %v2312
    %v2351 = vmul.f32 %v1681, %v2316
    %v2352 = vmul.f32 %v1683, %v2320
    %v2353 = vmul.f32 %v1301, %v2308
    %v2354 = vmul.f32 %v1303, %v2312
    %v2355 = vmul.f32 %v1687, %v2316
    %v2356 = vmul.f32 %v1689, %v2320
    %v2357 = vmul.f32 %v1305, %v2308
    %v2358 = vmul.f32 %v1307, %v2312
    %v2359 = vmul.f32 %v1691, %v2316
    %v2360 = vmul.f32 %v1693, %v2320
    %v2361 = vmul.f32 %v1311, %v2308
    %v2362 = vmul.f32 %v1313, %v2312
    %v2363 = vmul.f32 %v1697, %v2316
    %v2364 = vmul.f32 %v1699, %v2320
    %v2365 = vmul.f32 %v1315, %v2308
    %v2366 = vmul.f32 %v1317, %v2312
    %v2367 = vmul.f32 %v1701, %v2316
    %v2368 = vmul.f32 %v1703, %v2320
    %v2369 = vmul.f32 %v1321, %v2308
    %v2370 = vmul.f32 %v1323, %v2312
    %v2371 = vmul.f32 %v1707, %v2316
    %v2372 = vmul.f32 %v1709, %v2320
    %v2373 = vmul.f32 %v1325, %v2308
    %v2374 = vmul.f32 %v1327, %v2312
    %v2375 = vmul.f32 %v1711, %v2316
    %v2376 = vmul.f32 %v1713, %v2320
    %v2377 = vmul.f32 %v1331, %v2308
    %v2378 = vmul.f32 %v1333, %v2312
    %v2379 = vmul.f32 %v1717, %v2316
    %v2380 = vmul.f32 %v1719, %v2320
    %v2381 = vmul.f32 %v1335, %v2308
    %v2382 = vmul.f32 %v1337, %v2312
    %v2383 = vmul.f32 %v1721, %v2316
    %v2384 = vmul.f32 %v1723, %v2320
    %v2385 = vmul.f32 %v1341, %v2308
    %v2386 = vmul.f32 %v1343, %v2312
    %v2387 = vmul.f32 %v1727, %v2316
    %v2388 = vmul.f32 %v1729, %v2320
    %v2389 = vmul.f32 %v1345, %v2308
    %v2390 = vmul.f32 %v1347, %v2312
    %v2391 = vmul.f32 %v1731, %v2316
    %v2392 = vmul.f32 %v1733, %v2320
    %v2393 = vmul.f32 %v1351, %v2308
    %v2394 = vmul.f32 %v1353, %v2312
    %v2395 = vmul.f32 %v1737, %v2316
    %v2396 = vmul.f32 %v1739, %v2320
    %v2397 = vmul.f32 %v1355, %v2308
    %v2398 = vmul.f32 %v1357, %v2312
    %v2399 = vmul.f32 %v1741, %v2316
    %v2400 = vmul.f32 %v1743, %v2320
    %v2401 = vmul.f32 %v1361, %v2308
    %v2402 = vmul.f32 %v1363, %v2312
    %v2403 = vmul.f32 %v1747, %v2316
    %v2404 = vmul.f32 %v1749, %v2320
    %v2405 = vmul.f32 %v1365, %v2308
    %v2406 = vmul.f32 %v1367, %v2312
    %v2407 = vmul.f32 %v1751, %v2316
    %v2408 = vmul.f32 %v1753, %v2320
    %v2409 = vmul.f32 %v1371, %v2308
    %v2410 = vmul.f32 %v1373, %v2312
    %v2411 = vmul.f32 %v1757, %v2316
    %v2412 = vmul.f32 %v1759, %v2320
    %v2413 = vmul.f32 %v1375, %v2308
    %v2414 = vmul.f32 %v1377, %v2312
    %v2415 = vmul.f32 %v1761, %v2316
    %v2416 = vmul.f32 %v1763, %v2320
    %v2417 = vmul.f32 %v1381, %v2308
    %v2418 = vmul.f32 %v1383, %v2312
    %v2419 = vmul.f32 %v1767, %v2316
    %v2420 = vmul.f32 %v1769, %v2320
    %v2421 = vmul.f32 %v1385, %v2308
    %v2422 = vmul.f32 %v1387, %v2312
    %v2423 = vmul.f32 %v1771, %v2316
    %v2424 = vmul.f32 %v1773, %v2320
    %v2425 = vmul.f32 %v1391, %v2308
    %v2426 = vmul.f32 %v1393, %v2312
    %v2427 = vmul.f32 %v1777, %v2316
    %v2428 = vmul.f32 %v1779, %v2320
    %v2429 = vmul.f32 %v1395, %v2308
    %v2430 = vmul.f32 %v1397, %v2312
    %v2431 = vmul.f32 %v1781, %v2316
    %v2432 = vmul.f32 %v1783, %v2320
    %v2433 = vmul.f32 %v1401, %v2308
    %v2434 = vmul.f32 %v1403, %v2312
    %v2435 = vmul.f32 %v1787, %v2316
    %v2436 = vmul.f32 %v1789, %v2320
    %v2437 = vmul.f32 %v1405, %v2308
    %v2438 = vmul.f32 %v1407, %v2312
    %v2439 = vmul.f32 %v1791, %v2316
    %v2440 = vmul.f32 %v1793, %v2320
    %v2441 = vmul.f32 %v1411, %v2308
    %v2442 = vmul.f32 %v1413, %v2312
    %v2443 = vmul.f32 %v1797, %v2316
    %v2444 = vmul.f32 %v1799, %v2320
    %v2445 = vmul.f32 %v1415, %v2308
    %v2446 = vmul.f32 %v1417, %v2312
    %v2447 = vmul.f32 %v1801, %v2316
    %v2448 = vmul.f32 %v1803, %v2320
    %v2451 = vlaneseq
    %v2452 = vshrl.u32 %v2451, 7
    %v2453 = vsub.s32 1, %v2452
    %v2454 = vrot.slane %v2303, %v2453
    %v2455 = vlaneseq
    %v2456 = vshrl.u32 %v2455, 7
    %v2457 = vsub.s32 5, %v2456
    %v2458 = vrot.slane %v2303, %v2457
    %v2459 = vlaneseq
    %v2460 = vshrl.u32 %v2459, 7
    %v2461 = vsub.s32 1, %v2460
    %v2462 = vrot.slane %v2304, %v2461
    %v2463 = vlaneseq
    %v2464 = vshrl.u32 %v2463, 7
    %v2465 = vsub.s32 5, %v2464
    %v2466 = vrot.slane %v2304, %v2465
    %v2471 = vlaneseq
    %v2472 = vshrl.u32 %v2471, 7
    %v2473 = vsub.s32 1, %v2472
    %v2474 = vrot.slane %v2454, %v2473
    %v2475 = vlaneseq
    %v2476 = vshrl.u32 %v2475, 7
    %v2477 = vsub.s32 1, %v2476
    %v2478 = vrot.slane %v2458, %v2477
    %v2479 = vlaneseq
    %v2480 = vshrl.u32 %v2479, 7
    %v2481 = vsub.s32 1, %v2480
    %v2482 = vrot.slane %v2462, %v2481
    %v2483 = vlaneseq
    %v2484 = vshrl.u32 %v2483, 7
    %v2485 = vsub.s32 1, %v2484
    %v2486 = vrot.slane %v2466, %v2485
    %v2487 = vadd.f32 %v2321, %v2474
    %v2488 = vadd.f32 %v2322, %v2478
    %v2489 = vadd.f32 %v2323, %v2482
    %v2490 = vadd.f32 %v2324, %v2486
    %v2491 = vadd.f32 %v2325, %v2474
    %v2492 = vadd.f32 %v2326, %v2478
    %v2493 = vadd.f32 %v2327, %v2482
    %v2494 = vadd.f32 %v2328, %v2486
    %v2495 = vadd.f32 %v2329, %v2474
    %v2496 = vadd.f32 %v2330, %v2478
    %v2497 = vadd.f32 %v2331, %v2482
    %v2498 = vadd.f32 %v2332, %v2486
    %v2499 = vadd.f32 %v2333, %v2474
    %v2500 = vadd.f32 %v2334, %v2478
    %v2501 = vadd.f32 %v2335, %v2482
    %v2502 = vadd.f32 %v2336, %v2486
    %v2503 = vadd.f32 %v2337, %v2474
    %v2504 = vadd.f32 %v2338, %v2478
    %v2505 = vadd.f32 %v2339, %v2482
    %v2506 = vadd.f32 %v2340, %v2486
    %v2507 = vadd.f32 %v2341, %v2474
    %v2508 = vadd.f32 %v2342, %v2478
    %v2509 = vadd.f32 %v2343, %v2482
    %v2510 = vadd.f32 %v2344, %v2486
    %v2511 = vadd.f32 %v2345, %v2474
    %v2512 = vadd.f32 %v2346, %v2478
    %v2513 = vadd.f32 %v2347, %v2482
    %v2514 = vadd.f32 %v2348, %v2486
    %v2515 = vadd.f32 %v2349, %v2474
    %v2516 = vadd.f32 %v2350, %v2478
    %v2517 = vadd.f32 %v2351, %v2482
    %v2518 = vadd.f32 %v2352, %v2486
    %v2519 = vadd.f32 %v2353, %v2474
    %v2520 = vadd.f32 %v2354, %v2478
    %v2521 = vadd.f32 %v2355, %v2482
    %v2522 = vadd.f32 %v2356, %v2486
    %v2523 = vadd.f32 %v2357, %v2474
    %v2524 = vadd.f32 %v2358, %v2478
    %v2525 = vadd.f32 %v2359, %v2482
    %v2526 = vadd.f32 %v2360, %v2486
    %v2527 = vadd.f32 %v2361, %v2474
    %v2528 = vadd.f32 %v2362, %v2478
    %v2529 = vadd.f32 %v2363, %v2482
    %v2530 = vadd.f32 %v2364, %v2486
    %v2531 = vadd.f32 %v2365, %v2474
    %v2532 = vadd.f32 %v2366, %v2478
    %v2533 = vadd.f32 %v2367, %v2482
    %v2534 = vadd.f32 %v2368, %v2486
    %v2535 = vadd.f32 %v2369, %v2474
    %v2536 = vadd.f32 %v2370, %v2478
    %v2537 = vadd.f32 %v2371, %v2482
    %v2538 = vadd.f32 %v2372, %v2486
    %v2539 = vadd.f32 %v2373, %v2474
    %v2540 = vadd.f32 %v2374, %v2478
    %v2541 = vadd.f32 %v2375, %v2482
    %v2542 = vadd.f32 %v2376, %v2486
    %v2543 = vadd.f32 %v2377, %v2474
    %v2544 = vadd.f32 %v2378, %v2478
    %v2545 = vadd.f32 %v2379, %v2482
    %v2546 = vadd.f32 %v2380, %v2486
    %v2547 = vadd.f32 %v2381, %v2474
    %v2548 = vadd.f32 %v2382, %v2478
    %v2549 = vadd.f32 %v2383, %v2482
    %v2550 = vadd.f32 %v2384, %v2486
    %v2551 = vadd.f32 %v2385, %v2474
    %v2552 = vadd.f32 %v2386, %v2478
    %v2553 = vadd.f32 %v2387, %v2482
    %v2554 = vadd.f32 %v2388, %v2486
    %v2555 = vadd.f32 %v2389, %v2474
    %v2556 = vadd.f32 %v2390, %v2478
    %v2557 = vadd.f32 %v2391, %v2482
    %v2558 = vadd.f32 %v2392, %v2486
    %v2559 = vadd.f32 %v2393, %v2474
    %v2560 = vadd.f32 %v2394, %v2478
    %v2561 = vadd.f32 %v2395, %v2482
    %v2562 = vadd.f32 %v2396, %v2486
    %v2563 = vadd.f32 %v2397, %v2474
    %v2564 = vadd.f32 %v2398, %v2478
    %v2565 = vadd.f32 %v2399, %v2482
    %v2566 = vadd.f32 %v2400, %v2486
    %v2567 = vadd.f32 %v2401, %v2474
    %v2568 = vadd.f32 %v2402, %v2478
    %v2569 = vadd.f32 %v2403, %v2482
    %v2570 = vadd.f32 %v2404, %v2486
    %v2571 = vadd.f32 %v2405, %v2474
    %v2572 = vadd.f32 %v2406, %v2478
    %v2573 = vadd.f32 %v2407, %v2482
    %v2574 = vadd.f32 %v2408, %v2486
    %v2575 = vadd.f32 %v2409, %v2474
    %v2576 = vadd.f32 %v2410, %v2478
    %v2577 = vadd.f32 %v2411, %v2482
    %v2578 = vadd.f32 %v2412, %v2486
    %v2579 = vadd.f32 %v2413, %v2474
    %v2580 = vadd.f32 %v2414, %v2478
    %v2581 = vadd.f32 %v2415, %v2482
    %v2582 = vadd.f32 %v2416, %v2486
    %v2583 = vadd.f32 %v2417, %v2474
    %v2584 = vadd.f32 %v2418, %v2478
    %v2585 = vadd.f32 %v2419, %v2482
    %v2586 = vadd.f32 %v2420, %v2486
    %v2587 = vadd.f32 %v2421, %v2474
    %v2588 = vadd.f32 %v2422, %v2478
    %v2589 = vadd.f32 %v2423, %v2482
    %v2590 = vadd.f32 %v2424, %v2486
    %v2591 = vadd.f32 %v2425, %v2474
    %v2592 = vadd.f32 %v2426, %v2478
    %v2593 = vadd.f32 %v2427, %v2482
    %v2594 = vadd.f32 %v2428, %v2486
    %v2595 = vadd.f32 %v2429, %v2474
    %v2596 = vadd.f32 %v2430, %v2478
    %v2597 = vadd.f32 %v2431, %v2482
    %v2598 = vadd.f32 %v2432, %v2486
    %v2599 = vadd.f32 %v2433, %v2474
    %v2600 = vadd.f32 %v2434, %v2478
    %v2601 = vadd.f32 %v2435, %v2482
    %v2602 = vadd.f32 %v2436, %v2486
    %v2603 = vadd.f32 %v2437, %v2474
    %v2604 = vadd.f32 %v2438, %v2478
    %v2605 = vadd.f32 %v2439, %v2482
    %v2606 = vadd.f32 %v2440, %v2486
    %v2607 = vadd.f32 %v2441, %v2474
    %v2608 = vadd.f32 %v2442, %v2478
    %v2609 = vadd.f32 %v2443, %v2482
    %v2610 = vadd.f32 %v2444, %v2486
    %v2611 = vadd.f32 %v2445, %v2474
    %v2612 = vadd.f32 %v2446, %v2478
    %v2613 = vadd.f32 %v2447, %v2482
    %v2614 = vadd.f32 %v2448, %v2486
    %v2615 = vmax.f32 %v2487, 0.0
    %v2616 = vmax.f32 %v2488, 0.0
    %v2617 = vmax.f32 %v2489, 0.0
    %v2618 = vmax.f32 %v2490, 0.0
    %v2619 = vmax.f32 %v2491, 0.0
    %v2620 = vmax.f32 %v2492, 0.0
    %v2621 = vmax.f32 %v2493, 0.0
    %v2622 = vmax.f32 %v2494, 0.0
    %v2623 = vmax.f32 %v2495, 0.0
    %v2624 = vmax.f32 %v2496, 0.0
    %v2625 = vmax.f32 %v2497, 0.0
    %v2626 = vmax.f32 %v2498, 0.0
    %v2627 = vmax.f32 %v2499, 0.0
    %v2628 = vmax.f32 %v2500, 0.0
    %v2629 = vmax.f32 %v2501, 0.0
    %v2630 = vmax.f32 %v2502, 0.0
    %v2631 = vmax.f32 %v2503, 0.0
    %v2632 = vmax.f32 %v2504, 0.0
    %v2633 = vmax.f32 %v2505, 0.0
    %v2634 = vmax.f32 %v2506, 0.0
    %v2635 = vmax.f32 %v2507, 0.0
    %v2636 = vmax.f32 %v2508, 0.0
    %v2637 = vmax.f32 %v2509, 0.0
    %v2638 = vmax.f32 %v2510, 0.0
    %v2639 = vmax.f32 %v2511, 0.0
    %v2640 = vmax.f32 %v2512, 0.0
    %v2641 = vmax.f32 %v2513, 0.0
    %v2642 = vmax.f32 %v2514, 0.0
    %v2643 = vmax.f32 %v2515, 0.0
    %v2644 = vmax.f32 %v2516, 0.0
    %v2645 = vmax.f32 %v2517, 0.0
    %v2646 = vmax.f32 %v2518, 0.0
    %v2647 = vmax.f32 %v2519, 0.0
    %v2648 = vmax.f32 %v2520, 0.0
    %v2649 = vmax.f32 %v2521, 0.0
    %v2650 = vmax.f32 %v2522, 0.0
    %v2651 = vmax.f32 %v2523, 0.0
    %v2652 = vmax.f32 %v2524, 0.0
    %v2653 = vmax.f32 %v2525, 0.0
    %v2654 = vmax.f32 %v2526, 0.0
    %v2655 = vmax.f32 %v2527, 0.0
    %v2656 = vmax.f32 %v2528, 0.0
    %v2657 = vmax.f32 %v2529, 0.0
    %v2658 = vmax.f32 %v2530, 0.0
    %v2659 = vmax.f32 %v2531, 0.0
    %v2660 = vmax.f32 %v2532, 0.0
    %v2661 = vmax.f32 %v2533, 0.0
    %v2662 = vmax.f32 %v2534, 0.0
    %v2663 = vmax.f32 %v2535, 0.0
    %v2664 = vmax.f32 %v2536, 0.0
    %v2665 = vmax.f32 %v2537, 0.0
    %v2666 = vmax.f32 %v2538, 0.0
    %v2667 = vmax.f32 %v2539, 0.0
    %v2668 = vmax.f32 %v2540, 0.0
    %v2669 = vmax.f32 %v2541, 0.0
    %v2670 = vmax.f32 %v2542, 0.0
    %v2671 = vmax.f32 %v2543, 0.0
    %v2672 = vmax.f32 %v2544, 0.0
    %v2673 = vmax.f32 %v2545, 0.0
    %v2674 = vmax.f32 %v2546, 0.0
    %v2675 = vmax.f32 %v2547, 0.0
    %v2676 = vmax.f32 %v2548, 0.0
    %v2677 = vmax.f32 %v2549, 0.0
    %v2678 = vmax.f32 %v2550, 0.0
    %v2679 = vmax.f32 %v2551, 0.0
    %v2680 = vmax.f32 %v2552, 0.0
    %v2681 = vmax.f32 %v2553, 0.0
    %v2682 = vmax.f32 %v2554, 0.0
    %v2683 = vmax.f32 %v2555, 0.0
    %v2684 = vmax.f32 %v2556, 0.0
    %v2685 = vmax.f32 %v2557, 0.0
    %v2686 = vmax.f32 %v2558, 0.0
    %v2687 = vmax.f32 %v2559, 0.0
    %v2688 = vmax.f32 %v2560, 0.0
    %v2689 = vmax.f32 %v2561, 0.0
    %v2690 = vmax.f32 %v2562, 0.0
    %v2691 = vmax.f32 %v2563, 0.0
    %v2692 = vmax.f32 %v2564, 0.0
    %v2693 = vmax.f32 %v2565, 0.0
    %v2694 = vmax.f32 %v2566, 0.0
    %v2695 = vmax.f32 %v2567, 0.0
    %v2696 = vmax.f32 %v2568, 0.0
    %v2697 = vmax.f32 %v2569, 0.0
    %v2698 = vmax.f32 %v2570, 0.0
    %v2699 = vmax.f32 %v2571, 0.0
    %v2700 = vmax.f32 %v2572, 0.0
    %v2701 = vmax.f32 %v2573, 0.0
    %v2702 = vmax.f32 %v2574, 0.0
    %v2703 = vmax.f32 %v2575, 0.0
    %v2704 = vmax.f32 %v2576, 0.0
    %v2705 = vmax.f32 %v2577, 0.0
    %v2706 = vmax.f32 %v2578, 0.0
    %v2707 = vmax.f32 %v2579, 0.0
    %v2708 = vmax.f32 %v2580, 0.0
    %v2709 = vmax.f32 %v2581, 0.0
    %v2710 = vmax.f32 %v2582, 0.0
    %v2711 = vmax.f32 %v2583, 0.0
    %v2712 = vmax.f32 %v2584, 0.0
    %v2713 = vmax.f32 %v2585, 0.0
    %v2714 = vmax.f32 %v2586, 0.0
    %v2715 = vmax.f32 %v2587, 0.0
    %v2716 = vmax.f32 %v2588, 0.0
    %v2717 = vmax.f32 %v2589, 0.0
    %v2718 = vmax.f32 %v2590, 0.0
    %v2719 = vmax.f32 %v2591, 0.0
    %v2720 = vmax.f32 %v2592, 0.0
    %v2721 = vmax.f32 %v2593, 0.0
    %v2722 = vmax.f32 %v2594, 0.0
    %v2723 = vmax.f32 %v2595, 0.0
    %v2724 = vmax.f32 %v2596, 0.0
    %v2725 = vmax.f32 %v2597, 0.0
    %v2726 = vmax.f32 %v2598, 0.0
    %v2727 = vmax.f32 %v2599, 0.0
    %v2728 = vmax.f32 %v2600, 0.0
    %v2729 = vmax.f32 %v2601, 0.0
    %v2730 = vmax.f32 %v2602, 0.0
    %v2731 = vmax.f32 %v2603, 0.0
    %v2732 = vmax.f32 %v2604, 0.0
    %v2733 = vmax.f32 %v2605, 0.0
    %v2734 = vmax.f32 %v2606, 0.0
    %v2735 = vmax.f32 %v2607, 0.0
    %v2736 = vmax.f32 %v2608, 0.0
    %v2737 = vmax.f32 %v2609, 0.0
    %v2738 = vmax.f32 %v2610, 0.0
    %v2739 = vmax.f32 %v2611, 0.0
    %v2740 = vmax.f32 %v2612, 0.0
    %v2741 = vmax.f32 %v2613, 0.0
    %v2742 = vmax.f32 %v2614, 0.0
    %v2743 = vpack.c.bf16 %v2619, %v2615
    %v2744 = vpack.c.bf16 %v2620, %v2616
    %v2745 = vpack.c.bf16 %v2621, %v2617
    %v2746 = vpack.c.bf16 %v2622, %v2618
    %v2747 = vpack.c.bf16 %v2627, %v2623
    %v2748 = vpack.c.bf16 %v2628, %v2624
    %v2749 = vpack.c.bf16 %v2629, %v2625
    %v2750 = vpack.c.bf16 %v2630, %v2626
    %v2751 = vpack.c.bf16 %v2635, %v2631
    %v2752 = vpack.c.bf16 %v2636, %v2632
    %v2753 = vpack.c.bf16 %v2637, %v2633
    %v2754 = vpack.c.bf16 %v2638, %v2634
    %v2755 = vpack.c.bf16 %v2643, %v2639
    %v2756 = vpack.c.bf16 %v2644, %v2640
    %v2757 = vpack.c.bf16 %v2645, %v2641
    %v2758 = vpack.c.bf16 %v2646, %v2642
    %v2759 = vpack.c.bf16 %v2651, %v2647
    %v2760 = vpack.c.bf16 %v2652, %v2648
    %v2761 = vpack.c.bf16 %v2653, %v2649
    %v2762 = vpack.c.bf16 %v2654, %v2650
    %v2763 = vpack.c.bf16 %v2659, %v2655
    %v2764 = vpack.c.bf16 %v2660, %v2656
    %v2765 = vpack.c.bf16 %v2661, %v2657
    %v2766 = vpack.c.bf16 %v2662, %v2658
    %v2767 = vpack.c.bf16 %v2667, %v2663
    %v2768 = vpack.c.bf16 %v2668, %v2664
    %v2769 = vpack.c.bf16 %v2669, %v2665
    %v2770 = vpack.c.bf16 %v2670, %v2666
    %v2771 = vpack.c.bf16 %v2675, %v2671
    %v2772 = vpack.c.bf16 %v2676, %v2672
    %v2773 = vpack.c.bf16 %v2677, %v2673
    %v2774 = vpack.c.bf16 %v2678, %v2674
    %v2775 = vpack.c.bf16 %v2683, %v2679
    %v2776 = vpack.c.bf16 %v2684, %v2680
    %v2777 = vpack.c.bf16 %v2685, %v2681
    %v2778 = vpack.c.bf16 %v2686, %v2682
    %v2779 = vpack.c.bf16 %v2691, %v2687
    %v2780 = vpack.c.bf16 %v2692, %v2688
    %v2781 = vpack.c.bf16 %v2693, %v2689
    %v2782 = vpack.c.bf16 %v2694, %v2690
    %v2783 = vpack.c.bf16 %v2699, %v2695
    %v2784 = vpack.c.bf16 %v2700, %v2696
    %v2785 = vpack.c.bf16 %v2701, %v2697
    %v2786 = vpack.c.bf16 %v2702, %v2698
    %v2787 = vpack.c.bf16 %v2707, %v2703
    %v2788 = vpack.c.bf16 %v2708, %v2704
    %v2789 = vpack.c.bf16 %v2709, %v2705
    %v2790 = vpack.c.bf16 %v2710, %v2706
    %v2791 = vpack.c.bf16 %v2715, %v2711
    %v2792 = vpack.c.bf16 %v2716, %v2712
    %v2793 = vpack.c.bf16 %v2717, %v2713
    %v2794 = vpack.c.bf16 %v2718, %v2714
    %v2795 = vpack.c.bf16 %v2723, %v2719
    %v2796 = vpack.c.bf16 %v2724, %v2720
    %v2797 = vpack.c.bf16 %v2725, %v2721
    %v2798 = vpack.c.bf16 %v2726, %v2722
    %v2799 = vpack.c.bf16 %v2731, %v2727
    %v2800 = vpack.c.bf16 %v2732, %v2728
    %v2801 = vpack.c.bf16 %v2733, %v2729
    %v2802 = vpack.c.bf16 %v2734, %v2730
    %v2803 = vpack.c.bf16 %v2739, %v2735
    %v2804 = vpack.c.bf16 %v2740, %v2736
    %v2805 = vpack.c.bf16 %v2741, %v2737
    %v2806 = vpack.c.bf16 %v2742, %v2738
    %v2807 = vld [vmem:[#allocation7] sm:$0xff]
    %v2808 = vld [vmem:[#allocation7 + $0x8] sm:$0xff]
    %v2809 = vld [vmem:[#allocation7 + $0x10] sm:$0xff]
    %v2810 = vld [vmem:[#allocation7 + $0x18] sm:$0xff]
    %v2811 = vld [vmem:[#allocation7 + $0x20] sm:$0xff]
    %v2812 = vld [vmem:[#allocation7 + $0x28] sm:$0xff]
    %v2813 = vld [vmem:[#allocation7 + $0x30] sm:$0xff]
    %v2814 = vld [vmem:[#allocation7 + $0x38] sm:$0xff]
    %v2815 = vld [vmem:[#allocation7 + $0x40] sm:$0xff]
    %v2816 = vld [vmem:[#allocation7 + $0x48] sm:$0xff]
    %v2817 = vld [vmem:[#allocation7 + $0x50] sm:$0xff]
    %v2818 = vld [vmem:[#allocation7 + $0x58] sm:$0xff]
    %v2819 = vld [vmem:[#allocation7 + $0x60] sm:$0xff]
    %v2820 = vld [vmem:[#allocation7 + $0x68] sm:$0xff]
    %v2821 = vld [vmem:[#allocation7 + $0x70] sm:$0xff]
    %v2822 = vld [vmem:[#allocation7 + $0x78] sm:$0xff]
    %v2823 = vld [vmem:[#allocation7 + $0x80] sm:$0xff]
    %v2824 = vld [vmem:[#allocation7 + $0x88] sm:$0xff]
    %v2825 = vld [vmem:[#allocation7 + $0x90] sm:$0xff]
    %v2826 = vld [vmem:[#allocation7 + $0x98] sm:$0xff]
    %v2827 = vld [vmem:[#allocation7 + $0xa0] sm:$0xff]
    %v2828 = vld [vmem:[#allocation7 + $0xa8] sm:$0xff]
    %v2829 = vld [vmem:[#allocation7 + $0xb0] sm:$0xff]
    %v2830 = vld [vmem:[#allocation7 + $0xb8] sm:$0xff]
    %v2831 = vld [vmem:[#allocation7 + $0xc0] sm:$0xff]
    %v2832 = vld [vmem:[#allocation7 + $0xc8] sm:$0xff]
    %v2833 = vld [vmem:[#allocation7 + $0xd0] sm:$0xff]
    %v2834 = vld [vmem:[#allocation7 + $0xd8] sm:$0xff]
    %v2835 = vld [vmem:[#allocation7 + $0xe0] sm:$0xff]
    %v2836 = vld [vmem:[#allocation7 + $0xe8] sm:$0xff]
    %v2837 = vld [vmem:[#allocation7 + $0xf0] sm:$0xff]
    %v2838 = vld [vmem:[#allocation7 + $0xf8] sm:$0xff]
    %v2839 = vld [vmem:[#allocation7 + $0x100] sm:$0xff]
    %v2840 = vld [vmem:[#allocation7 + $0x108] sm:$0xff]
    %v2841 = vld [vmem:[#allocation7 + $0x110] sm:$0xff]
    %v2842 = vld [vmem:[#allocation7 + $0x118] sm:$0xff]
    %v2843 = vld [vmem:[#allocation7 + $0x120] sm:$0xff]
    %v2844 = vld [vmem:[#allocation7 + $0x128] sm:$0xff]
    %v2845 = vld [vmem:[#allocation7 + $0x130] sm:$0xff]
    %v2846 = vld [vmem:[#allocation7 + $0x138] sm:$0xff]
    %v2847 = vld [vmem:[#allocation7 + $0x140] sm:$0xff]
    %v2848 = vld [vmem:[#allocation7 + $0x148] sm:$0xff]
    %v2849 = vld [vmem:[#allocation7 + $0x150] sm:$0xff]
    %v2850 = vld [vmem:[#allocation7 + $0x158] sm:$0xff]
    %v2851 = vld [vmem:[#allocation7 + $0x160] sm:$0xff]
    %v2852 = vld [vmem:[#allocation7 + $0x168] sm:$0xff]
    %v2853 = vld [vmem:[#allocation7 + $0x170] sm:$0xff]
    %v2854 = vld [vmem:[#allocation7 + $0x178] sm:$0xff]
    %v2855 = vld [vmem:[#allocation7 + $0x180] sm:$0xff]
    %v2856 = vld [vmem:[#allocation7 + $0x188] sm:$0xff]
    %v2857 = vld [vmem:[#allocation7 + $0x190] sm:$0xff]
    %v2858 = vld [vmem:[#allocation7 + $0x198] sm:$0xff]
    %v2859 = vld [vmem:[#allocation7 + $0x1a0] sm:$0xff]
    %v2860 = vld [vmem:[#allocation7 + $0x1a8] sm:$0xff]
    %v2861 = vld [vmem:[#allocation7 + $0x1b0] sm:$0xff]
    %v2862 = vld [vmem:[#allocation7 + $0x1b8] sm:$0xff]
    %v2863 = vld [vmem:[#allocation7 + $0x1c0] sm:$0xff]
    %v2864 = vld [vmem:[#allocation7 + $0x1c8] sm:$0xff]
    %v2865 = vld [vmem:[#allocation7 + $0x1d0] sm:$0xff]
    %v2866 = vld [vmem:[#allocation7 + $0x1d8] sm:$0xff]
    %v2867 = vld [vmem:[#allocation7 + $0x1e0] sm:$0xff]
    %v2868 = vld [vmem:[#allocation7 + $0x1e8] sm:$0xff]
    %v2869 = vld [vmem:[#allocation7 + $0x1f0] sm:$0xff]
    %v2870 = vld [vmem:[#allocation7 + $0x1f8] sm:$0xff]
    %v2871 = vld [vmem:[#allocation7 + $0x200] sm:$0xff]
    %v2872 = vld [vmem:[#allocation7 + $0x208] sm:$0xff]
    %v2873 = vld [vmem:[#allocation7 + $0x210] sm:$0xff]
    %v2874 = vld [vmem:[#allocation7 + $0x218] sm:$0xff]
    %v2875 = vld [vmem:[#allocation7 + $0x220] sm:$0xff]
    %v2876 = vld [vmem:[#allocation7 + $0x228] sm:$0xff]
    %v2877 = vld [vmem:[#allocation7 + $0x230] sm:$0xff]
    %v2878 = vld [vmem:[#allocation7 + $0x238] sm:$0xff]
    %v2879 = vld [vmem:[#allocation7 + $0x240] sm:$0xff]
    %v2880 = vld [vmem:[#allocation7 + $0x248] sm:$0xff]
    %v2881 = vld [vmem:[#allocation7 + $0x250] sm:$0xff]
    %v2882 = vld [vmem:[#allocation7 + $0x258] sm:$0xff]
    %v2883 = vld [vmem:[#allocation7 + $0x260] sm:$0xff]
    %v2884 = vld [vmem:[#allocation7 + $0x268] sm:$0xff]
    %v2885 = vld [vmem:[#allocation7 + $0x270] sm:$0xff]
    %v2886 = vld [vmem:[#allocation7 + $0x278] sm:$0xff]
    %v2887 = vld [vmem:[#allocation7 + $0x280] sm:$0xff]
    %v2888 = vld [vmem:[#allocation7 + $0x288] sm:$0xff]
    %v2889 = vld [vmem:[#allocation7 + $0x290] sm:$0xff]
    %v2890 = vld [vmem:[#allocation7 + $0x298] sm:$0xff]
    %v2891 = vld [vmem:[#allocation7 + $0x2a0] sm:$0xff]
    %v2892 = vld [vmem:[#allocation7 + $0x2a8] sm:$0xff]
    %v2893 = vld [vmem:[#allocation7 + $0x2b0] sm:$0xff]
    %v2894 = vld [vmem:[#allocation7 + $0x2b8] sm:$0xff]
    %v2895 = vld [vmem:[#allocation7 + $0x2c0] sm:$0xff]
    %v2896 = vld [vmem:[#allocation7 + $0x2c8] sm:$0xff]
    %v2897 = vld [vmem:[#allocation7 + $0x2d0] sm:$0xff]
    %v2898 = vld [vmem:[#allocation7 + $0x2d8] sm:$0xff]
    %v2899 = vld [vmem:[#allocation7 + $0x2e0] sm:$0xff]
    %v2900 = vld [vmem:[#allocation7 + $0x2e8] sm:$0xff]
    %v2901 = vld [vmem:[#allocation7 + $0x2f0] sm:$0xff]
    %v2902 = vld [vmem:[#allocation7 + $0x2f8] sm:$0xff]
    %v2903 = vld [vmem:[#allocation7 + $0x300] sm:$0xff]
    %v2904 = vld [vmem:[#allocation7 + $0x308] sm:$0xff]
    %v2905 = vld [vmem:[#allocation7 + $0x310] sm:$0xff]
    %v2906 = vld [vmem:[#allocation7 + $0x318] sm:$0xff]
    %v2907 = vld [vmem:[#allocation7 + $0x320] sm:$0xff]
    %v2908 = vld [vmem:[#allocation7 + $0x328] sm:$0xff]
    %v2909 = vld [vmem:[#allocation7 + $0x330] sm:$0xff]
    %v2910 = vld [vmem:[#allocation7 + $0x338] sm:$0xff]
    %v2911 = vld [vmem:[#allocation7 + $0x340] sm:$0xff]
    %v2912 = vld [vmem:[#allocation7 + $0x348] sm:$0xff]
    %v2913 = vld [vmem:[#allocation7 + $0x350] sm:$0xff]
    %v2914 = vld [vmem:[#allocation7 + $0x358] sm:$0xff]
    %v2915 = vld [vmem:[#allocation7 + $0x360] sm:$0xff]
    %v2916 = vld [vmem:[#allocation7 + $0x368] sm:$0xff]
    %v2917 = vld [vmem:[#allocation7 + $0x370] sm:$0xff]
    %v2918 = vld [vmem:[#allocation7 + $0x378] sm:$0xff]
    %v2919 = vld [vmem:[#allocation7 + $0x380] sm:$0xff]
    %v2920 = vld [vmem:[#allocation7 + $0x388] sm:$0xff]
    %v2921 = vld [vmem:[#allocation7 + $0x390] sm:$0xff]
    %v2922 = vld [vmem:[#allocation7 + $0x398] sm:$0xff]
    %v2923 = vld [vmem:[#allocation7 + $0x3a0] sm:$0xff]
    %v2924 = vld [vmem:[#allocation7 + $0x3a8] sm:$0xff]
    %v2925 = vld [vmem:[#allocation7 + $0x3b0] sm:$0xff]
    %v2926 = vld [vmem:[#allocation7 + $0x3b8] sm:$0xff]
    %v2927 = vld [vmem:[#allocation7 + $0x3c0] sm:$0xff]
    %v2928 = vld [vmem:[#allocation7 + $0x3c8] sm:$0xff]
    %v2929 = vld [vmem:[#allocation7 + $0x3d0] sm:$0xff]
    %v2930 = vld [vmem:[#allocation7 + $0x3d8] sm:$0xff]
    %v2931 = vld [vmem:[#allocation7 + $0x3e0] sm:$0xff]
    %v2932 = vld [vmem:[#allocation7 + $0x3e8] sm:$0xff]
    %v2933 = vld [vmem:[#allocation7 + $0x3f0] sm:$0xff]
    %v2934 = vld [vmem:[#allocation7 + $0x3f8] sm:$0xff]
    %v3063 = vunpack.c.l.b16 %v2807
    %v3064 = vunpack.c.h.b16 %v2807
    %v3065 = vunpack.c.l.b16 %v2808
    %v3066 = vunpack.c.h.b16 %v2808
    %v3067 = vunpack.c.l.b16 %v2809
    %v3068 = vunpack.c.h.b16 %v2809
    %v3069 = vunpack.c.l.b16 %v2810
    %v3070 = vunpack.c.h.b16 %v2810
    %v3071 = vunpack.c.l.b16 %v2811
    %v3072 = vunpack.c.h.b16 %v2811
    %v3073 = vunpack.c.l.b16 %v2812
    %v3074 = vunpack.c.h.b16 %v2812
    %v3075 = vunpack.c.l.b16 %v2813
    %v3076 = vunpack.c.h.b16 %v2813
    %v3077 = vunpack.c.l.b16 %v2814
    %v3078 = vunpack.c.h.b16 %v2814
    %v3079 = vunpack.c.l.b16 %v2815
    %v3080 = vunpack.c.h.b16 %v2815
    %v3081 = vunpack.c.l.b16 %v2816
    %v3082 = vunpack.c.h.b16 %v2816
    %v3083 = vunpack.c.l.b16 %v2817
    %v3084 = vunpack.c.h.b16 %v2817
    %v3085 = vunpack.c.l.b16 %v2818
    %v3086 = vunpack.c.h.b16 %v2818
    %v3087 = vunpack.c.l.b16 %v2819
    %v3088 = vunpack.c.h.b16 %v2819
    %v3089 = vunpack.c.l.b16 %v2820
    %v3090 = vunpack.c.h.b16 %v2820
    %v3091 = vunpack.c.l.b16 %v2821
    %v3092 = vunpack.c.h.b16 %v2821
    %v3093 = vunpack.c.l.b16 %v2822
    %v3094 = vunpack.c.h.b16 %v2822
    %v3095 = vunpack.c.l.b16 %v2823
    %v3096 = vunpack.c.h.b16 %v2823
    %v3097 = vunpack.c.l.b16 %v2824
    %v3098 = vunpack.c.h.b16 %v2824
    %v3099 = vunpack.c.l.b16 %v2825
    %v3100 = vunpack.c.h.b16 %v2825
    %v3101 = vunpack.c.l.b16 %v2826
    %v3102 = vunpack.c.h.b16 %v2826
    %v3103 = vunpack.c.l.b16 %v2827
    %v3104 = vunpack.c.h.b16 %v2827
    %v3105 = vunpack.c.l.b16 %v2828
    %v3106 = vunpack.c.h.b16 %v2828
    %v3107 = vunpack.c.l.b16 %v2829
    %v3108 = vunpack.c.h.b16 %v2829
    %v3109 = vunpack.c.l.b16 %v2830
    %v3110 = vunpack.c.h.b16 %v2830
    %v3111 = vunpack.c.l.b16 %v2831
    %v3112 = vunpack.c.h.b16 %v2831
    %v3113 = vunpack.c.l.b16 %v2832
    %v3114 = vunpack.c.h.b16 %v2832
    %v3115 = vunpack.c.l.b16 %v2833
    %v3116 = vunpack.c.h.b16 %v2833
    %v3117 = vunpack.c.l.b16 %v2834
    %v3118 = vunpack.c.h.b16 %v2834
    %v3119 = vunpack.c.l.b16 %v2835
    %v3120 = vunpack.c.h.b16 %v2835
    %v3121 = vunpack.c.l.b16 %v2836
    %v3122 = vunpack.c.h.b16 %v2836
    %v3123 = vunpack.c.l.b16 %v2837
    %v3124 = vunpack.c.h.b16 %v2837
    %v3125 = vunpack.c.l.b16 %v2838
    %v3126 = vunpack.c.h.b16 %v2838
    %v3127 = vunpack.c.l.b16 %v2839
    %v3128 = vunpack.c.h.b16 %v2839
    %v3129 = vunpack.c.l.b16 %v2840
    %v3130 = vunpack.c.h.b16 %v2840
    %v3131 = vunpack.c.l.b16 %v2841
    %v3132 = vunpack.c.h.b16 %v2841
    %v3133 = vunpack.c.l.b16 %v2842
    %v3134 = vunpack.c.h.b16 %v2842
    %v3135 = vunpack.c.l.b16 %v2843
    %v3136 = vunpack.c.h.b16 %v2843
    %v3137 = vunpack.c.l.b16 %v2844
    %v3138 = vunpack.c.h.b16 %v2844
    %v3139 = vunpack.c.l.b16 %v2845
    %v3140 = vunpack.c.h.b16 %v2845
    %v3141 = vunpack.c.l.b16 %v2846
    %v3142 = vunpack.c.h.b16 %v2846
    %v3143 = vunpack.c.l.b16 %v2847
    %v3144 = vunpack.c.h.b16 %v2847
    %v3145 = vunpack.c.l.b16 %v2848
    %v3146 = vunpack.c.h.b16 %v2848
    %v3147 = vunpack.c.l.b16 %v2849
    %v3148 = vunpack.c.h.b16 %v2849
    %v3149 = vunpack.c.l.b16 %v2850
    %v3150 = vunpack.c.h.b16 %v2850
    %v3151 = vunpack.c.l.b16 %v2851
    %v3152 = vunpack.c.h.b16 %v2851
    %v3153 = vunpack.c.l.b16 %v2852
    %v3154 = vunpack.c.h.b16 %v2852
    %v3155 = vunpack.c.l.b16 %v2853
    %v3156 = vunpack.c.h.b16 %v2853
    %v3157 = vunpack.c.l.b16 %v2854
    %v3158 = vunpack.c.h.b16 %v2854
    %v3159 = vunpack.c.l.b16 %v2855
    %v3160 = vunpack.c.h.b16 %v2855
    %v3161 = vunpack.c.l.b16 %v2856
    %v3162 = vunpack.c.h.b16 %v2856
    %v3163 = vunpack.c.l.b16 %v2857
    %v3164 = vunpack.c.h.b16 %v2857
    %v3165 = vunpack.c.l.b16 %v2858
    %v3166 = vunpack.c.h.b16 %v2858
    %v3167 = vunpack.c.l.b16 %v2859
    %v3168 = vunpack.c.h.b16 %v2859
    %v3169 = vunpack.c.l.b16 %v2860
    %v3170 = vunpack.c.h.b16 %v2860
    %v3171 = vunpack.c.l.b16 %v2861
    %v3172 = vunpack.c.h.b16 %v2861
    %v3173 = vunpack.c.l.b16 %v2862
    %v3174 = vunpack.c.h.b16 %v2862
    %v3175 = vunpack.c.l.b16 %v2863
    %v3176 = vunpack.c.h.b16 %v2863
    %v3177 = vunpack.c.l.b16 %v2864
    %v3178 = vunpack.c.h.b16 %v2864
    %v3179 = vunpack.c.l.b16 %v2865
    %v3180 = vunpack.c.h.b16 %v2865
    %v3181 = vunpack.c.l.b16 %v2866
    %v3182 = vunpack.c.h.b16 %v2866
    %v3183 = vunpack.c.l.b16 %v2867
    %v3184 = vunpack.c.h.b16 %v2867
    %v3185 = vunpack.c.l.b16 %v2868
    %v3186 = vunpack.c.h.b16 %v2868
    %v3187 = vunpack.c.l.b16 %v2869
    %v3188 = vunpack.c.h.b16 %v2869
    %v3189 = vunpack.c.l.b16 %v2870
    %v3190 = vunpack.c.h.b16 %v2870
    %v3191 = vunpack.c.l.b16 %v2871
    %v3192 = vunpack.c.h.b16 %v2871
    %v3193 = vunpack.c.l.b16 %v2872
    %v3194 = vunpack.c.h.b16 %v2872
    %v3195 = vunpack.c.l.b16 %v2873
    %v3196 = vunpack.c.h.b16 %v2873
    %v3197 = vunpack.c.l.b16 %v2874
    %v3198 = vunpack.c.h.b16 %v2874
    %v3199 = vunpack.c.l.b16 %v2875
    %v3200 = vunpack.c.h.b16 %v2875
    %v3201 = vunpack.c.l.b16 %v2876
    %v3202 = vunpack.c.h.b16 %v2876
    %v3203 = vunpack.c.l.b16 %v2877
    %v3204 = vunpack.c.h.b16 %v2877
    %v3205 = vunpack.c.l.b16 %v2878
    %v3206 = vunpack.c.h.b16 %v2878
    %v3207 = vunpack.c.l.b16 %v2879
    %v3208 = vunpack.c.h.b16 %v2879
    %v3209 = vunpack.c.l.b16 %v2880
    %v3210 = vunpack.c.h.b16 %v2880
    %v3211 = vunpack.c.l.b16 %v2881
    %v3212 = vunpack.c.h.b16 %v2881
    %v3213 = vunpack.c.l.b16 %v2882
    %v3214 = vunpack.c.h.b16 %v2882
    %v3215 = vunpack.c.l.b16 %v2883
    %v3216 = vunpack.c.h.b16 %v2883
    %v3217 = vunpack.c.l.b16 %v2884
    %v3218 = vunpack.c.h.b16 %v2884
    %v3219 = vunpack.c.l.b16 %v2885
    %v3220 = vunpack.c.h.b16 %v2885
    %v3221 = vunpack.c.l.b16 %v2886
    %v3222 = vunpack.c.h.b16 %v2886
    %v3223 = vunpack.c.l.b16 %v2887
    %v3224 = vunpack.c.h.b16 %v2887
    %v3225 = vunpack.c.l.b16 %v2888
    %v3226 = vunpack.c.h.b16 %v2888
    %v3227 = vunpack.c.l.b16 %v2889
    %v3228 = vunpack.c.h.b16 %v2889
    %v3229 = vunpack.c.l.b16 %v2890
    %v3230 = vunpack.c.h.b16 %v2890
    %v3231 = vunpack.c.l.b16 %v2891
    %v3232 = vunpack.c.h.b16 %v2891
    %v3233 = vunpack.c.l.b16 %v2892
    %v3234 = vunpack.c.h.b16 %v2892
    %v3235 = vunpack.c.l.b16 %v2893
    %v3236 = vunpack.c.h.b16 %v2893
    %v3237 = vunpack.c.l.b16 %v2894
    %v3238 = vunpack.c.h.b16 %v2894
    %v3239 = vunpack.c.l.b16 %v2895
    %v3240 = vunpack.c.h.b16 %v2895
    %v3241 = vunpack.c.l.b16 %v2896
    %v3242 = vunpack.c.h.b16 %v2896
    %v3243 = vunpack.c.l.b16 %v2897
    %v3244 = vunpack.c.h.b16 %v2897
    %v3245 = vunpack.c.l.b16 %v2898
    %v3246 = vunpack.c.h.b16 %v2898
    %v3247 = vunpack.c.l.b16 %v2899
    %v3248 = vunpack.c.h.b16 %v2899
    %v3249 = vunpack.c.l.b16 %v2900
    %v3250 = vunpack.c.h.b16 %v2900
    %v3251 = vunpack.c.l.b16 %v2901
    %v3252 = vunpack.c.h.b16 %v2901
    %v3253 = vunpack.c.l.b16 %v2902
    %v3254 = vunpack.c.h.b16 %v2902
    %v3255 = vunpack.c.l.b16 %v2903
    %v3256 = vunpack.c.h.b16 %v2903
    %v3257 = vunpack.c.l.b16 %v2904
    %v3258 = vunpack.c.h.b16 %v2904
    %v3259 = vunpack.c.l.b16 %v2905
    %v3260 = vunpack.c.h.b16 %v2905
    %v3261 = vunpack.c.l.b16 %v2906
    %v3262 = vunpack.c.h.b16 %v2906
    %v3263 = vunpack.c.l.b16 %v2907
    %v3264 = vunpack.c.h.b16 %v2907
    %v3265 = vunpack.c.l.b16 %v2908
    %v3266 = vunpack.c.h.b16 %v2908
    %v3267 = vunpack.c.l.b16 %v2909
    %v3268 = vunpack.c.h.b16 %v2909
    %v3269 = vunpack.c.l.b16 %v2910
    %v3270 = vunpack.c.h.b16 %v2910
    %v3271 = vunpack.c.l.b16 %v2911
    %v3272 = vunpack.c.h.b16 %v2911
    %v3273 = vunpack.c.l.b16 %v2912
    %v3274 = vunpack.c.h.b16 %v2912
    %v3275 = vunpack.c.l.b16 %v2913
    %v3276 = vunpack.c.h.b16 %v2913
    %v3277 = vunpack.c.l.b16 %v2914
    %v3278 = vunpack.c.h.b16 %v2914
    %v3279 = vunpack.c.l.b16 %v2915
    %v3280 = vunpack.c.h.b16 %v2915
    %v3281 = vunpack.c.l.b16 %v2916
    %v3282 = vunpack.c.h.b16 %v2916
    %v3283 = vunpack.c.l.b16 %v2917
    %v3284 = vunpack.c.h.b16 %v2917
    %v3285 = vunpack.c.l.b16 %v2918
    %v3286 = vunpack.c.h.b16 %v2918
    %v3287 = vunpack.c.l.b16 %v2919
    %v3288 = vunpack.c.h.b16 %v2919
    %v3289 = vunpack.c.l.b16 %v2920
    %v3290 = vunpack.c.h.b16 %v2920
    %v3291 = vunpack.c.l.b16 %v2921
    %v3292 = vunpack.c.h.b16 %v2921
    %v3293 = vunpack.c.l.b16 %v2922
    %v3294 = vunpack.c.h.b16 %v2922
    %v3295 = vunpack.c.l.b16 %v2923
    %v3296 = vunpack.c.h.b16 %v2923
    %v3297 = vunpack.c.l.b16 %v2924
    %v3298 = vunpack.c.h.b16 %v2924
    %v3299 = vunpack.c.l.b16 %v2925
    %v3300 = vunpack.c.h.b16 %v2925
    %v3301 = vunpack.c.l.b16 %v2926
    %v3302 = vunpack.c.h.b16 %v2926
    %v3303 = vunpack.c.l.b16 %v2927
    %v3304 = vunpack.c.h.b16 %v2927
    %v3305 = vunpack.c.l.b16 %v2928
    %v3306 = vunpack.c.h.b16 %v2928
    %v3307 = vunpack.c.l.b16 %v2929
    %v3308 = vunpack.c.h.b16 %v2929
    %v3309 = vunpack.c.l.b16 %v2930
    %v3310 = vunpack.c.h.b16 %v2930
    %v3311 = vunpack.c.l.b16 %v2931
    %v3312 = vunpack.c.h.b16 %v2931
    %v3313 = vunpack.c.l.b16 %v2932
    %v3314 = vunpack.c.h.b16 %v2932
    %v3315 = vunpack.c.l.b16 %v2933
    %v3316 = vunpack.c.h.b16 %v2933
    %v3317 = vunpack.c.l.b16 %v2934
    %v3318 = vunpack.c.h.b16 %v2934
    %v3319 = vpack.c.b16 %v3067, %v3063
    %v3320 = vpack.c.b16 %v3068, %v3064
    %v3321 = vpack.c.b16 %v3069, %v3065
    %v3322 = vpack.c.b16 %v3070, %v3066
    %v3323 = vpack.c.b16 %v3075, %v3071
    %v3324 = vpack.c.b16 %v3076, %v3072
    %v3325 = vpack.c.b16 %v3077, %v3073
    %v3326 = vpack.c.b16 %v3078, %v3074
    %v3327 = vpack.c.b16 %v3083, %v3079
    %v3328 = vpack.c.b16 %v3084, %v3080
    %v3329 = vpack.c.b16 %v3085, %v3081
    %v3330 = vpack.c.b16 %v3086, %v3082
    %v3331 = vpack.c.b16 %v3091, %v3087
    %v3332 = vpack.c.b16 %v3092, %v3088
    %v3333 = vpack.c.b16 %v3093, %v3089
    %v3334 = vpack.c.b16 %v3094, %v3090
    %v3335 = vpack.c.b16 %v3099, %v3095
    %v3336 = vpack.c.b16 %v3100, %v3096
    %v3337 = vpack.c.b16 %v3101, %v3097
    %v3338 = vpack.c.b16 %v3102, %v3098
    %v3339 = vpack.c.b16 %v3107, %v3103
    %v3340 = vpack.c.b16 %v3108, %v3104
    %v3341 = vpack.c.b16 %v3109, %v3105
    %v3342 = vpack.c.b16 %v3110, %v3106
    %v3343 = vpack.c.b16 %v3115, %v3111
    %v3344 = vpack.c.b16 %v3116, %v3112
    %v3345 = vpack.c.b16 %v3117, %v3113
    %v3346 = vpack.c.b16 %v3118, %v3114
    %v3347 = vpack.c.b16 %v3123, %v3119
    %v3348 = vpack.c.b16 %v3124, %v3120
    %v3349 = vpack.c.b16 %v3125, %v3121
    %v3350 = vpack.c.b16 %v3126, %v3122
    %v3351 = vpack.c.b16 %v3131, %v3127
    %v3352 = vpack.c.b16 %v3132, %v3128
    %v3353 = vpack.c.b16 %v3133, %v3129
    %v3354 = vpack.c.b16 %v3134, %v3130
    %v3355 = vpack.c.b16 %v3139, %v3135
    %v3356 = vpack.c.b16 %v3140, %v3136
    %v3357 = vpack.c.b16 %v3141, %v3137
    %v3358 = vpack.c.b16 %v3142, %v3138
    %v3359 = vpack.c.b16 %v3147, %v3143
    %v3360 = vpack.c.b16 %v3148, %v3144
    %v3361 = vpack.c.b16 %v3149, %v3145
    %v3362 = vpack.c.b16 %v3150, %v3146
    %v3363 = vpack.c.b16 %v3155, %v3151
    %v3364 = vpack.c.b16 %v3156, %v3152
    %v3365 = vpack.c.b16 %v3157, %v3153
    %v3366 = vpack.c.b16 %v3158, %v3154
    %v3367 = vpack.c.b16 %v3163, %v3159
    %v3368 = vpack.c.b16 %v3164, %v3160
    %v3369 = vpack.c.b16 %v3165, %v3161
    %v3370 = vpack.c.b16 %v3166, %v3162
    %v3371 = vpack.c.b16 %v3171, %v3167
    %v3372 = vpack.c.b16 %v3172, %v3168
    %v3373 = vpack.c.b16 %v3173, %v3169
    %v3374 = vpack.c.b16 %v3174, %v3170
    %v3375 = vpack.c.b16 %v3179, %v3175
    %v3376 = vpack.c.b16 %v3180, %v3176
    %v3377 = vpack.c.b16 %v3181, %v3177
    %v3378 = vpack.c.b16 %v3182, %v3178
    %v3379 = vpack.c.b16 %v3187, %v3183
    %v3380 = vpack.c.b16 %v3188, %v3184
    %v3381 = vpack.c.b16 %v3189, %v3185
    %v3382 = vpack.c.b16 %v3190, %v3186
    %v3383 = vpack.c.b16 %v3195, %v3191
    %v3384 = vpack.c.b16 %v3196, %v3192
    %v3385 = vpack.c.b16 %v3197, %v3193
    %v3386 = vpack.c.b16 %v3198, %v3194
    %v3387 = vpack.c.b16 %v3203, %v3199
    %v3388 = vpack.c.b16 %v3204, %v3200
    %v3389 = vpack.c.b16 %v3205, %v3201
    %v3390 = vpack.c.b16 %v3206, %v3202
    %v3391 = vpack.c.b16 %v3211, %v3207
    %v3392 = vpack.c.b16 %v3212, %v3208
    %v3393 = vpack.c.b16 %v3213, %v3209
    %v3394 = vpack.c.b16 %v3214, %v3210
    %v3395 = vpack.c.b16 %v3219, %v3215
    %v3396 = vpack.c.b16 %v3220, %v3216
    %v3397 = vpack.c.b16 %v3221, %v3217
    %v3398 = vpack.c.b16 %v3222, %v3218
    %v3399 = vpack.c.b16 %v3227, %v3223
    %v3400 = vpack.c.b16 %v3228, %v3224
    %v3401 = vpack.c.b16 %v3229, %v3225
    %v3402 = vpack.c.b16 %v3230, %v3226
    %v3403 = vpack.c.b16 %v3235, %v3231
    %v3404 = vpack.c.b16 %v3236, %v3232
    %v3405 = vpack.c.b16 %v3237, %v3233
    %v3406 = vpack.c.b16 %v3238, %v3234
    %v3407 = vpack.c.b16 %v3243, %v3239
    %v3408 = vpack.c.b16 %v3244, %v3240
    %v3409 = vpack.c.b16 %v3245, %v3241
    %v3410 = vpack.c.b16 %v3246, %v3242
    %v3411 = vpack.c.b16 %v3251, %v3247
    %v3412 = vpack.c.b16 %v3252, %v3248
    %v3413 = vpack.c.b16 %v3253, %v3249
    %v3414 = vpack.c.b16 %v3254, %v3250
    %v3415 = vpack.c.b16 %v3259, %v3255
    %v3416 = vpack.c.b16 %v3260, %v3256
    %v3417 = vpack.c.b16 %v3261, %v3257
    %v3418 = vpack.c.b16 %v3262, %v3258
    %v3419 = vpack.c.b16 %v3267, %v3263
    %v3420 = vpack.c.b16 %v3268, %v3264
    %v3421 = vpack.c.b16 %v3269, %v3265
    %v3422 = vpack.c.b16 %v3270, %v3266
    %v3423 = vpack.c.b16 %v3275, %v3271
    %v3424 = vpack.c.b16 %v3276, %v3272
    %v3425 = vpack.c.b16 %v3277, %v3273
    %v3426 = vpack.c.b16 %v3278, %v3274
    %v3427 = vpack.c.b16 %v3283, %v3279
    %v3428 = vpack.c.b16 %v3284, %v3280
    %v3429 = vpack.c.b16 %v3285, %v3281
    %v3430 = vpack.c.b16 %v3286, %v3282
    %v3431 = vpack.c.b16 %v3291, %v3287
    %v3432 = vpack.c.b16 %v3292, %v3288
    %v3433 = vpack.c.b16 %v3293, %v3289
    %v3434 = vpack.c.b16 %v3294, %v3290
    %v3435 = vpack.c.b16 %v3299, %v3295
    %v3436 = vpack.c.b16 %v3300, %v3296
    %v3437 = vpack.c.b16 %v3301, %v3297
    %v3438 = vpack.c.b16 %v3302, %v3298
    %v3439 = vpack.c.b16 %v3307, %v3303
    %v3440 = vpack.c.b16 %v3308, %v3304
    %v3441 = vpack.c.b16 %v3309, %v3305
    %v3442 = vpack.c.b16 %v3310, %v3306
    %v3443 = vpack.c.b16 %v3315, %v3311
    %v3444 = vpack.c.b16 %v3316, %v3312
    %v3445 = vpack.c.b16 %v3317, %v3313
    %v3446 = vpack.c.b16 %v3318, %v3314
    %3575 = vmatprep.subr.bf16.mxu0 %v3348
    %3576 = vmatpush1.bf16.msra.mxu0 %v3347
    %3577 = vmatprep.subr.bf16.mxu0 %v3344
    %3578 = vmatpush1.bf16.msra.mxu0 %v3343
    %3579 = vmatprep.subr.bf16.mxu0 %v3340
    %3580 = vmatpush1.bf16.msra.mxu0 %v3339
    %3581 = vmatprep.subr.bf16.mxu0 %v3336
    %3582 = vmatpush1.bf16.msra.mxu0 %v3335
    %3583 = vmatprep.subr.bf16.mxu0 %v3332
    %3584 = vmatpush1.bf16.msra.mxu0 %v3331
    %3585 = vmatprep.subr.bf16.mxu0 %v3328
    %3586 = vmatpush1.bf16.msra.mxu0 %v3327
    %3587 = vmatprep.subr.bf16.mxu0 %v3324
    %3588 = vmatpush1.bf16.msra.mxu0 %v3323
    %3589 = vmatprep.subr.bf16.mxu0 %v3320
    %3590 = vmatpush1.bf16.msra.mxu0 %v3319
    %3591 = vmatprep.subr.bf16.mxu0 %v3380
    %3592 = vmatpush2.bf16.msra.mxu0 %v3379
    %3593 = vmatprep.subr.bf16.mxu0 %v3376
    %3594 = vmatpush2.bf16.msra.mxu0 %v3375
    %3595 = vmatprep.subr.bf16.mxu0 %v3372
    %3596 = vmatpush2.bf16.msra.mxu0 %v3371
    %3597 = vmatprep.subr.bf16.mxu0 %v3368
    %3598 = vmatpush2.bf16.msra.mxu0 %v3367
    %3599 = vmatprep.subr.bf16.mxu0 %v3364
    %3600 = vmatpush2.bf16.msra.mxu0 %v3363
    %3601 = vmatprep.subr.bf16.mxu0 %v3360
    %3602 = vmatpush2.bf16.msra.mxu0 %v3359
    %3603 = vmatprep.subr.bf16.mxu0 %v3356
    %3604 = vmatpush2.bf16.msra.mxu0 %v3355
    %3605 = vmatprep.subr.bf16.mxu0 %v3352
    %3606 = vmatpush2.bf16.msra.mxu0 %v3351
    %3607 = vmatprep.mubr.bf16.mxu0 %v2744
    %3608 = vmatmul.mubr.bf16.gmra.mxu0 %v2743
    %v3609 = vpop.f32.mrf.mxu0
    %v3610 = vadd.f32 0.0, %v3609
    %v3611 = vpop.f32.mrf.mxu0
    %v3612 = vadd.f32 0.0, %v3611
    %v3613 = vpop.f32.mrf.mxu0
    %v3614 = vadd.f32 0.0, %v3613
    %v3615 = vpop.f32.mrf.mxu0
    %v3616 = vadd.f32 0.0, %v3615
    %3617 = vmatprep.mubr.bf16.mxu0 %v2748
    %3618 = vmatmul.mubr.bf16.gmra.mxu0 %v2747
    %v3619 = vpop.f32.mrf.mxu0
    %v3620 = vadd.f32 0.0, %v3619
    %v3621 = vpop.f32.mrf.mxu0
    %v3622 = vadd.f32 0.0, %v3621
    %v3623 = vpop.f32.mrf.mxu0
    %v3624 = vadd.f32 0.0, %v3623
    %v3625 = vpop.f32.mrf.mxu0
    %v3626 = vadd.f32 0.0, %v3625
    %3627 = vmatprep.mubr.bf16.mxu0 %v2752
    %3628 = vmatmul.mubr.bf16.gmra.mxu0 %v2751
    %v3629 = vpop.f32.mrf.mxu0
    %v3630 = vadd.f32 0.0, %v3629
    %v3631 = vpop.f32.mrf.mxu0
    %v3632 = vadd.f32 0.0, %v3631
    %v3633 = vpop.f32.mrf.mxu0
    %v3634 = vadd.f32 0.0, %v3633
    %v3635 = vpop.f32.mrf.mxu0
    %v3636 = vadd.f32 0.0, %v3635
    %3637 = vmatprep.mubr.bf16.mxu0 %v2756
    %3638 = vmatmul.mubr.bf16.gmra.mxu0 %v2755
    %v3639 = vpop.f32.mrf.mxu0
    %v3640 = vadd.f32 0.0, %v3639
    %v3641 = vpop.f32.mrf.mxu0
    %v3642 = vadd.f32 0.0, %v3641
    %v3643 = vpop.f32.mrf.mxu0
    %v3644 = vadd.f32 0.0, %v3643
    %v3645 = vpop.f32.mrf.mxu0
    %v3646 = vadd.f32 0.0, %v3645
    %3647 = vmatprep.mubr.bf16.mxu0 %v2760
    %3648 = vmatmul.mubr.bf16.gmra.mxu0 %v2759
    %v3649 = vpop.f32.mrf.mxu0
    %v3650 = vadd.f32 0.0, %v3649
    %v3651 = vpop.f32.mrf.mxu0
    %v3652 = vadd.f32 0.0, %v3651
    %v3653 = vpop.f32.mrf.mxu0
    %v3654 = vadd.f32 0.0, %v3653
    %v3655 = vpop.f32.mrf.mxu0
    %v3656 = vadd.f32 0.0, %v3655
    %3657 = vmatprep.mubr.bf16.mxu0 %v2764
    %3658 = vmatmul.mubr.bf16.gmra.mxu0 %v2763
    %v3659 = vpop.f32.mrf.mxu0
    %v3660 = vadd.f32 0.0, %v3659
    %v3661 = vpop.f32.mrf.mxu0
    %v3662 = vadd.f32 0.0, %v3661
    %v3663 = vpop.f32.mrf.mxu0
    %v3664 = vadd.f32 0.0, %v3663
    %v3665 = vpop.f32.mrf.mxu0
    %v3666 = vadd.f32 0.0, %v3665
    %3667 = vmatprep.mubr.bf16.mxu0 %v2768
    %3668 = vmatmul.mubr.bf16.gmra.mxu0 %v2767
    %v3669 = vpop.f32.mrf.mxu0
    %v3670 = vadd.f32 0.0, %v3669
    %v3671 = vpop.f32.mrf.mxu0
    %v3672 = vadd.f32 0.0, %v3671
    %v3673 = vpop.f32.mrf.mxu0
    %v3674 = vadd.f32 0.0, %v3673
    %v3675 = vpop.f32.mrf.mxu0
    %v3676 = vadd.f32 0.0, %v3675
    %3677 = vmatprep.mubr.bf16.mxu0 %v2772
    %3678 = vmatmul.mubr.bf16.gmra.mxu0 %v2771
    %v3679 = vpop.f32.mrf.mxu0
    %v3680 = vadd.f32 0.0, %v3679
    %v3681 = vpop.f32.mrf.mxu0
    %v3682 = vadd.f32 0.0, %v3681
    %v3683 = vpop.f32.mrf.mxu0
    %v3684 = vadd.f32 0.0, %v3683
    %v3685 = vpop.f32.mrf.mxu0
    %v3686 = vadd.f32 0.0, %v3685
    %3687 = vmatprep.mubr.bf16.mxu0 %v2776
    %3688 = vmatmul.mubr.bf16.gmra.mxu0 %v2775
    %v3689 = vpop.f32.mrf.mxu0
    %v3690 = vadd.f32 0.0, %v3689
    %v3691 = vpop.f32.mrf.mxu0
    %v3692 = vadd.f32 0.0, %v3691
    %v3693 = vpop.f32.mrf.mxu0
    %v3694 = vadd.f32 0.0, %v3693
    %v3695 = vpop.f32.mrf.mxu0
    %v3696 = vadd.f32 0.0, %v3695
    %3697 = vmatprep.mubr.bf16.mxu0 %v2780
    %3698 = vmatmul.mubr.bf16.gmra.mxu0 %v2779
    %v3699 = vpop.f32.mrf.mxu0
    %v3700 = vadd.f32 0.0, %v3699
    %v3701 = vpop.f32.mrf.mxu0
    %v3702 = vadd.f32 0.0, %v3701
    %v3703 = vpop.f32.mrf.mxu0
    %v3704 = vadd.f32 0.0, %v3703
    %v3705 = vpop.f32.mrf.mxu0
    %v3706 = vadd.f32 0.0, %v3705
    %3707 = vmatprep.mubr.bf16.mxu0 %v2784
    %3708 = vmatmul.mubr.bf16.gmra.mxu0 %v2783
    %v3709 = vpop.f32.mrf.mxu0
    %v3710 = vadd.f32 0.0, %v3709
    %v3711 = vpop.f32.mrf.mxu0
    %v3712 = vadd.f32 0.0, %v3711
    %v3713 = vpop.f32.mrf.mxu0
    %v3714 = vadd.f32 0.0, %v3713
    %v3715 = vpop.f32.mrf.mxu0
    %v3716 = vadd.f32 0.0, %v3715
    %3717 = vmatprep.mubr.bf16.mxu0 %v2788
    %3718 = vmatmul.mubr.bf16.gmra.mxu0 %v2787
    %v3719 = vpop.f32.mrf.mxu0
    %v3720 = vadd.f32 0.0, %v3719
    %v3721 = vpop.f32.mrf.mxu0
    %v3722 = vadd.f32 0.0, %v3721
    %v3723 = vpop.f32.mrf.mxu0
    %v3724 = vadd.f32 0.0, %v3723
    %v3725 = vpop.f32.mrf.mxu0
    %v3726 = vadd.f32 0.0, %v3725
    %3727 = vmatprep.mubr.bf16.mxu0 %v2792
    %3728 = vmatmul.mubr.bf16.gmra.mxu0 %v2791
    %v3729 = vpop.f32.mrf.mxu0
    %v3730 = vadd.f32 0.0, %v3729
    %v3731 = vpop.f32.mrf.mxu0
    %v3732 = vadd.f32 0.0, %v3731
    %v3733 = vpop.f32.mrf.mxu0
    %v3734 = vadd.f32 0.0, %v3733
    %v3735 = vpop.f32.mrf.mxu0
    %v3736 = vadd.f32 0.0, %v3735
    %3737 = vmatprep.mubr.bf16.mxu0 %v2796
    %3738 = vmatmul.mubr.bf16.gmra.mxu0 %v2795
    %v3739 = vpop.f32.mrf.mxu0
    %v3740 = vadd.f32 0.0, %v3739
    %v3741 = vpop.f32.mrf.mxu0
    %v3742 = vadd.f32 0.0, %v3741
    %v3743 = vpop.f32.mrf.mxu0
    %v3744 = vadd.f32 0.0, %v3743
    %v3745 = vpop.f32.mrf.mxu0
    %v3746 = vadd.f32 0.0, %v3745
    %3747 = vmatprep.mubr.bf16.mxu0 %v2800
    %3748 = vmatmul.mubr.bf16.gmra.mxu0 %v2799
    %v3749 = vpop.f32.mrf.mxu0
    %v3750 = vadd.f32 0.0, %v3749
    %v3751 = vpop.f32.mrf.mxu0
    %v3752 = vadd.f32 0.0, %v3751
    %v3753 = vpop.f32.mrf.mxu0
    %v3754 = vadd.f32 0.0, %v3753
    %v3755 = vpop.f32.mrf.mxu0
    %v3756 = vadd.f32 0.0, %v3755
    %3757 = vmatprep.mubr.bf16.mxu0 %v2804
    %3758 = vmatmul.mubr.bf16.gmra.mxu0 %v2803
    %v3759 = vpop.f32.mrf.mxu0
    %v3760 = vadd.f32 0.0, %v3759
    %v3761 = vpop.f32.mrf.mxu0
    %v3762 = vadd.f32 0.0, %v3761
    %v3763 = vpop.f32.mrf.mxu0
    %v3764 = vadd.f32 0.0, %v3763
    %v3765 = vpop.f32.mrf.mxu0
    %v3766 = vadd.f32 0.0, %v3765
    %3767 = vdwg.mxu0
    %3768 = vmatprep.subr.bf16.mxu0 %v3412
    %3769 = vmatpush1.bf16.msra.mxu0 %v3411
    %3770 = vmatprep.subr.bf16.mxu0 %v3408
    %3771 = vmatpush1.bf16.msra.mxu0 %v3407
    %3772 = vmatprep.subr.bf16.mxu0 %v3404
    %3773 = vmatpush1.bf16.msra.mxu0 %v3403
    %3774 = vmatprep.subr.bf16.mxu0 %v3400
    %3775 = vmatpush1.bf16.msra.mxu0 %v3399
    %3776 = vmatprep.subr.bf16.mxu0 %v3396
    %3777 = vmatpush1.bf16.msra.mxu0 %v3395
    %3778 = vmatprep.subr.bf16.mxu0 %v3392
    %3779 = vmatpush1.bf16.msra.mxu0 %v3391
    %3780 = vmatprep.subr.bf16.mxu0 %v3388
    %3781 = vmatpush1.bf16.msra.mxu0 %v3387
    %3782 = vmatprep.subr.bf16.mxu0 %v3384
    %3783 = vmatpush1.bf16.msra.mxu0 %v3383
    %3784 = vmatprep.subr.bf16.mxu0 %v3444
    %3785 = vmatpush2.bf16.msra.mxu0 %v3443
    %3786 = vmatprep.subr.bf16.mxu0 %v3440
    %3787 = vmatpush2.bf16.msra.mxu0 %v3439
    %3788 = vmatprep.subr.bf16.mxu0 %v3436
    %3789 = vmatpush2.bf16.msra.mxu0 %v3435
    %3790 = vmatprep.subr.bf16.mxu0 %v3432
    %3791 = vmatpush2.bf16.msra.mxu0 %v3431
    %3792 = vmatprep.subr.bf16.mxu0 %v3428
    %3793 = vmatpush2.bf16.msra.mxu0 %v3427
    %3794 = vmatprep.subr.bf16.mxu0 %v3424
    %3795 = vmatpush2.bf16.msra.mxu0 %v3423
    %3796 = vmatprep.subr.bf16.mxu0 %v3420
    %3797 = vmatpush2.bf16.msra.mxu0 %v3419
    %3798 = vmatprep.subr.bf16.mxu0 %v3416
    %3799 = vmatpush2.bf16.msra.mxu0 %v3415
    %3800 = vmatprep.mubr.bf16.mxu0 %v2746
    %3801 = vmatmul.mubr.bf16.gmra.mxu0 %v2745
    %v3802 = vpop.f32.mrf.mxu0
    %v3803 = vadd.f32 %v3610, %v3802
    %v3804 = vpop.f32.mrf.mxu0
    %v3805 = vadd.f32 %v3612, %v3804
    %v3806 = vpop.f32.mrf.mxu0
    %v3807 = vadd.f32 %v3614, %v3806
    %v3808 = vpop.f32.mrf.mxu0
    %v3809 = vadd.f32 %v3616, %v3808
    %3810 = vmatprep.mubr.bf16.mxu0 %v2750
    %3811 = vmatmul.mubr.bf16.gmra.mxu0 %v2749
    %v3812 = vpop.f32.mrf.mxu0
    %v3813 = vadd.f32 %v3620, %v3812
    %v3814 = vpop.f32.mrf.mxu0
    %v3815 = vadd.f32 %v3622, %v3814
    %v3816 = vpop.f32.mrf.mxu0
    %v3817 = vadd.f32 %v3624, %v3816
    %v3818 = vpop.f32.mrf.mxu0
    %v3819 = vadd.f32 %v3626, %v3818
    %3820 = vmatprep.mubr.bf16.mxu0 %v2754
    %3821 = vmatmul.mubr.bf16.gmra.mxu0 %v2753
    %v3822 = vpop.f32.mrf.mxu0
    %v3823 = vadd.f32 %v3630, %v3822
    %v3824 = vpop.f32.mrf.mxu0
    %v3825 = vadd.f32 %v3632, %v3824
    %v3826 = vpop.f32.mrf.mxu0
    %v3827 = vadd.f32 %v3634, %v3826
    %v3828 = vpop.f32.mrf.mxu0
    %v3829 = vadd.f32 %v3636, %v3828
    %3830 = vmatprep.mubr.bf16.mxu0 %v2758
    %3831 = vmatmul.mubr.bf16.gmra.mxu0 %v2757
    %v3832 = vpop.f32.mrf.mxu0
    %v3833 = vadd.f32 %v3640, %v3832
    %v3834 = vpop.f32.mrf.mxu0
    %v3835 = vadd.f32 %v3642, %v3834
    %v3836 = vpop.f32.mrf.mxu0
    %v3837 = vadd.f32 %v3644, %v3836
    %v3838 = vpop.f32.mrf.mxu0
    %v3839 = vadd.f32 %v3646, %v3838
    %3840 = vmatprep.mubr.bf16.mxu0 %v2762
    %3841 = vmatmul.mubr.bf16.gmra.mxu0 %v2761
    %v3842 = vpop.f32.mrf.mxu0
    %v3843 = vadd.f32 %v3650, %v3842
    %v3844 = vpop.f32.mrf.mxu0
    %v3845 = vadd.f32 %v3652, %v3844
    %v3846 = vpop.f32.mrf.mxu0
    %v3847 = vadd.f32 %v3654, %v3846
    %v3848 = vpop.f32.mrf.mxu0
    %v3849 = vadd.f32 %v3656, %v3848
    %3850 = vmatprep.mubr.bf16.mxu0 %v2766
    %3851 = vmatmul.mubr.bf16.gmra.mxu0 %v2765
    %v3852 = vpop.f32.mrf.mxu0
    %v3853 = vadd.f32 %v3660, %v3852
    %v3854 = vpop.f32.mrf.mxu0
    %v3855 = vadd.f32 %v3662, %v3854
    %v3856 = vpop.f32.mrf.mxu0
    %v3857 = vadd.f32 %v3664, %v3856
    %v3858 = vpop.f32.mrf.mxu0
    %v3859 = vadd.f32 %v3666, %v3858
    %3860 = vmatprep.mubr.bf16.mxu0 %v2770
    %3861 = vmatmul.mubr.bf16.gmra.mxu0 %v2769
    %v3862 = vpop.f32.mrf.mxu0
    %v3863 = vadd.f32 %v3670, %v3862
    %v3864 = vpop.f32.mrf.mxu0
    %v3865 = vadd.f32 %v3672, %v3864
    %v3866 = vpop.f32.mrf.mxu0
    %v3867 = vadd.f32 %v3674, %v3866
    %v3868 = vpop.f32.mrf.mxu0
    %v3869 = vadd.f32 %v3676, %v3868
    %3870 = vmatprep.mubr.bf16.mxu0 %v2774
    %3871 = vmatmul.mubr.bf16.gmra.mxu0 %v2773
    %v3872 = vpop.f32.mrf.mxu0
    %v3873 = vadd.f32 %v3680, %v3872
    %v3874 = vpop.f32.mrf.mxu0
    %v3875 = vadd.f32 %v3682, %v3874
    %v3876 = vpop.f32.mrf.mxu0
    %v3877 = vadd.f32 %v3684, %v3876
    %v3878 = vpop.f32.mrf.mxu0
    %v3879 = vadd.f32 %v3686, %v3878
    %3880 = vmatprep.mubr.bf16.mxu0 %v2778
    %3881 = vmatmul.mubr.bf16.gmra.mxu0 %v2777
    %v3882 = vpop.f32.mrf.mxu0
    %v3883 = vadd.f32 %v3690, %v3882
    %v3884 = vpop.f32.mrf.mxu0
    %v3885 = vadd.f32 %v3692, %v3884
    %v3886 = vpop.f32.mrf.mxu0
    %v3887 = vadd.f32 %v3694, %v3886
    %v3888 = vpop.f32.mrf.mxu0
    %v3889 = vadd.f32 %v3696, %v3888
    %3890 = vmatprep.mubr.bf16.mxu0 %v2782
    %3891 = vmatmul.mubr.bf16.gmra.mxu0 %v2781
    %v3892 = vpop.f32.mrf.mxu0
    %v3893 = vadd.f32 %v3700, %v3892
    %v3894 = vpop.f32.mrf.mxu0
    %v3895 = vadd.f32 %v3702, %v3894
    %v3896 = vpop.f32.mrf.mxu0
    %v3897 = vadd.f32 %v3704, %v3896
    %v3898 = vpop.f32.mrf.mxu0
    %v3899 = vadd.f32 %v3706, %v3898
    %3900 = vmatprep.mubr.bf16.mxu0 %v2786
    %3901 = vmatmul.mubr.bf16.gmra.mxu0 %v2785
    %v3902 = vpop.f32.mrf.mxu0
    %v3903 = vadd.f32 %v3710, %v3902
    %v3904 = vpop.f32.mrf.mxu0
    %v3905 = vadd.f32 %v3712, %v3904
    %v3906 = vpop.f32.mrf.mxu0
    %v3907 = vadd.f32 %v3714, %v3906
    %v3908 = vpop.f32.mrf.mxu0
    %v3909 = vadd.f32 %v3716, %v3908
    %3910 = vmatprep.mubr.bf16.mxu0 %v2790
    %3911 = vmatmul.mubr.bf16.gmra.mxu0 %v2789
    %v3912 = vpop.f32.mrf.mxu0
    %v3913 = vadd.f32 %v3720, %v3912
    %v3914 = vpop.f32.mrf.mxu0
    %v3915 = vadd.f32 %v3722, %v3914
    %v3916 = vpop.f32.mrf.mxu0
    %v3917 = vadd.f32 %v3724, %v3916
    %v3918 = vpop.f32.mrf.mxu0
    %v3919 = vadd.f32 %v3726, %v3918
    %3920 = vmatprep.mubr.bf16.mxu0 %v2794
    %3921 = vmatmul.mubr.bf16.gmra.mxu0 %v2793
    %v3922 = vpop.f32.mrf.mxu0
    %v3923 = vadd.f32 %v3730, %v3922
    %v3924 = vpop.f32.mrf.mxu0
    %v3925 = vadd.f32 %v3732, %v3924
    %v3926 = vpop.f32.mrf.mxu0
    %v3927 = vadd.f32 %v3734, %v3926
    %v3928 = vpop.f32.mrf.mxu0
    %v3929 = vadd.f32 %v3736, %v3928
    %3930 = vmatprep.mubr.bf16.mxu0 %v2798
    %3931 = vmatmul.mubr.bf16.gmra.mxu0 %v2797
    %v3932 = vpop.f32.mrf.mxu0
    %v3933 = vadd.f32 %v3740, %v3932
    %v3934 = vpop.f32.mrf.mxu0
    %v3935 = vadd.f32 %v3742, %v3934
    %v3936 = vpop.f32.mrf.mxu0
    %v3937 = vadd.f32 %v3744, %v3936
    %v3938 = vpop.f32.mrf.mxu0
    %v3939 = vadd.f32 %v3746, %v3938
    %3940 = vmatprep.mubr.bf16.mxu0 %v2802
    %3941 = vmatmul.mubr.bf16.gmra.mxu0 %v2801
    %v3942 = vpop.f32.mrf.mxu0
    %v3943 = vadd.f32 %v3750, %v3942
    %v3944 = vpop.f32.mrf.mxu0
    %v3945 = vadd.f32 %v3752, %v3944
    %v3946 = vpop.f32.mrf.mxu0
    %v3947 = vadd.f32 %v3754, %v3946
    %v3948 = vpop.f32.mrf.mxu0
    %v3949 = vadd.f32 %v3756, %v3948
    %3950 = vmatprep.mubr.bf16.mxu0 %v2806
    %3951 = vmatmul.mubr.bf16.gmra.mxu0 %v2805
    %v3952 = vpop.f32.mrf.mxu0
    %v3953 = vadd.f32 %v3760, %v3952
    %v3954 = vpop.f32.mrf.mxu0
    %v3955 = vadd.f32 %v3762, %v3954
    %v3956 = vpop.f32.mrf.mxu0
    %v3957 = vadd.f32 %v3764, %v3956
    %v3958 = vpop.f32.mrf.mxu0
    %v3959 = vadd.f32 %v3766, %v3958
    %3960 = vdwg.mxu0
    %3961 = vmatprep.subr.bf16.mxu0 %v3350
    %3962 = vmatpush1.bf16.msra.mxu0 %v3349
    %3963 = vmatprep.subr.bf16.mxu0 %v3346
    %3964 = vmatpush1.bf16.msra.mxu0 %v3345
    %3965 = vmatprep.subr.bf16.mxu0 %v3342
    %3966 = vmatpush1.bf16.msra.mxu0 %v3341
    %3967 = vmatprep.subr.bf16.mxu0 %v3338
    %3968 = vmatpush1.bf16.msra.mxu0 %v3337
    %3969 = vmatprep.subr.bf16.mxu0 %v3334
    %3970 = vmatpush1.bf16.msra.mxu0 %v3333
    %3971 = vmatprep.subr.bf16.mxu0 %v3330
    %3972 = vmatpush1.bf16.msra.mxu0 %v3329
    %3973 = vmatprep.subr.bf16.mxu0 %v3326
    %3974 = vmatpush1.bf16.msra.mxu0 %v3325
    %3975 = vmatprep.subr.bf16.mxu0 %v3322
    %3976 = vmatpush1.bf16.msra.mxu0 %v3321
    %3977 = vmatprep.subr.bf16.mxu0 %v3382
    %3978 = vmatpush2.bf16.msra.mxu0 %v3381
    %3979 = vmatprep.subr.bf16.mxu0 %v3378
    %3980 = vmatpush2.bf16.msra.mxu0 %v3377
    %3981 = vmatprep.subr.bf16.mxu0 %v3374
    %3982 = vmatpush2.bf16.msra.mxu0 %v3373
    %3983 = vmatprep.subr.bf16.mxu0 %v3370
    %3984 = vmatpush2.bf16.msra.mxu0 %v3369
    %3985 = vmatprep.subr.bf16.mxu0 %v3366
    %3986 = vmatpush2.bf16.msra.mxu0 %v3365
    %3987 = vmatprep.subr.bf16.mxu0 %v3362
    %3988 = vmatpush2.bf16.msra.mxu0 %v3361
    %3989 = vmatprep.subr.bf16.mxu0 %v3358
    %3990 = vmatpush2.bf16.msra.mxu0 %v3357
    %3991 = vmatprep.subr.bf16.mxu0 %v3354
    %3992 = vmatpush2.bf16.msra.mxu0 %v3353
    %3993 = vmatprep.mubr.bf16.mxu0 %v2744
    %3994 = vmatmul.mubr.bf16.gmra.mxu0 %v2743
    %v3995 = vpop.f32.mrf.mxu0
    %v3996 = vadd.f32 0.0, %v3995
    %v3997 = vpop.f32.mrf.mxu0
    %v3998 = vadd.f32 0.0, %v3997
    %v3999 = vpop.f32.mrf.mxu0
    %v4000 = vadd.f32 0.0, %v3999
    %v4001 = vpop.f32.mrf.mxu0
    %v4002 = vadd.f32 0.0, %v4001
    %4003 = vmatprep.mubr.bf16.mxu0 %v2748
    %4004 = vmatmul.mubr.bf16.gmra.mxu0 %v2747
    %v4005 = vpop.f32.mrf.mxu0
    %v4006 = vadd.f32 0.0, %v4005
    %v4007 = vpop.f32.mrf.mxu0
    %v4008 = vadd.f32 0.0, %v4007
    %v4009 = vpop.f32.mrf.mxu0
    %v4010 = vadd.f32 0.0, %v4009
    %v4011 = vpop.f32.mrf.mxu0
    %v4012 = vadd.f32 0.0, %v4011
    %4013 = vmatprep.mubr.bf16.mxu0 %v2752
    %4014 = vmatmul.mubr.bf16.gmra.mxu0 %v2751
    %v4015 = vpop.f32.mrf.mxu0
    %v4016 = vadd.f32 0.0, %v4015
    %v4017 = vpop.f32.mrf.mxu0
    %v4018 = vadd.f32 0.0, %v4017
    %v4019 = vpop.f32.mrf.mxu0
    %v4020 = vadd.f32 0.0, %v4019
    %v4021 = vpop.f32.mrf.mxu0
    %v4022 = vadd.f32 0.0, %v4021
    %4023 = vmatprep.mubr.bf16.mxu0 %v2756
    %4024 = vmatmul.mubr.bf16.gmra.mxu0 %v2755
    %v4025 = vpop.f32.mrf.mxu0
    %v4026 = vadd.f32 0.0, %v4025
    %v4027 = vpop.f32.mrf.mxu0
    %v4028 = vadd.f32 0.0, %v4027
    %v4029 = vpop.f32.mrf.mxu0
    %v4030 = vadd.f32 0.0, %v4029
    %v4031 = vpop.f32.mrf.mxu0
    %v4032 = vadd.f32 0.0, %v4031
    %4033 = vmatprep.mubr.bf16.mxu0 %v2760
    %4034 = vmatmul.mubr.bf16.gmra.mxu0 %v2759
    %v4035 = vpop.f32.mrf.mxu0
    %v4036 = vadd.f32 0.0, %v4035
    %v4037 = vpop.f32.mrf.mxu0
    %v4038 = vadd.f32 0.0, %v4037
    %v4039 = vpop.f32.mrf.mxu0
    %v4040 = vadd.f32 0.0, %v4039
    %v4041 = vpop.f32.mrf.mxu0
    %v4042 = vadd.f32 0.0, %v4041
    %4043 = vmatprep.mubr.bf16.mxu0 %v2764
    %4044 = vmatmul.mubr.bf16.gmra.mxu0 %v2763
    %v4045 = vpop.f32.mrf.mxu0
    %v4046 = vadd.f32 0.0, %v4045
    %v4047 = vpop.f32.mrf.mxu0
    %v4048 = vadd.f32 0.0, %v4047
    %v4049 = vpop.f32.mrf.mxu0
    %v4050 = vadd.f32 0.0, %v4049
    %v4051 = vpop.f32.mrf.mxu0
    %v4052 = vadd.f32 0.0, %v4051
    %4053 = vmatprep.mubr.bf16.mxu0 %v2768
    %4054 = vmatmul.mubr.bf16.gmra.mxu0 %v2767
    %v4055 = vpop.f32.mrf.mxu0
    %v4056 = vadd.f32 0.0, %v4055
    %v4057 = vpop.f32.mrf.mxu0
    %v4058 = vadd.f32 0.0, %v4057
    %v4059 = vpop.f32.mrf.mxu0
    %v4060 = vadd.f32 0.0, %v4059
    %v4061 = vpop.f32.mrf.mxu0
    %v4062 = vadd.f32 0.0, %v4061
    %4063 = vmatprep.mubr.bf16.mxu0 %v2772
    %4064 = vmatmul.mubr.bf16.gmra.mxu0 %v2771
    %v4065 = vpop.f32.mrf.mxu0
    %v4066 = vadd.f32 0.0, %v4065
    %v4067 = vpop.f32.mrf.mxu0
    %v4068 = vadd.f32 0.0, %v4067
    %v4069 = vpop.f32.mrf.mxu0
    %v4070 = vadd.f32 0.0, %v4069
    %v4071 = vpop.f32.mrf.mxu0
    %v4072 = vadd.f32 0.0, %v4071
    %4073 = vmatprep.mubr.bf16.mxu0 %v2776
    %4074 = vmatmul.mubr.bf16.gmra.mxu0 %v2775
    %v4075 = vpop.f32.mrf.mxu0
    %v4076 = vadd.f32 0.0, %v4075
    %v4077 = vpop.f32.mrf.mxu0
    %v4078 = vadd.f32 0.0, %v4077
    %v4079 = vpop.f32.mrf.mxu0
    %v4080 = vadd.f32 0.0, %v4079
    %v4081 = vpop.f32.mrf.mxu0
    %v4082 = vadd.f32 0.0, %v4081
    %4083 = vmatprep.mubr.bf16.mxu0 %v2780
    %4084 = vmatmul.mubr.bf16.gmra.mxu0 %v2779
    %v4085 = vpop.f32.mrf.mxu0
    %v4086 = vadd.f32 0.0, %v4085
    %v4087 = vpop.f32.mrf.mxu0
    %v4088 = vadd.f32 0.0, %v4087
    %v4089 = vpop.f32.mrf.mxu0
    %v4090 = vadd.f32 0.0, %v4089
    %v4091 = vpop.f32.mrf.mxu0
    %v4092 = vadd.f32 0.0, %v4091
    %4093 = vmatprep.mubr.bf16.mxu0 %v2784
    %4094 = vmatmul.mubr.bf16.gmra.mxu0 %v2783
    %v4095 = vpop.f32.mrf.mxu0
    %v4096 = vadd.f32 0.0, %v4095
    %v4097 = vpop.f32.mrf.mxu0
    %v4098 = vadd.f32 0.0, %v4097
    %v4099 = vpop.f32.mrf.mxu0
    %v4100 = vadd.f32 0.0, %v4099
    %v4101 = vpop.f32.mrf.mxu0
    %v4102 = vadd.f32 0.0, %v4101
    %4103 = vmatprep.mubr.bf16.mxu0 %v2788
    %4104 = vmatmul.mubr.bf16.gmra.mxu0 %v2787
    %v4105 = vpop.f32.mrf.mxu0
    %v4106 = vadd.f32 0.0, %v4105
    %v4107 = vpop.f32.mrf.mxu0
    %v4108 = vadd.f32 0.0, %v4107
    %v4109 = vpop.f32.mrf.mxu0
    %v4110 = vadd.f32 0.0, %v4109
    %v4111 = vpop.f32.mrf.mxu0
    %v4112 = vadd.f32 0.0, %v4111
    %4113 = vmatprep.mubr.bf16.mxu0 %v2792
    %4114 = vmatmul.mubr.bf16.gmra.mxu0 %v2791
    %v4115 = vpop.f32.mrf.mxu0
    %v4116 = vadd.f32 0.0, %v4115
    %v4117 = vpop.f32.mrf.mxu0
    %v4118 = vadd.f32 0.0, %v4117
    %v4119 = vpop.f32.mrf.mxu0
    %v4120 = vadd.f32 0.0, %v4119
    %v4121 = vpop.f32.mrf.mxu0
    %v4122 = vadd.f32 0.0, %v4121
    %4123 = vmatprep.mubr.bf16.mxu0 %v2796
    %4124 = vmatmul.mubr.bf16.gmra.mxu0 %v2795
    %v4125 = vpop.f32.mrf.mxu0
    %v4126 = vadd.f32 0.0, %v4125
    %v4127 = vpop.f32.mrf.mxu0
    %v4128 = vadd.f32 0.0, %v4127
    %v4129 = vpop.f32.mrf.mxu0
    %v4130 = vadd.f32 0.0, %v4129
    %v4131 = vpop.f32.mrf.mxu0
    %v4132 = vadd.f32 0.0, %v4131
    %4133 = vmatprep.mubr.bf16.mxu0 %v2800
    %4134 = vmatmul.mubr.bf16.gmra.mxu0 %v2799
    %v4135 = vpop.f32.mrf.mxu0
    %v4136 = vadd.f32 0.0, %v4135
    %v4137 = vpop.f32.mrf.mxu0
    %v4138 = vadd.f32 0.0, %v4137
    %v4139 = vpop.f32.mrf.mxu0
    %v4140 = vadd.f32 0.0, %v4139
    %v4141 = vpop.f32.mrf.mxu0
    %v4142 = vadd.f32 0.0, %v4141
    %4143 = vmatprep.mubr.bf16.mxu0 %v2804
    %4144 = vmatmul.mubr.bf16.gmra.mxu0 %v2803
    %v4145 = vpop.f32.mrf.mxu0
    %v4146 = vadd.f32 0.0, %v4145
    %v4147 = vpop.f32.mrf.mxu0
    %v4148 = vadd.f32 0.0, %v4147
    %v4149 = vpop.f32.mrf.mxu0
    %v4150 = vadd.f32 0.0, %v4149
    %v4151 = vpop.f32.mrf.mxu0
    %v4152 = vadd.f32 0.0, %v4151
    %4153 = vdwg.mxu0
    %4154 = vmatprep.subr.bf16.mxu0 %v3414
    %4155 = vmatpush1.bf16.msra.mxu0 %v3413
    %4156 = vmatprep.subr.bf16.mxu0 %v3410
    %4157 = vmatpush1.bf16.msra.mxu0 %v3409
    %4158 = vmatprep.subr.bf16.mxu0 %v3406
    %4159 = vmatpush1.bf16.msra.mxu0 %v3405
    %4160 = vmatprep.subr.bf16.mxu0 %v3402
    %4161 = vmatpush1.bf16.msra.mxu0 %v3401
    %4162 = vmatprep.subr.bf16.mxu0 %v3398
    %4163 = vmatpush1.bf16.msra.mxu0 %v3397
    %4164 = vmatprep.subr.bf16.mxu0 %v3394
    %4165 = vmatpush1.bf16.msra.mxu0 %v3393
    %4166 = vmatprep.subr.bf16.mxu0 %v3390
    %4167 = vmatpush1.bf16.msra.mxu0 %v3389
    %4168 = vmatprep.subr.bf16.mxu0 %v3386
    %4169 = vmatpush1.bf16.msra.mxu0 %v3385
    %4170 = vmatprep.subr.bf16.mxu0 %v3446
    %4171 = vmatpush2.bf16.msra.mxu0 %v3445
    %4172 = vmatprep.subr.bf16.mxu0 %v3442
    %4173 = vmatpush2.bf16.msra.mxu0 %v3441
    %4174 = vmatprep.subr.bf16.mxu0 %v3438
    %4175 = vmatpush2.bf16.msra.mxu0 %v3437
    %4176 = vmatprep.subr.bf16.mxu0 %v3434
    %4177 = vmatpush2.bf16.msra.mxu0 %v3433
    %4178 = vmatprep.subr.bf16.mxu0 %v3430
    %4179 = vmatpush2.bf16.msra.mxu0 %v3429
    %4180 = vmatprep.subr.bf16.mxu0 %v3426
    %4181 = vmatpush2.bf16.msra.mxu0 %v3425
    %4182 = vmatprep.subr.bf16.mxu0 %v3422
    %4183 = vmatpush2.bf16.msra.mxu0 %v3421
    %4184 = vmatprep.subr.bf16.mxu0 %v3418
    %4185 = vmatpush2.bf16.msra.mxu0 %v3417
    %4186 = vmatprep.mubr.bf16.mxu0 %v2746
    %4187 = vmatmul.mubr.bf16.gmra.mxu0 %v2745
    %v4188 = vpop.f32.mrf.mxu0
    %v4189 = vadd.f32 %v3996, %v4188
    %v4190 = vpop.f32.mrf.mxu0
    %v4191 = vadd.f32 %v3998, %v4190
    %v4192 = vpop.f32.mrf.mxu0
    %v4193 = vadd.f32 %v4000, %v4192
    %v4194 = vpop.f32.mrf.mxu0
    %v4195 = vadd.f32 %v4002, %v4194
    %4196 = vmatprep.mubr.bf16.mxu0 %v2750
    %4197 = vmatmul.mubr.bf16.gmra.mxu0 %v2749
    %v4198 = vpop.f32.mrf.mxu0
    %v4199 = vadd.f32 %v4006, %v4198
    %v4200 = vpop.f32.mrf.mxu0
    %v4201 = vadd.f32 %v4008, %v4200
    %v4202 = vpop.f32.mrf.mxu0
    %v4203 = vadd.f32 %v4010, %v4202
    %v4204 = vpop.f32.mrf.mxu0
    %v4205 = vadd.f32 %v4012, %v4204
    %4206 = vmatprep.mubr.bf16.mxu0 %v2754
    %4207 = vmatmul.mubr.bf16.gmra.mxu0 %v2753
    %v4208 = vpop.f32.mrf.mxu0
    %v4209 = vadd.f32 %v4016, %v4208
    %v4210 = vpop.f32.mrf.mxu0
    %v4211 = vadd.f32 %v4018, %v4210
    %v4212 = vpop.f32.mrf.mxu0
    %v4213 = vadd.f32 %v4020, %v4212
    %v4214 = vpop.f32.mrf.mxu0
    %v4215 = vadd.f32 %v4022, %v4214
    %4216 = vmatprep.mubr.bf16.mxu0 %v2758
    %4217 = vmatmul.mubr.bf16.gmra.mxu0 %v2757
    %v4218 = vpop.f32.mrf.mxu0
    %v4219 = vadd.f32 %v4026, %v4218
    %v4220 = vpop.f32.mrf.mxu0
    %v4221 = vadd.f32 %v4028, %v4220
    %v4222 = vpop.f32.mrf.mxu0
    %v4223 = vadd.f32 %v4030, %v4222
    %v4224 = vpop.f32.mrf.mxu0
    %v4225 = vadd.f32 %v4032, %v4224
    %4226 = vmatprep.mubr.bf16.mxu0 %v2762
    %4227 = vmatmul.mubr.bf16.gmra.mxu0 %v2761
    %v4228 = vpop.f32.mrf.mxu0
    %v4229 = vadd.f32 %v4036, %v4228
    %v4230 = vpop.f32.mrf.mxu0
    %v4231 = vadd.f32 %v4038, %v4230
    %v4232 = vpop.f32.mrf.mxu0
    %v4233 = vadd.f32 %v4040, %v4232
    %v4234 = vpop.f32.mrf.mxu0
    %v4235 = vadd.f32 %v4042, %v4234
    %4236 = vmatprep.mubr.bf16.mxu0 %v2766
    %4237 = vmatmul.mubr.bf16.gmra.mxu0 %v2765
    %v4238 = vpop.f32.mrf.mxu0
    %v4239 = vadd.f32 %v4046, %v4238
    %v4240 = vpop.f32.mrf.mxu0
    %v4241 = vadd.f32 %v4048, %v4240
    %v4242 = vpop.f32.mrf.mxu0
    %v4243 = vadd.f32 %v4050, %v4242
    %v4244 = vpop.f32.mrf.mxu0
    %v4245 = vadd.f32 %v4052, %v4244
    %4246 = vmatprep.mubr.bf16.mxu0 %v2770
    %4247 = vmatmul.mubr.bf16.gmra.mxu0 %v2769
    %v4248 = vpop.f32.mrf.mxu0
    %v4249 = vadd.f32 %v4056, %v4248
    %v4250 = vpop.f32.mrf.mxu0
    %v4251 = vadd.f32 %v4058, %v4250
    %v4252 = vpop.f32.mrf.mxu0
    %v4253 = vadd.f32 %v4060, %v4252
    %v4254 = vpop.f32.mrf.mxu0
    %v4255 = vadd.f32 %v4062, %v4254
    %4256 = vmatprep.mubr.bf16.mxu0 %v2774
    %4257 = vmatmul.mubr.bf16.gmra.mxu0 %v2773
    %v4258 = vpop.f32.mrf.mxu0
    %v4259 = vadd.f32 %v4066, %v4258
    %v4260 = vpop.f32.mrf.mxu0
    %v4261 = vadd.f32 %v4068, %v4260
    %v4262 = vpop.f32.mrf.mxu0
    %v4263 = vadd.f32 %v4070, %v4262
    %v4264 = vpop.f32.mrf.mxu0
    %v4265 = vadd.f32 %v4072, %v4264
    %4266 = vmatprep.mubr.bf16.mxu0 %v2778
    %4267 = vmatmul.mubr.bf16.gmra.mxu0 %v2777
    %v4268 = vpop.f32.mrf.mxu0
    %v4269 = vadd.f32 %v4076, %v4268
    %v4270 = vpop.f32.mrf.mxu0
    %v4271 = vadd.f32 %v4078, %v4270
    %v4272 = vpop.f32.mrf.mxu0
    %v4273 = vadd.f32 %v4080, %v4272
    %v4274 = vpop.f32.mrf.mxu0
    %v4275 = vadd.f32 %v4082, %v4274
    %4276 = vmatprep.mubr.bf16.mxu0 %v2782
    %4277 = vmatmul.mubr.bf16.gmra.mxu0 %v2781
    %v4278 = vpop.f32.mrf.mxu0
    %v4279 = vadd.f32 %v4086, %v4278
    %v4280 = vpop.f32.mrf.mxu0
    %v4281 = vadd.f32 %v4088, %v4280
    %v4282 = vpop.f32.mrf.mxu0
    %v4283 = vadd.f32 %v4090, %v4282
    %v4284 = vpop.f32.mrf.mxu0
    %v4285 = vadd.f32 %v4092, %v4284
    %4286 = vmatprep.mubr.bf16.mxu0 %v2786
    %4287 = vmatmul.mubr.bf16.gmra.mxu0 %v2785
    %v4288 = vpop.f32.mrf.mxu0
    %v4289 = vadd.f32 %v4096, %v4288
    %v4290 = vpop.f32.mrf.mxu0
    %v4291 = vadd.f32 %v4098, %v4290
    %v4292 = vpop.f32.mrf.mxu0
    %v4293 = vadd.f32 %v4100, %v4292
    %v4294 = vpop.f32.mrf.mxu0
    %v4295 = vadd.f32 %v4102, %v4294
    %4296 = vmatprep.mubr.bf16.mxu0 %v2790
    %4297 = vmatmul.mubr.bf16.gmra.mxu0 %v2789
    %v4298 = vpop.f32.mrf.mxu0
    %v4299 = vadd.f32 %v4106, %v4298
    %v4300 = vpop.f32.mrf.mxu0
    %v4301 = vadd.f32 %v4108, %v4300
    %v4302 = vpop.f32.mrf.mxu0
    %v4303 = vadd.f32 %v4110, %v4302
    %v4304 = vpop.f32.mrf.mxu0
    %v4305 = vadd.f32 %v4112, %v4304
    %4306 = vmatprep.mubr.bf16.mxu0 %v2794
    %4307 = vmatmul.mubr.bf16.gmra.mxu0 %v2793
    %v4308 = vpop.f32.mrf.mxu0
    %v4309 = vadd.f32 %v4116, %v4308
    %v4310 = vpop.f32.mrf.mxu0
    %v4311 = vadd.f32 %v4118, %v4310
    %v4312 = vpop.f32.mrf.mxu0
    %v4313 = vadd.f32 %v4120, %v4312
    %v4314 = vpop.f32.mrf.mxu0
    %v4315 = vadd.f32 %v4122, %v4314
    %4316 = vmatprep.mubr.bf16.mxu0 %v2798
    %4317 = vmatmul.mubr.bf16.gmra.mxu0 %v2797
    %v4318 = vpop.f32.mrf.mxu0
    %v4319 = vadd.f32 %v4126, %v4318
    %v4320 = vpop.f32.mrf.mxu0
    %v4321 = vadd.f32 %v4128, %v4320
    %v4322 = vpop.f32.mrf.mxu0
    %v4323 = vadd.f32 %v4130, %v4322
    %v4324 = vpop.f32.mrf.mxu0
    %v4325 = vadd.f32 %v4132, %v4324
    %4326 = vmatprep.mubr.bf16.mxu0 %v2802
    %4327 = vmatmul.mubr.bf16.gmra.mxu0 %v2801
    %v4328 = vpop.f32.mrf.mxu0
    %v4329 = vadd.f32 %v4136, %v4328
    %v4330 = vpop.f32.mrf.mxu0
    %v4331 = vadd.f32 %v4138, %v4330
    %v4332 = vpop.f32.mrf.mxu0
    %v4333 = vadd.f32 %v4140, %v4332
    %v4334 = vpop.f32.mrf.mxu0
    %v4335 = vadd.f32 %v4142, %v4334
    %4336 = vmatprep.mubr.bf16.mxu0 %v2806
    %4337 = vmatmul.mubr.bf16.gmra.mxu0 %v2805
    %v4338 = vpop.f32.mrf.mxu0
    %v4339 = vadd.f32 %v4146, %v4338
    %v4340 = vpop.f32.mrf.mxu0
    %v4341 = vadd.f32 %v4148, %v4340
    %v4342 = vpop.f32.mrf.mxu0
    %v4343 = vadd.f32 %v4150, %v4342
    %v4344 = vpop.f32.mrf.mxu0
    %v4345 = vadd.f32 %v4152, %v4344
    %4346 = vdwg.mxu0
    %v4347 = vadd.f32 %v3803, %v3807
    %v4348 = vadd.f32 %v4347, %v3813
    %v4349 = vadd.f32 %v4348, %v3817
    %v4350 = vadd.f32 %v4349, %v3823
    %v4351 = vadd.f32 %v4350, %v3827
    %v4352 = vadd.f32 %v4351, %v3833
    %v4353 = vadd.f32 %v4352, %v3837
    %v4354 = vadd.f32 %v4353, %v3843
    %v4355 = vadd.f32 %v4354, %v3847
    %v4356 = vadd.f32 %v4355, %v3853
    %v4357 = vadd.f32 %v4356, %v3857
    %v4358 = vadd.f32 %v4357, %v3863
    %v4359 = vadd.f32 %v4358, %v3867
    %v4360 = vadd.f32 %v4359, %v3873
    %v4361 = vadd.f32 %v4360, %v3877
    %v4362 = vadd.f32 %v4361, %v3883
    %v4363 = vadd.f32 %v4362, %v3887
    %v4364 = vadd.f32 %v4363, %v3893
    %v4365 = vadd.f32 %v4364, %v3897
    %v4366 = vadd.f32 %v4365, %v3903
    %v4367 = vadd.f32 %v4366, %v3907
    %v4368 = vadd.f32 %v4367, %v3913
    %v4369 = vadd.f32 %v4368, %v3917
    %v4370 = vadd.f32 %v4369, %v3923
    %v4371 = vadd.f32 %v4370, %v3927
    %v4372 = vadd.f32 %v4371, %v3933
    %v4373 = vadd.f32 %v4372, %v3937
    %v4374 = vadd.f32 %v4373, %v3943
    %v4375 = vadd.f32 %v4374, %v3947
    %v4376 = vadd.f32 %v4375, %v3953
    %v4377 = vadd.f32 %v4376, %v3957
    %v4378 = vrot.slane %v4377, 4
    %v4379 = vadd.f32 %v4377, %v4378
    %v4380 = vrot.slane %v4379, 2
    %v4381 = vadd.f32 %v4379, %v4380
    %v4382 = vrot.slane %v4381, 1
    %v4383 = vadd.f32 %v4381, %v4382
    %v4384 = vadd.f32 %v3805, %v3809
    %v4385 = vadd.f32 %v4384, %v3815
    %v4386 = vadd.f32 %v4385, %v3819
    %v4387 = vadd.f32 %v4386, %v3825
    %v4388 = vadd.f32 %v4387, %v3829
    %v4389 = vadd.f32 %v4388, %v3835
    %v4390 = vadd.f32 %v4389, %v3839
    %v4391 = vadd.f32 %v4390, %v3845
    %v4392 = vadd.f32 %v4391, %v3849
    %v4393 = vadd.f32 %v4392, %v3855
    %v4394 = vadd.f32 %v4393, %v3859
    %v4395 = vadd.f32 %v4394, %v3865
    %v4396 = vadd.f32 %v4395, %v3869
    %v4397 = vadd.f32 %v4396, %v3875
    %v4398 = vadd.f32 %v4397, %v3879
    %v4399 = vadd.f32 %v4398, %v3885
    %v4400 = vadd.f32 %v4399, %v3889
    %v4401 = vadd.f32 %v4400, %v3895
    %v4402 = vadd.f32 %v4401, %v3899
    %v4403 = vadd.f32 %v4402, %v3905
    %v4404 = vadd.f32 %v4403, %v3909
    %v4405 = vadd.f32 %v4404, %v3915
    %v4406 = vadd.f32 %v4405, %v3919
    %v4407 = vadd.f32 %v4406, %v3925
    %v4408 = vadd.f32 %v4407, %v3929
    %v4409 = vadd.f32 %v4408, %v3935
    %v4410 = vadd.f32 %v4409, %v3939
    %v4411 = vadd.f32 %v4410, %v3945
    %v4412 = vadd.f32 %v4411, %v3949
    %v4413 = vadd.f32 %v4412, %v3955
    %v4414 = vadd.f32 %v4413, %v3959
    %v4415 = vrot.slane %v4414, 4
    %v4416 = vadd.f32 %v4414, %v4415
    %v4417 = vrot.slane %v4416, 2
    %v4418 = vadd.f32 %v4416, %v4417
    %v4419 = vrot.slane %v4418, 1
    %v4420 = vadd.f32 %v4418, %v4419
    %v4421 = vadd.f32 %v4189, %v4193
    %v4422 = vadd.f32 %v4421, %v4199
    %v4423 = vadd.f32 %v4422, %v4203
    %v4424 = vadd.f32 %v4423, %v4209
    %v4425 = vadd.f32 %v4424, %v4213
    %v4426 = vadd.f32 %v4425, %v4219
    %v4427 = vadd.f32 %v4426, %v4223
    %v4428 = vadd.f32 %v4427, %v4229
    %v4429 = vadd.f32 %v4428, %v4233
    %v4430 = vadd.f32 %v4429, %v4239
    %v4431 = vadd.f32 %v4430, %v4243
    %v4432 = vadd.f32 %v4431, %v4249
    %v4433 = vadd.f32 %v4432, %v4253
    %v4434 = vadd.f32 %v4433, %v4259
    %v4435 = vadd.f32 %v4434, %v4263
    %v4436 = vadd.f32 %v4435, %v4269
    %v4437 = vadd.f32 %v4436, %v4273
    %v4438 = vadd.f32 %v4437, %v4279
    %v4439 = vadd.f32 %v4438, %v4283
    %v4440 = vadd.f32 %v4439, %v4289
    %v4441 = vadd.f32 %v4440, %v4293
    %v4442 = vadd.f32 %v4441, %v4299
    %v4443 = vadd.f32 %v4442, %v4303
    %v4444 = vadd.f32 %v4443, %v4309
    %v4445 = vadd.f32 %v4444, %v4313
    %v4446 = vadd.f32 %v4445, %v4319
    %v4447 = vadd.f32 %v4446, %v4323
    %v4448 = vadd.f32 %v4447, %v4329
    %v4449 = vadd.f32 %v4448, %v4333
    %v4450 = vadd.f32 %v4449, %v4339
    %v4451 = vadd.f32 %v4450, %v4343
    %v4452 = vrot.slane %v4451, 4
    %v4453 = vadd.f32 %v4451, %v4452
    %v4454 = vrot.slane %v4453, 2
    %v4455 = vadd.f32 %v4453, %v4454
    %v4456 = vrot.slane %v4455, 1
    %v4457 = vadd.f32 %v4455, %v4456
    %v4458 = vadd.f32 %v4191, %v4195
    %v4459 = vadd.f32 %v4458, %v4201
    %v4460 = vadd.f32 %v4459, %v4205
    %v4461 = vadd.f32 %v4460, %v4211
    %v4462 = vadd.f32 %v4461, %v4215
    %v4463 = vadd.f32 %v4462, %v4221
    %v4464 = vadd.f32 %v4463, %v4225
    %v4465 = vadd.f32 %v4464, %v4231
    %v4466 = vadd.f32 %v4465, %v4235
    %v4467 = vadd.f32 %v4466, %v4241
    %v4468 = vadd.f32 %v4467, %v4245
    %v4469 = vadd.f32 %v4468, %v4251
    %v4470 = vadd.f32 %v4469, %v4255
    %v4471 = vadd.f32 %v4470, %v4261
    %v4472 = vadd.f32 %v4471, %v4265
    %v4473 = vadd.f32 %v4472, %v4271
    %v4474 = vadd.f32 %v4473, %v4275
    %v4475 = vadd.f32 %v4474, %v4281
    %v4476 = vadd.f32 %v4475, %v4285
    %v4477 = vadd.f32 %v4476, %v4291
    %v4478 = vadd.f32 %v4477, %v4295
    %v4479 = vadd.f32 %v4478, %v4301
    %v4480 = vadd.f32 %v4479, %v4305
    %v4481 = vadd.f32 %v4480, %v4311
    %v4482 = vadd.f32 %v4481, %v4315
    %v4483 = vadd.f32 %v4482, %v4321
    %v4484 = vadd.f32 %v4483, %v4325
    %v4485 = vadd.f32 %v4484, %v4331
    %v4486 = vadd.f32 %v4485, %v4335
    %v4487 = vadd.f32 %v4486, %v4341
    %v4488 = vadd.f32 %v4487, %v4345
    %v4489 = vrot.slane %v4488, 4
    %v4490 = vadd.f32 %v4488, %v4489
    %v4491 = vrot.slane %v4490, 2
    %v4492 = vadd.f32 %v4490, %v4491
    %v4493 = vrot.slane %v4492, 1
    %v4494 = vadd.f32 %v4492, %v4493
    %v4495 = vmul.f32 %v3803, %v3803
    %v4496 = vmul.f32 %v3805, %v3805
    %v4497 = vmul.f32 %v4189, %v4189
    %v4498 = vmul.f32 %v4191, %v4191
    %v4499 = vmul.f32 %v3807, %v3807
    %v4500 = vmul.f32 %v3809, %v3809
    %v4501 = vmul.f32 %v4193, %v4193
    %v4502 = vmul.f32 %v4195, %v4195
    %v4503 = vmul.f32 %v3813, %v3813
    %v4504 = vmul.f32 %v3815, %v3815
    %v4505 = vmul.f32 %v4199, %v4199
    %v4506 = vmul.f32 %v4201, %v4201
    %v4507 = vmul.f32 %v3817, %v3817
    %v4508 = vmul.f32 %v3819, %v3819
    %v4509 = vmul.f32 %v4203, %v4203
    %v4510 = vmul.f32 %v4205, %v4205
    %v4511 = vmul.f32 %v3823, %v3823
    %v4512 = vmul.f32 %v3825, %v3825
    %v4513 = vmul.f32 %v4209, %v4209
    %v4514 = vmul.f32 %v4211, %v4211
    %v4515 = vmul.f32 %v3827, %v3827
    %v4516 = vmul.f32 %v3829, %v3829
    %v4517 = vmul.f32 %v4213, %v4213
    %v4518 = vmul.f32 %v4215, %v4215
    %v4519 = vmul.f32 %v3833, %v3833
    %v4520 = vmul.f32 %v3835, %v3835
    %v4521 = vmul.f32 %v4219, %v4219
    %v4522 = vmul.f32 %v4221, %v4221
    %v4523 = vmul.f32 %v3837, %v3837
    %v4524 = vmul.f32 %v3839, %v3839
    %v4525 = vmul.f32 %v4223, %v4223
    %v4526 = vmul.f32 %v4225, %v4225
    %v4527 = vmul.f32 %v3843, %v3843
    %v4528 = vmul.f32 %v3845, %v3845
    %v4529 = vmul.f32 %v4229, %v4229
    %v4530 = vmul.f32 %v4231, %v4231
    %v4531 = vmul.f32 %v3847, %v3847
    %v4532 = vmul.f32 %v3849, %v3849
    %v4533 = vmul.f32 %v4233, %v4233
    %v4534 = vmul.f32 %v4235, %v4235
    %v4535 = vmul.f32 %v3853, %v3853
    %v4536 = vmul.f32 %v3855, %v3855
    %v4537 = vmul.f32 %v4239, %v4239
    %v4538 = vmul.f32 %v4241, %v4241
    %v4539 = vmul.f32 %v3857, %v3857
    %v4540 = vmul.f32 %v3859, %v3859
    %v4541 = vmul.f32 %v4243, %v4243
    %v4542 = vmul.f32 %v4245, %v4245
    %v4543 = vmul.f32 %v3863, %v3863
    %v4544 = vmul.f32 %v3865, %v3865
    %v4545 = vmul.f32 %v4249, %v4249
    %v4546 = vmul.f32 %v4251, %v4251
    %v4547 = vmul.f32 %v3867, %v3867
    %v4548 = vmul.f32 %v3869, %v3869
    %v4549 = vmul.f32 %v4253, %v4253
    %v4550 = vmul.f32 %v4255, %v4255
    %v4551 = vmul.f32 %v3873, %v3873
    %v4552 = vmul.f32 %v3875, %v3875
    %v4553 = vmul.f32 %v4259, %v4259
    %v4554 = vmul.f32 %v4261, %v4261
    %v4555 = vmul.f32 %v3877, %v3877
    %v4556 = vmul.f32 %v3879, %v3879
    %v4557 = vmul.f32 %v4263, %v4263
    %v4558 = vmul.f32 %v4265, %v4265
    %v4559 = vmul.f32 %v3883, %v3883
    %v4560 = vmul.f32 %v3885, %v3885
    %v4561 = vmul.f32 %v4269, %v4269
    %v4562 = vmul.f32 %v4271, %v4271
    %v4563 = vmul.f32 %v3887, %v3887
    %v4564 = vmul.f32 %v3889, %v3889
    %v4565 = vmul.f32 %v4273, %v4273
    %v4566 = vmul.f32 %v4275, %v4275
    %v4567 = vmul.f32 %v3893, %v3893
    %v4568 = vmul.f32 %v3895, %v3895
    %v4569 = vmul.f32 %v4279, %v4279
    %v4570 = vmul.f32 %v4281, %v4281
    %v4571 = vmul.f32 %v3897, %v3897
    %v4572 = vmul.f32 %v3899, %v3899
    %v4573 = vmul.f32 %v4283, %v4283
    %v4574 = vmul.f32 %v4285, %v4285
    %v4575 = vmul.f32 %v3903, %v3903
    %v4576 = vmul.f32 %v3905, %v3905
    %v4577 = vmul.f32 %v4289, %v4289
    %v4578 = vmul.f32 %v4291, %v4291
    %v4579 = vmul.f32 %v3907, %v3907
    %v4580 = vmul.f32 %v3909, %v3909
    %v4581 = vmul.f32 %v4293, %v4293
    %v4582 = vmul.f32 %v4295, %v4295
    %v4583 = vmul.f32 %v3913, %v3913
    %v4584 = vmul.f32 %v3915, %v3915
    %v4585 = vmul.f32 %v4299, %v4299
    %v4586 = vmul.f32 %v4301, %v4301
    %v4587 = vmul.f32 %v3917, %v3917
    %v4588 = vmul.f32 %v3919, %v3919
    %v4589 = vmul.f32 %v4303, %v4303
    %v4590 = vmul.f32 %v4305, %v4305
    %v4591 = vmul.f32 %v3923, %v3923
    %v4592 = vmul.f32 %v3925, %v3925
    %v4593 = vmul.f32 %v4309, %v4309
    %v4594 = vmul.f32 %v4311, %v4311
    %v4595 = vmul.f32 %v3927, %v3927
    %v4596 = vmul.f32 %v3929, %v3929
    %v4597 = vmul.f32 %v4313, %v4313
    %v4598 = vmul.f32 %v4315, %v4315
    %v4599 = vmul.f32 %v3933, %v3933
    %v4600 = vmul.f32 %v3935, %v3935
    %v4601 = vmul.f32 %v4319, %v4319
    %v4602 = vmul.f32 %v4321, %v4321
    %v4603 = vmul.f32 %v3937, %v3937
    %v4604 = vmul.f32 %v3939, %v3939
    %v4605 = vmul.f32 %v4323, %v4323
    %v4606 = vmul.f32 %v4325, %v4325
    %v4607 = vmul.f32 %v3943, %v3943
    %v4608 = vmul.f32 %v3945, %v3945
    %v4609 = vmul.f32 %v4329, %v4329
    %v4610 = vmul.f32 %v4331, %v4331
    %v4611 = vmul.f32 %v3947, %v3947
    %v4612 = vmul.f32 %v3949, %v3949
    %v4613 = vmul.f32 %v4333, %v4333
    %v4614 = vmul.f32 %v4335, %v4335
    %v4615 = vmul.f32 %v3953, %v3953
    %v4616 = vmul.f32 %v3955, %v3955
    %v4617 = vmul.f32 %v4339, %v4339
    %v4618 = vmul.f32 %v4341, %v4341
    %v4619 = vmul.f32 %v3957, %v3957
    %v4620 = vmul.f32 %v3959, %v3959
    %v4621 = vmul.f32 %v4343, %v4343
    %v4622 = vmul.f32 %v4345, %v4345
    %v4623 = vadd.f32 %v4495, %v4499
    %v4624 = vadd.f32 %v4623, %v4503
    %v4625 = vadd.f32 %v4624, %v4507
    %v4626 = vadd.f32 %v4625, %v4511
    %v4627 = vadd.f32 %v4626, %v4515
    %v4628 = vadd.f32 %v4627, %v4519
    %v4629 = vadd.f32 %v4628, %v4523
    %v4630 = vadd.f32 %v4629, %v4527
    %v4631 = vadd.f32 %v4630, %v4531
    %v4632 = vadd.f32 %v4631, %v4535
    %v4633 = vadd.f32 %v4632, %v4539
    %v4634 = vadd.f32 %v4633, %v4543
    %v4635 = vadd.f32 %v4634, %v4547
    %v4636 = vadd.f32 %v4635, %v4551
    %v4637 = vadd.f32 %v4636, %v4555
    %v4638 = vadd.f32 %v4637, %v4559
    %v4639 = vadd.f32 %v4638, %v4563
    %v4640 = vadd.f32 %v4639, %v4567
    %v4641 = vadd.f32 %v4640, %v4571
    %v4642 = vadd.f32 %v4641, %v4575
    %v4643 = vadd.f32 %v4642, %v4579
    %v4644 = vadd.f32 %v4643, %v4583
    %v4645 = vadd.f32 %v4644, %v4587
    %v4646 = vadd.f32 %v4645, %v4591
    %v4647 = vadd.f32 %v4646, %v4595
    %v4648 = vadd.f32 %v4647, %v4599
    %v4649 = vadd.f32 %v4648, %v4603
    %v4650 = vadd.f32 %v4649, %v4607
    %v4651 = vadd.f32 %v4650, %v4611
    %v4652 = vadd.f32 %v4651, %v4615
    %v4653 = vadd.f32 %v4652, %v4619
    %v4654 = vrot.slane %v4653, 4
    %v4655 = vadd.f32 %v4653, %v4654
    %v4656 = vrot.slane %v4655, 2
    %v4657 = vadd.f32 %v4655, %v4656
    %v4658 = vrot.slane %v4657, 1
    %v4659 = vadd.f32 %v4657, %v4658
    %v4660 = vadd.f32 %v4496, %v4500
    %v4661 = vadd.f32 %v4660, %v4504
    %v4662 = vadd.f32 %v4661, %v4508
    %v4663 = vadd.f32 %v4662, %v4512
    %v4664 = vadd.f32 %v4663, %v4516
    %v4665 = vadd.f32 %v4664, %v4520
    %v4666 = vadd.f32 %v4665, %v4524
    %v4667 = vadd.f32 %v4666, %v4528
    %v4668 = vadd.f32 %v4667, %v4532
    %v4669 = vadd.f32 %v4668, %v4536
    %v4670 = vadd.f32 %v4669, %v4540
    %v4671 = vadd.f32 %v4670, %v4544
    %v4672 = vadd.f32 %v4671, %v4548
    %v4673 = vadd.f32 %v4672, %v4552
    %v4674 = vadd.f32 %v4673, %v4556
    %v4675 = vadd.f32 %v4674, %v4560
    %v4676 = vadd.f32 %v4675, %v4564
    %v4677 = vadd.f32 %v4676, %v4568
    %v4678 = vadd.f32 %v4677, %v4572
    %v4679 = vadd.f32 %v4678, %v4576
    %v4680 = vadd.f32 %v4679, %v4580
    %v4681 = vadd.f32 %v4680, %v4584
    %v4682 = vadd.f32 %v4681, %v4588
    %v4683 = vadd.f32 %v4682, %v4592
    %v4684 = vadd.f32 %v4683, %v4596
    %v4685 = vadd.f32 %v4684, %v4600
    %v4686 = vadd.f32 %v4685, %v4604
    %v4687 = vadd.f32 %v4686, %v4608
    %v4688 = vadd.f32 %v4687, %v4612
    %v4689 = vadd.f32 %v4688, %v4616
    %v4690 = vadd.f32 %v4689, %v4620
    %v4691 = vrot.slane %v4690, 4
    %v4692 = vadd.f32 %v4690, %v4691
    %v4693 = vrot.slane %v4692, 2
    %v4694 = vadd.f32 %v4692, %v4693
    %v4695 = vrot.slane %v4694, 1
    %v4696 = vadd.f32 %v4694, %v4695
    %v4697 = vadd.f32 %v4497, %v4501
    %v4698 = vadd.f32 %v4697, %v4505
    %v4699 = vadd.f32 %v4698, %v4509
    %v4700 = vadd.f32 %v4699, %v4513
    %v4701 = vadd.f32 %v4700, %v4517
    %v4702 = vadd.f32 %v4701, %v4521
    %v4703 = vadd.f32 %v4702, %v4525
    %v4704 = vadd.f32 %v4703, %v4529
    %v4705 = vadd.f32 %v4704, %v4533
    %v4706 = vadd.f32 %v4705, %v4537
    %v4707 = vadd.f32 %v4706, %v4541
    %v4708 = vadd.f32 %v4707, %v4545
    %v4709 = vadd.f32 %v4708, %v4549
    %v4710 = vadd.f32 %v4709, %v4553
    %v4711 = vadd.f32 %v4710, %v4557
    %v4712 = vadd.f32 %v4711, %v4561
    %v4713 = vadd.f32 %v4712, %v4565
    %v4714 = vadd.f32 %v4713, %v4569
    %v4715 = vadd.f32 %v4714, %v4573
    %v4716 = vadd.f32 %v4715, %v4577
    %v4717 = vadd.f32 %v4716, %v4581
    %v4718 = vadd.f32 %v4717, %v4585
    %v4719 = vadd.f32 %v4718, %v4589
    %v4720 = vadd.f32 %v4719, %v4593
    %v4721 = vadd.f32 %v4720, %v4597
    %v4722 = vadd.f32 %v4721, %v4601
    %v4723 = vadd.f32 %v4722, %v4605
    %v4724 = vadd.f32 %v4723, %v4609
    %v4725 = vadd.f32 %v4724, %v4613
    %v4726 = vadd.f32 %v4725, %v4617
    %v4727 = vadd.f32 %v4726, %v4621
    %v4728 = vrot.slane %v4727, 4
    %v4729 = vadd.f32 %v4727, %v4728
    %v4730 = vrot.slane %v4729, 2
    %v4731 = vadd.f32 %v4729, %v4730
    %v4732 = vrot.slane %v4731, 1
    %v4733 = vadd.f32 %v4731, %v4732
    %v4734 = vadd.f32 %v4498, %v4502
    %v4735 = vadd.f32 %v4734, %v4506
    %v4736 = vadd.f32 %v4735, %v4510
    %v4737 = vadd.f32 %v4736, %v4514
    %v4738 = vadd.f32 %v4737, %v4518
    %v4739 = vadd.f32 %v4738, %v4522
    %v4740 = vadd.f32 %v4739, %v4526
    %v4741 = vadd.f32 %v4740, %v4530
    %v4742 = vadd.f32 %v4741, %v4534
    %v4743 = vadd.f32 %v4742, %v4538
    %v4744 = vadd.f32 %v4743, %v4542
    %v4745 = vadd.f32 %v4744, %v4546
    %v4746 = vadd.f32 %v4745, %v4550
    %v4747 = vadd.f32 %v4746, %v4554
    %v4748 = vadd.f32 %v4747, %v4558
    %v4749 = vadd.f32 %v4748, %v4562
    %v4750 = vadd.f32 %v4749, %v4566
    %v4751 = vadd.f32 %v4750, %v4570
    %v4752 = vadd.f32 %v4751, %v4574
    %v4753 = vadd.f32 %v4752, %v4578
    %v4754 = vadd.f32 %v4753, %v4582
    %v4755 = vadd.f32 %v4754, %v4586
    %v4756 = vadd.f32 %v4755, %v4590
    %v4757 = vadd.f32 %v4756, %v4594
    %v4758 = vadd.f32 %v4757, %v4598
    %v4759 = vadd.f32 %v4758, %v4602
    %v4760 = vadd.f32 %v4759, %v4606
    %v4761 = vadd.f32 %v4760, %v4610
    %v4762 = vadd.f32 %v4761, %v4614
    %v4763 = vadd.f32 %v4762, %v4618
    %v4764 = vadd.f32 %v4763, %v4622
    %v4765 = vrot.slane %v4764, 4
    %v4766 = vadd.f32 %v4764, %v4765
    %v4767 = vrot.slane %v4766, 2
    %v4768 = vadd.f32 %v4766, %v4767
    %v4769 = vrot.slane %v4768, 1
    %v4770 = vadd.f32 %v4768, %v4769
    %v4771 = vmul.f32 %v4383, 0.00390625
    %v4772 = vmul.f32 %v4420, 0.00390625
    %v4773 = vmul.f32 %v4457, 0.00390625
    %v4774 = vmul.f32 %v4494, 0.00390625
    %v4775 = vmul.f32 %v4659, 0.00390625
    %v4776 = vmul.f32 %v4696, 0.00390625
    %v4777 = vmul.f32 %v4733, 0.00390625
    %v4778 = vmul.f32 %v4770, 0.00390625
    %v4779 = vmul.f32 %v4771, %v4771
    %v4780 = vmul.f32 %v4772, %v4772
    %v4781 = vmul.f32 %v4773, %v4773
    %v4782 = vmul.f32 %v4774, %v4774
    %v4783 = vsub.f32 %v4775, %v4779
    %v4784 = vsub.f32 %v4776, %v4780
    %v4785 = vsub.f32 %v4777, %v4781
    %v4786 = vsub.f32 %v4778, %v4782
    %v4787 = vmax.f32 %v4783, 0.0
    %v4788 = vmax.f32 %v4784, 0.0
    %v4789 = vmax.f32 %v4785, 0.0
    %v4790 = vmax.f32 %v4786, 0.0
    %v4791 = vadd.f32 %v4787, 1e-05
    %v4792 = vadd.f32 %v4788, 1e-05
    %v4793 = vadd.f32 %v4789, 1e-05
    %v4794 = vadd.f32 %v4790, 1e-05
    %v4795 = vrsqrt.pop %v4791
    %v4796 = vrsqrt.pop %v4792
    %v4797 = vrsqrt.pop %v4793
    %v4798 = vrsqrt.pop %v4794
    %v4803 = vcombine.low %v4795, %v4796
    %v4804 = vcombine.low %v4797, %v4798
    %v4805 = vrot.slane %v4803, 6
    %v4806 = vrot.slane %v4804, 6
    %v4809 = vmul.f32 %v71, %v4805
    %v4810 = vmul.f32 %v72, %v4806
    %v4813 = vlaneseq
    %v4814 = vshrl.u32 %v4813, 7
    %v4815 = vsub.s32 2, %v4814
    %v4816 = vrot.slane %v4809, %v4815
    %v4817 = vlaneseq
    %v4818 = vshrl.u32 %v4817, 7
    %v4819 = vsub.s32 6, %v4818
    %v4820 = vrot.slane %v4809, %v4819
    %v4821 = vlaneseq
    %v4822 = vshrl.u32 %v4821, 7
    %v4823 = vsub.s32 2, %v4822
    %v4824 = vrot.slane %v4810, %v4823
    %v4825 = vlaneseq
    %v4826 = vshrl.u32 %v4825, 7
    %v4827 = vsub.s32 6, %v4826
    %v4828 = vrot.slane %v4810, %v4827
    %v4833 = vmul.f32 %v4771, %v4816
    %v4834 = vmul.f32 %v4772, %v4820
    %v4835 = vmul.f32 %v4773, %v4824
    %v4836 = vmul.f32 %v4774, %v4828
    %v4841 = vcombine.low %v4833, %v4834
    %v4842 = vcombine.low %v4835, %v4836
    %v4843 = vrot.slane %v4841, 5
    %v4844 = vrot.slane %v4842, 5
    %v4847 = vsub.f32 %v71, %v4843
    %v4848 = vsub.f32 %v72, %v4844
    %v4849 = vlaneseq
    %v4850 = vshrl.u32 %v4849, 7
    %v4851 = vsub.s32 2, %v4850
    %v4852 = vrot.slane %v4816, %v4851
    %v4853 = vlaneseq
    %v4854 = vshrl.u32 %v4853, 7
    %v4855 = vsub.s32 2, %v4854
    %v4856 = vrot.slane %v4820, %v4855
    %v4857 = vlaneseq
    %v4858 = vshrl.u32 %v4857, 7
    %v4859 = vsub.s32 2, %v4858
    %v4860 = vrot.slane %v4824, %v4859
    %v4861 = vlaneseq
    %v4862 = vshrl.u32 %v4861, 7
    %v4863 = vsub.s32 2, %v4862
    %v4864 = vrot.slane %v4828, %v4863
    %v4865 = vmul.f32 %v3803, %v4852
    %v4866 = vmul.f32 %v3805, %v4856
    %v4867 = vmul.f32 %v4189, %v4860
    %v4868 = vmul.f32 %v4191, %v4864
    %v4869 = vmul.f32 %v3807, %v4852
    %v4870 = vmul.f32 %v3809, %v4856
    %v4871 = vmul.f32 %v4193, %v4860
    %v4872 = vmul.f32 %v4195, %v4864
    %v4873 = vmul.f32 %v3813, %v4852
    %v4874 = vmul.f32 %v3815, %v4856
    %v4875 = vmul.f32 %v4199, %v4860
    %v4876 = vmul.f32 %v4201, %v4864
    %v4877 = vmul.f32 %v3817, %v4852
    %v4878 = vmul.f32 %v3819, %v4856
    %v4879 = vmul.f32 %v4203, %v4860
    %v4880 = vmul.f32 %v4205, %v4864
    %v4881 = vmul.f32 %v3823, %v4852
    %v4882 = vmul.f32 %v3825, %v4856
    %v4883 = vmul.f32 %v4209, %v4860
    %v4884 = vmul.f32 %v4211, %v4864
    %v4885 = vmul.f32 %v3827, %v4852
    %v4886 = vmul.f32 %v3829, %v4856
    %v4887 = vmul.f32 %v4213, %v4860
    %v4888 = vmul.f32 %v4215, %v4864
    %v4889 = vmul.f32 %v3833, %v4852
    %v4890 = vmul.f32 %v3835, %v4856
    %v4891 = vmul.f32 %v4219, %v4860
    %v4892 = vmul.f32 %v4221, %v4864
    %v4893 = vmul.f32 %v3837, %v4852
    %v4894 = vmul.f32 %v3839, %v4856
    %v4895 = vmul.f32 %v4223, %v4860
    %v4896 = vmul.f32 %v4225, %v4864
    %v4897 = vmul.f32 %v3843, %v4852
    %v4898 = vmul.f32 %v3845, %v4856
    %v4899 = vmul.f32 %v4229, %v4860
    %v4900 = vmul.f32 %v4231, %v4864
    %v4901 = vmul.f32 %v3847, %v4852
    %v4902 = vmul.f32 %v3849, %v4856
    %v4903 = vmul.f32 %v4233, %v4860
    %v4904 = vmul.f32 %v4235, %v4864
    %v4905 = vmul.f32 %v3853, %v4852
    %v4906 = vmul.f32 %v3855, %v4856
    %v4907 = vmul.f32 %v4239, %v4860
    %v4908 = vmul.f32 %v4241, %v4864
    %v4909 = vmul.f32 %v3857, %v4852
    %v4910 = vmul.f32 %v3859, %v4856
    %v4911 = vmul.f32 %v4243, %v4860
    %v4912 = vmul.f32 %v4245, %v4864
    %v4913 = vmul.f32 %v3863, %v4852
    %v4914 = vmul.f32 %v3865, %v4856
    %v4915 = vmul.f32 %v4249, %v4860
    %v4916 = vmul.f32 %v4251, %v4864
    %v4917 = vmul.f32 %v3867, %v4852
    %v4918 = vmul.f32 %v3869, %v4856
    %v4919 = vmul.f32 %v4253, %v4860
    %v4920 = vmul.f32 %v4255, %v4864
    %v4921 = vmul.f32 %v3873, %v4852
    %v4922 = vmul.f32 %v3875, %v4856
    %v4923 = vmul.f32 %v4259, %v4860
    %v4924 = vmul.f32 %v4261, %v4864
    %v4925 = vmul.f32 %v3877, %v4852
    %v4926 = vmul.f32 %v3879, %v4856
    %v4927 = vmul.f32 %v4263, %v4860
    %v4928 = vmul.f32 %v4265, %v4864
    %v4929 = vmul.f32 %v3883, %v4852
    %v4930 = vmul.f32 %v3885, %v4856
    %v4931 = vmul.f32 %v4269, %v4860
    %v4932 = vmul.f32 %v4271, %v4864
    %v4933 = vmul.f32 %v3887, %v4852
    %v4934 = vmul.f32 %v3889, %v4856
    %v4935 = vmul.f32 %v4273, %v4860
    %v4936 = vmul.f32 %v4275, %v4864
    %v4937 = vmul.f32 %v3893, %v4852
    %v4938 = vmul.f32 %v3895, %v4856
    %v4939 = vmul.f32 %v4279, %v4860
    %v4940 = vmul.f32 %v4281, %v4864
    %v4941 = vmul.f32 %v3897, %v4852
    %v4942 = vmul.f32 %v3899, %v4856
    %v4943 = vmul.f32 %v4283, %v4860
    %v4944 = vmul.f32 %v4285, %v4864
    %v4945 = vmul.f32 %v3903, %v4852
    %v4946 = vmul.f32 %v3905, %v4856
    %v4947 = vmul.f32 %v4289, %v4860
    %v4948 = vmul.f32 %v4291, %v4864
    %v4949 = vmul.f32 %v3907, %v4852
    %v4950 = vmul.f32 %v3909, %v4856
    %v4951 = vmul.f32 %v4293, %v4860
    %v4952 = vmul.f32 %v4295, %v4864
    %v4953 = vmul.f32 %v3913, %v4852
    %v4954 = vmul.f32 %v3915, %v4856
    %v4955 = vmul.f32 %v4299, %v4860
    %v4956 = vmul.f32 %v4301, %v4864
    %v4957 = vmul.f32 %v3917, %v4852
    %v4958 = vmul.f32 %v3919, %v4856
    %v4959 = vmul.f32 %v4303, %v4860
    %v4960 = vmul.f32 %v4305, %v4864
    %v4961 = vmul.f32 %v3923, %v4852
    %v4962 = vmul.f32 %v3925, %v4856
    %v4963 = vmul.f32 %v4309, %v4860
    %v4964 = vmul.f32 %v4311, %v4864
    %v4965 = vmul.f32 %v3927, %v4852
    %v4966 = vmul.f32 %v3929, %v4856
    %v4967 = vmul.f32 %v4313, %v4860
    %v4968 = vmul.f32 %v4315, %v4864
    %v4969 = vmul.f32 %v3933, %v4852
    %v4970 = vmul.f32 %v3935, %v4856
    %v4971 = vmul.f32 %v4319, %v4860
    %v4972 = vmul.f32 %v4321, %v4864
    %v4973 = vmul.f32 %v3937, %v4852
    %v4974 = vmul.f32 %v3939, %v4856
    %v4975 = vmul.f32 %v4323, %v4860
    %v4976 = vmul.f32 %v4325, %v4864
    %v4977 = vmul.f32 %v3943, %v4852
    %v4978 = vmul.f32 %v3945, %v4856
    %v4979 = vmul.f32 %v4329, %v4860
    %v4980 = vmul.f32 %v4331, %v4864
    %v4981 = vmul.f32 %v3947, %v4852
    %v4982 = vmul.f32 %v3949, %v4856
    %v4983 = vmul.f32 %v4333, %v4860
    %v4984 = vmul.f32 %v4335, %v4864
    %v4985 = vmul.f32 %v3953, %v4852
    %v4986 = vmul.f32 %v3955, %v4856
    %v4987 = vmul.f32 %v4339, %v4860
    %v4988 = vmul.f32 %v4341, %v4864
    %v4989 = vmul.f32 %v3957, %v4852
    %v4990 = vmul.f32 %v3959, %v4856
    %v4991 = vmul.f32 %v4343, %v4860
    %v4992 = vmul.f32 %v4345, %v4864
    %v4995 = vlaneseq
    %v4996 = vshrl.u32 %v4995, 7
    %v4997 = vsub.s32 3, %v4996
    %v4998 = vrot.slane %v4847, %v4997
    %v4999 = vlaneseq
    %v5000 = vshrl.u32 %v4999, 7
    %v5001 = vsub.s32 7, %v5000
    %v5002 = vrot.slane %v4847, %v5001
    %v5003 = vlaneseq
    %v5004 = vshrl.u32 %v5003, 7
    %v5005 = vsub.s32 3, %v5004
    %v5006 = vrot.slane %v4848, %v5005
    %v5007 = vlaneseq
    %v5008 = vshrl.u32 %v5007, 7
    %v5009 = vsub.s32 7, %v5008
    %v5010 = vrot.slane %v4848, %v5009
    %v5015 = vlaneseq
    %v5016 = vshrl.u32 %v5015, 7
    %v5017 = vsub.s32 3, %v5016
    %v5018 = vrot.slane %v4998, %v5017
    %v5019 = vlaneseq
    %v5020 = vshrl.u32 %v5019, 7
    %v5021 = vsub.s32 3, %v5020
    %v5022 = vrot.slane %v5002, %v5021
    %v5023 = vlaneseq
    %v5024 = vshrl.u32 %v5023, 7
    %v5025 = vsub.s32 3, %v5024
    %v5026 = vrot.slane %v5006, %v5025
    %v5027 = vlaneseq
    %v5028 = vshrl.u32 %v5027, 7
    %v5029 = vsub.s32 3, %v5028
    %v5030 = vrot.slane %v5010, %v5029
    %v5031 = vadd.f32 %v4865, %v5018
    %v5032 = vadd.f32 %v4866, %v5022
    %v5033 = vadd.f32 %v4867, %v5026
    %v5034 = vadd.f32 %v4868, %v5030
    %v5035 = vadd.f32 %v4869, %v5018
    %v5036 = vadd.f32 %v4870, %v5022
    %v5037 = vadd.f32 %v4871, %v5026
    %v5038 = vadd.f32 %v4872, %v5030
    %v5039 = vadd.f32 %v4873, %v5018
    %v5040 = vadd.f32 %v4874, %v5022
    %v5041 = vadd.f32 %v4875, %v5026
    %v5042 = vadd.f32 %v4876, %v5030
    %v5043 = vadd.f32 %v4877, %v5018
    %v5044 = vadd.f32 %v4878, %v5022
    %v5045 = vadd.f32 %v4879, %v5026
    %v5046 = vadd.f32 %v4880, %v5030
    %v5047 = vadd.f32 %v4881, %v5018
    %v5048 = vadd.f32 %v4882, %v5022
    %v5049 = vadd.f32 %v4883, %v5026
    %v5050 = vadd.f32 %v4884, %v5030
    %v5051 = vadd.f32 %v4885, %v5018
    %v5052 = vadd.f32 %v4886, %v5022
    %v5053 = vadd.f32 %v4887, %v5026
    %v5054 = vadd.f32 %v4888, %v5030
    %v5055 = vadd.f32 %v4889, %v5018
    %v5056 = vadd.f32 %v4890, %v5022
    %v5057 = vadd.f32 %v4891, %v5026
    %v5058 = vadd.f32 %v4892, %v5030
    %v5059 = vadd.f32 %v4893, %v5018
    %v5060 = vadd.f32 %v4894, %v5022
    %v5061 = vadd.f32 %v4895, %v5026
    %v5062 = vadd.f32 %v4896, %v5030
    %v5063 = vadd.f32 %v4897, %v5018
    %v5064 = vadd.f32 %v4898, %v5022
    %v5065 = vadd.f32 %v4899, %v5026
    %v5066 = vadd.f32 %v4900, %v5030
    %v5067 = vadd.f32 %v4901, %v5018
    %v5068 = vadd.f32 %v4902, %v5022
    %v5069 = vadd.f32 %v4903, %v5026
    %v5070 = vadd.f32 %v4904, %v5030
    %v5071 = vadd.f32 %v4905, %v5018
    %v5072 = vadd.f32 %v4906, %v5022
    %v5073 = vadd.f32 %v4907, %v5026
    %v5074 = vadd.f32 %v4908, %v5030
    %v5075 = vadd.f32 %v4909, %v5018
    %v5076 = vadd.f32 %v4910, %v5022
    %v5077 = vadd.f32 %v4911, %v5026
    %v5078 = vadd.f32 %v4912, %v5030
    %v5079 = vadd.f32 %v4913, %v5018
    %v5080 = vadd.f32 %v4914, %v5022
    %v5081 = vadd.f32 %v4915, %v5026
    %v5082 = vadd.f32 %v4916, %v5030
    %v5083 = vadd.f32 %v4917, %v5018
    %v5084 = vadd.f32 %v4918, %v5022
    %v5085 = vadd.f32 %v4919, %v5026
    %v5086 = vadd.f32 %v4920, %v5030
    %v5087 = vadd.f32 %v4921, %v5018
    %v5088 = vadd.f32 %v4922, %v5022
    %v5089 = vadd.f32 %v4923, %v5026
    %v5090 = vadd.f32 %v4924, %v5030
    %v5091 = vadd.f32 %v4925, %v5018
    %v5092 = vadd.f32 %v4926, %v5022
    %v5093 = vadd.f32 %v4927, %v5026
    %v5094 = vadd.f32 %v4928, %v5030
    %v5095 = vadd.f32 %v4929, %v5018
    %v5096 = vadd.f32 %v4930, %v5022
    %v5097 = vadd.f32 %v4931, %v5026
    %v5098 = vadd.f32 %v4932, %v5030
    %v5099 = vadd.f32 %v4933, %v5018
    %v5100 = vadd.f32 %v4934, %v5022
    %v5101 = vadd.f32 %v4935, %v5026
    %v5102 = vadd.f32 %v4936, %v5030
    %v5103 = vadd.f32 %v4937, %v5018
    %v5104 = vadd.f32 %v4938, %v5022
    %v5105 = vadd.f32 %v4939, %v5026
    %v5106 = vadd.f32 %v4940, %v5030
    %v5107 = vadd.f32 %v4941, %v5018
    %v5108 = vadd.f32 %v4942, %v5022
    %v5109 = vadd.f32 %v4943, %v5026
    %v5110 = vadd.f32 %v4944, %v5030
    %v5111 = vadd.f32 %v4945, %v5018
    %v5112 = vadd.f32 %v4946, %v5022
    %v5113 = vadd.f32 %v4947, %v5026
    %v5114 = vadd.f32 %v4948, %v5030
    %v5115 = vadd.f32 %v4949, %v5018
    %v5116 = vadd.f32 %v4950, %v5022
    %v5117 = vadd.f32 %v4951, %v5026
    %v5118 = vadd.f32 %v4952, %v5030
    %v5119 = vadd.f32 %v4953, %v5018
    %v5120 = vadd.f32 %v4954, %v5022
    %v5121 = vadd.f32 %v4955, %v5026
    %v5122 = vadd.f32 %v4956, %v5030
    %v5123 = vadd.f32 %v4957, %v5018
    %v5124 = vadd.f32 %v4958, %v5022
    %v5125 = vadd.f32 %v4959, %v5026
    %v5126 = vadd.f32 %v4960, %v5030
    %v5127 = vadd.f32 %v4961, %v5018
    %v5128 = vadd.f32 %v4962, %v5022
    %v5129 = vadd.f32 %v4963, %v5026
    %v5130 = vadd.f32 %v4964, %v5030
    %v5131 = vadd.f32 %v4965, %v5018
    %v5132 = vadd.f32 %v4966, %v5022
    %v5133 = vadd.f32 %v4967, %v5026
    %v5134 = vadd.f32 %v4968, %v5030
    %v5135 = vadd.f32 %v4969, %v5018
    %v5136 = vadd.f32 %v4970, %v5022
    %v5137 = vadd.f32 %v4971, %v5026
    %v5138 = vadd.f32 %v4972, %v5030
    %v5139 = vadd.f32 %v4973, %v5018
    %v5140 = vadd.f32 %v4974, %v5022
    %v5141 = vadd.f32 %v4975, %v5026
    %v5142 = vadd.f32 %v4976, %v5030
    %v5143 = vadd.f32 %v4977, %v5018
    %v5144 = vadd.f32 %v4978, %v5022
    %v5145 = vadd.f32 %v4979, %v5026
    %v5146 = vadd.f32 %v4980, %v5030
    %v5147 = vadd.f32 %v4981, %v5018
    %v5148 = vadd.f32 %v4982, %v5022
    %v5149 = vadd.f32 %v4983, %v5026
    %v5150 = vadd.f32 %v4984, %v5030
    %v5151 = vadd.f32 %v4985, %v5018
    %v5152 = vadd.f32 %v4986, %v5022
    %v5153 = vadd.f32 %v4987, %v5026
    %v5154 = vadd.f32 %v4988, %v5030
    %v5155 = vadd.f32 %v4989, %v5018
    %v5156 = vadd.f32 %v4990, %v5022
    %v5157 = vadd.f32 %v4991, %v5026
    %v5158 = vadd.f32 %v4992, %v5030
    %v5159 = vmax.f32 %v5031, 0.0
    %v5160 = vmax.f32 %v5032, 0.0
    %v5161 = vmax.f32 %v5033, 0.0
    %v5162 = vmax.f32 %v5034, 0.0
    %v5163 = vmax.f32 %v5035, 0.0
    %v5164 = vmax.f32 %v5036, 0.0
    %v5165 = vmax.f32 %v5037, 0.0
    %v5166 = vmax.f32 %v5038, 0.0
    %v5167 = vmax.f32 %v5039, 0.0
    %v5168 = vmax.f32 %v5040, 0.0
    %v5169 = vmax.f32 %v5041, 0.0
    %v5170 = vmax.f32 %v5042, 0.0
    %v5171 = vmax.f32 %v5043, 0.0
    %v5172 = vmax.f32 %v5044, 0.0
    %v5173 = vmax.f32 %v5045, 0.0
    %v5174 = vmax.f32 %v5046, 0.0
    %v5175 = vmax.f32 %v5047, 0.0
    %v5176 = vmax.f32 %v5048, 0.0
    %v5177 = vmax.f32 %v5049, 0.0
    %v5178 = vmax.f32 %v5050, 0.0
    %v5179 = vmax.f32 %v5051, 0.0
    %v5180 = vmax.f32 %v5052, 0.0
    %v5181 = vmax.f32 %v5053, 0.0
    %v5182 = vmax.f32 %v5054, 0.0
    %v5183 = vmax.f32 %v5055, 0.0
    %v5184 = vmax.f32 %v5056, 0.0
    %v5185 = vmax.f32 %v5057, 0.0
    %v5186 = vmax.f32 %v5058, 0.0
    %v5187 = vmax.f32 %v5059, 0.0
    %v5188 = vmax.f32 %v5060, 0.0
    %v5189 = vmax.f32 %v5061, 0.0
    %v5190 = vmax.f32 %v5062, 0.0
    %v5191 = vmax.f32 %v5063, 0.0
    %v5192 = vmax.f32 %v5064, 0.0
    %v5193 = vmax.f32 %v5065, 0.0
    %v5194 = vmax.f32 %v5066, 0.0
    %v5195 = vmax.f32 %v5067, 0.0
    %v5196 = vmax.f32 %v5068, 0.0
    %v5197 = vmax.f32 %v5069, 0.0
    %v5198 = vmax.f32 %v5070, 0.0
    %v5199 = vmax.f32 %v5071, 0.0
    %v5200 = vmax.f32 %v5072, 0.0
    %v5201 = vmax.f32 %v5073, 0.0
    %v5202 = vmax.f32 %v5074, 0.0
    %v5203 = vmax.f32 %v5075, 0.0
    %v5204 = vmax.f32 %v5076, 0.0
    %v5205 = vmax.f32 %v5077, 0.0
    %v5206 = vmax.f32 %v5078, 0.0
    %v5207 = vmax.f32 %v5079, 0.0
    %v5208 = vmax.f32 %v5080, 0.0
    %v5209 = vmax.f32 %v5081, 0.0
    %v5210 = vmax.f32 %v5082, 0.0
    %v5211 = vmax.f32 %v5083, 0.0
    %v5212 = vmax.f32 %v5084, 0.0
    %v5213 = vmax.f32 %v5085, 0.0
    %v5214 = vmax.f32 %v5086, 0.0
    %v5215 = vmax.f32 %v5087, 0.0
    %v5216 = vmax.f32 %v5088, 0.0
    %v5217 = vmax.f32 %v5089, 0.0
    %v5218 = vmax.f32 %v5090, 0.0
    %v5219 = vmax.f32 %v5091, 0.0
    %v5220 = vmax.f32 %v5092, 0.0
    %v5221 = vmax.f32 %v5093, 0.0
    %v5222 = vmax.f32 %v5094, 0.0
    %v5223 = vmax.f32 %v5095, 0.0
    %v5224 = vmax.f32 %v5096, 0.0
    %v5225 = vmax.f32 %v5097, 0.0
    %v5226 = vmax.f32 %v5098, 0.0
    %v5227 = vmax.f32 %v5099, 0.0
    %v5228 = vmax.f32 %v5100, 0.0
    %v5229 = vmax.f32 %v5101, 0.0
    %v5230 = vmax.f32 %v5102, 0.0
    %v5231 = vmax.f32 %v5103, 0.0
    %v5232 = vmax.f32 %v5104, 0.0
    %v5233 = vmax.f32 %v5105, 0.0
    %v5234 = vmax.f32 %v5106, 0.0
    %v5235 = vmax.f32 %v5107, 0.0
    %v5236 = vmax.f32 %v5108, 0.0
    %v5237 = vmax.f32 %v5109, 0.0
    %v5238 = vmax.f32 %v5110, 0.0
    %v5239 = vmax.f32 %v5111, 0.0
    %v5240 = vmax.f32 %v5112, 0.0
    %v5241 = vmax.f32 %v5113, 0.0
    %v5242 = vmax.f32 %v5114, 0.0
    %v5243 = vmax.f32 %v5115, 0.0
    %v5244 = vmax.f32 %v5116, 0.0
    %v5245 = vmax.f32 %v5117, 0.0
    %v5246 = vmax.f32 %v5118, 0.0
    %v5247 = vmax.f32 %v5119, 0.0
    %v5248 = vmax.f32 %v5120, 0.0
    %v5249 = vmax.f32 %v5121, 0.0
    %v5250 = vmax.f32 %v5122, 0.0
    %v5251 = vmax.f32 %v5123, 0.0
    %v5252 = vmax.f32 %v5124, 0.0
    %v5253 = vmax.f32 %v5125, 0.0
    %v5254 = vmax.f32 %v5126, 0.0
    %v5255 = vmax.f32 %v5127, 0.0
    %v5256 = vmax.f32 %v5128, 0.0
    %v5257 = vmax.f32 %v5129, 0.0
    %v5258 = vmax.f32 %v5130, 0.0
    %v5259 = vmax.f32 %v5131, 0.0
    %v5260 = vmax.f32 %v5132, 0.0
    %v5261 = vmax.f32 %v5133, 0.0
    %v5262 = vmax.f32 %v5134, 0.0
    %v5263 = vmax.f32 %v5135, 0.0
    %v5264 = vmax.f32 %v5136, 0.0
    %v5265 = vmax.f32 %v5137, 0.0
    %v5266 = vmax.f32 %v5138, 0.0
    %v5267 = vmax.f32 %v5139, 0.0
    %v5268 = vmax.f32 %v5140, 0.0
    %v5269 = vmax.f32 %v5141, 0.0
    %v5270 = vmax.f32 %v5142, 0.0
    %v5271 = vmax.f32 %v5143, 0.0
    %v5272 = vmax.f32 %v5144, 0.0
    %v5273 = vmax.f32 %v5145, 0.0
    %v5274 = vmax.f32 %v5146, 0.0
    %v5275 = vmax.f32 %v5147, 0.0
    %v5276 = vmax.f32 %v5148, 0.0
    %v5277 = vmax.f32 %v5149, 0.0
    %v5278 = vmax.f32 %v5150, 0.0
    %v5279 = vmax.f32 %v5151, 0.0
    %v5280 = vmax.f32 %v5152, 0.0
    %v5281 = vmax.f32 %v5153, 0.0
    %v5282 = vmax.f32 %v5154, 0.0
    %v5283 = vmax.f32 %v5155, 0.0
    %v5284 = vmax.f32 %v5156, 0.0
    %v5285 = vmax.f32 %v5157, 0.0
    %v5286 = vmax.f32 %v5158, 0.0
    %5287 = vst [vmem:[#allocation10] sm:$0xff] %v5159
    %5288 = vst [vmem:[#allocation10 + $0x8] sm:$0xff] %v5160
    %5289 = vst [vmem:[#allocation10 + $0x10] sm:$0xff] %v5161
    %5290 = vst [vmem:[#allocation10 + $0x18] sm:$0xff] %v5162
    %5291 = vst [vmem:[#allocation10 + $0x20] sm:$0xff] %v5163
    %5292 = vst [vmem:[#allocation10 + $0x28] sm:$0xff] %v5164
    %5293 = vst [vmem:[#allocation10 + $0x30] sm:$0xff] %v5165
    %5294 = vst [vmem:[#allocation10 + $0x38] sm:$0xff] %v5166
    %5295 = vst [vmem:[#allocation10 + $0x40] sm:$0xff] %v5167
    %5296 = vst [vmem:[#allocation10 + $0x48] sm:$0xff] %v5168
    %5297 = vst [vmem:[#allocation10 + $0x50] sm:$0xff] %v5169
    %5298 = vst [vmem:[#allocation10 + $0x58] sm:$0xff] %v5170
    %5299 = vst [vmem:[#allocation10 + $0x60] sm:$0xff] %v5171
    %5300 = vst [vmem:[#allocation10 + $0x68] sm:$0xff] %v5172
    %5301 = vst [vmem:[#allocation10 + $0x70] sm:$0xff] %v5173
    %5302 = vst [vmem:[#allocation10 + $0x78] sm:$0xff] %v5174
    %5303 = vst [vmem:[#allocation10 + $0x80] sm:$0xff] %v5175
    %5304 = vst [vmem:[#allocation10 + $0x88] sm:$0xff] %v5176
    %5305 = vst [vmem:[#allocation10 + $0x90] sm:$0xff] %v5177
    %5306 = vst [vmem:[#allocation10 + $0x98] sm:$0xff] %v5178
    %5307 = vst [vmem:[#allocation10 + $0xa0] sm:$0xff] %v5179
    %5308 = vst [vmem:[#allocation10 + $0xa8] sm:$0xff] %v5180
    %5309 = vst [vmem:[#allocation10 + $0xb0] sm:$0xff] %v5181
    %5310 = vst [vmem:[#allocation10 + $0xb8] sm:$0xff] %v5182
    %5311 = vst [vmem:[#allocation10 + $0xc0] sm:$0xff] %v5183
    %5312 = vst [vmem:[#allocation10 + $0xc8] sm:$0xff] %v5184
    %5313 = vst [vmem:[#allocation10 + $0xd0] sm:$0xff] %v5185
    %5314 = vst [vmem:[#allocation10 + $0xd8] sm:$0xff] %v5186
    %5315 = vst [vmem:[#allocation10 + $0xe0] sm:$0xff] %v5187
    %5316 = vst [vmem:[#allocation10 + $0xe8] sm:$0xff] %v5188
    %5317 = vst [vmem:[#allocation10 + $0xf0] sm:$0xff] %v5189
    %5318 = vst [vmem:[#allocation10 + $0xf8] sm:$0xff] %v5190
    %5319 = vst [vmem:[#allocation10 + $0x100] sm:$0xff] %v5191
    %5320 = vst [vmem:[#allocation10 + $0x108] sm:$0xff] %v5192
    %5321 = vst [vmem:[#allocation10 + $0x110] sm:$0xff] %v5193
    %5322 = vst [vmem:[#allocation10 + $0x118] sm:$0xff] %v5194
    %5323 = vst [vmem:[#allocation10 + $0x120] sm:$0xff] %v5195
    %5324 = vst [vmem:[#allocation10 + $0x128] sm:$0xff] %v5196
    %5325 = vst [vmem:[#allocation10 + $0x130] sm:$0xff] %v5197
    %5326 = vst [vmem:[#allocation10 + $0x138] sm:$0xff] %v5198
    %5327 = vst [vmem:[#allocation10 + $0x140] sm:$0xff] %v5199
    %5328 = vst [vmem:[#allocation10 + $0x148] sm:$0xff] %v5200
    %5329 = vst [vmem:[#allocation10 + $0x150] sm:$0xff] %v5201
    %5330 = vst [vmem:[#allocation10 + $0x158] sm:$0xff] %v5202
    %5331 = vst [vmem:[#allocation10 + $0x160] sm:$0xff] %v5203
    %5332 = vst [vmem:[#allocation10 + $0x168] sm:$0xff] %v5204
    %5333 = vst [vmem:[#allocation10 + $0x170] sm:$0xff] %v5205
    %5334 = vst [vmem:[#allocation10 + $0x178] sm:$0xff] %v5206
    %5335 = vst [vmem:[#allocation10 + $0x180] sm:$0xff] %v5207
    %5336 = vst [vmem:[#allocation10 + $0x188] sm:$0xff] %v5208
    %5337 = vst [vmem:[#allocation10 + $0x190] sm:$0xff] %v5209
    %5338 = vst [vmem:[#allocation10 + $0x198] sm:$0xff] %v5210
    %5339 = vst [vmem:[#allocation10 + $0x1a0] sm:$0xff] %v5211
    %5340 = vst [vmem:[#allocation10 + $0x1a8] sm:$0xff] %v5212
    %5341 = vst [vmem:[#allocation10 + $0x1b0] sm:$0xff] %v5213
    %5342 = vst [vmem:[#allocation10 + $0x1b8] sm:$0xff] %v5214
    %5343 = vst [vmem:[#allocation10 + $0x1c0] sm:$0xff] %v5215
    %5344 = vst [vmem:[#allocation10 + $0x1c8] sm:$0xff] %v5216
    %5345 = vst [vmem:[#allocation10 + $0x1d0] sm:$0xff] %v5217
    %5346 = vst [vmem:[#allocation10 + $0x1d8] sm:$0xff] %v5218
    %5347 = vst [vmem:[#allocation10 + $0x1e0] sm:$0xff] %v5219
    %5348 = vst [vmem:[#allocation10 + $0x1e8] sm:$0xff] %v5220
    %5349 = vst [vmem:[#allocation10 + $0x1f0] sm:$0xff] %v5221
    %5350 = vst [vmem:[#allocation10 + $0x1f8] sm:$0xff] %v5222
    %5351 = vst [vmem:[#allocation10 + $0x200] sm:$0xff] %v5223
    %5352 = vst [vmem:[#allocation10 + $0x208] sm:$0xff] %v5224
    %5353 = vst [vmem:[#allocation10 + $0x210] sm:$0xff] %v5225
    %5354 = vst [vmem:[#allocation10 + $0x218] sm:$0xff] %v5226
    %5355 = vst [vmem:[#allocation10 + $0x220] sm:$0xff] %v5227
    %5356 = vst [vmem:[#allocation10 + $0x228] sm:$0xff] %v5228
    %5357 = vst [vmem:[#allocation10 + $0x230] sm:$0xff] %v5229
    %5358 = vst [vmem:[#allocation10 + $0x238] sm:$0xff] %v5230
    %5359 = vst [vmem:[#allocation10 + $0x240] sm:$0xff] %v5231
    %5360 = vst [vmem:[#allocation10 + $0x248] sm:$0xff] %v5232
    %5361 = vst [vmem:[#allocation10 + $0x250] sm:$0xff] %v5233
    %5362 = vst [vmem:[#allocation10 + $0x258] sm:$0xff] %v5234
    %5363 = vst [vmem:[#allocation10 + $0x260] sm:$0xff] %v5235
    %5364 = vst [vmem:[#allocation10 + $0x268] sm:$0xff] %v5236
    %5365 = vst [vmem:[#allocation10 + $0x270] sm:$0xff] %v5237
    %5366 = vst [vmem:[#allocation10 + $0x278] sm:$0xff] %v5238
    %5367 = vst [vmem:[#allocation10 + $0x280] sm:$0xff] %v5239
    %5368 = vst [vmem:[#allocation10 + $0x288] sm:$0xff] %v5240
    %5369 = vst [vmem:[#allocation10 + $0x290] sm:$0xff] %v5241
    %5370 = vst [vmem:[#allocation10 + $0x298] sm:$0xff] %v5242
    %5371 = vst [vmem:[#allocation10 + $0x2a0] sm:$0xff] %v5243
    %5372 = vst [vmem:[#allocation10 + $0x2a8] sm:$0xff] %v5244
    %5373 = vst [vmem:[#allocation10 + $0x2b0] sm:$0xff] %v5245
    %5374 = vst [vmem:[#allocation10 + $0x2b8] sm:$0xff] %v5246
    %5375 = vst [vmem:[#allocation10 + $0x2c0] sm:$0xff] %v5247
    %5376 = vst [vmem:[#allocation10 + $0x2c8] sm:$0xff] %v5248
    %5377 = vst [vmem:[#allocation10 + $0x2d0] sm:$0xff] %v5249
    %5378 = vst [vmem:[#allocation10 + $0x2d8] sm:$0xff] %v5250
    %5379 = vst [vmem:[#allocation10 + $0x2e0] sm:$0xff] %v5251
    %5380 = vst [vmem:[#allocation10 + $0x2e8] sm:$0xff] %v5252
    %5381 = vst [vmem:[#allocation10 + $0x2f0] sm:$0xff] %v5253
    %5382 = vst [vmem:[#allocation10 + $0x2f8] sm:$0xff] %v5254
    %5383 = vst [vmem:[#allocation10 + $0x300] sm:$0xff] %v5255
    %5384 = vst [vmem:[#allocation10 + $0x308] sm:$0xff] %v5256
    %5385 = vst [vmem:[#allocation10 + $0x310] sm:$0xff] %v5257
    %5386 = vst [vmem:[#allocation10 + $0x318] sm:$0xff] %v5258
    %5387 = vst [vmem:[#allocation10 + $0x320] sm:$0xff] %v5259
    %5388 = vst [vmem:[#allocation10 + $0x328] sm:$0xff] %v5260
    %5389 = vst [vmem:[#allocation10 + $0x330] sm:$0xff] %v5261
    %5390 = vst [vmem:[#allocation10 + $0x338] sm:$0xff] %v5262
    %5391 = vst [vmem:[#allocation10 + $0x340] sm:$0xff] %v5263
    %5392 = vst [vmem:[#allocation10 + $0x348] sm:$0xff] %v5264
    %5393 = vst [vmem:[#allocation10 + $0x350] sm:$0xff] %v5265
    %5394 = vst [vmem:[#allocation10 + $0x358] sm:$0xff] %v5266
    %5395 = vst [vmem:[#allocation10 + $0x360] sm:$0xff] %v5267
    %5396 = vst [vmem:[#allocation10 + $0x368] sm:$0xff] %v5268
    %5397 = vst [vmem:[#allocation10 + $0x370] sm:$0xff] %v5269
    %5398 = vst [vmem:[#allocation10 + $0x378] sm:$0xff] %v5270
    %5399 = vst [vmem:[#allocation10 + $0x380] sm:$0xff] %v5271
    %5400 = vst [vmem:[#allocation10 + $0x388] sm:$0xff] %v5272
    %5401 = vst [vmem:[#allocation10 + $0x390] sm:$0xff] %v5273
    %5402 = vst [vmem:[#allocation10 + $0x398] sm:$0xff] %v5274
    %5403 = vst [vmem:[#allocation10 + $0x3a0] sm:$0xff] %v5275
    %5404 = vst [vmem:[#allocation10 + $0x3a8] sm:$0xff] %v5276
    %5405 = vst [vmem:[#allocation10 + $0x3b0] sm:$0xff] %v5277
    %5406 = vst [vmem:[#allocation10 + $0x3b8] sm:$0xff] %v5278
    %5407 = vst [vmem:[#allocation10 + $0x3c0] sm:$0xff] %v5279
    %5408 = vst [vmem:[#allocation10 + $0x3c8] sm:$0xff] %v5280
    %5409 = vst [vmem:[#allocation10 + $0x3d0] sm:$0xff] %v5281
    %5410 = vst [vmem:[#allocation10 + $0x3d8] sm:$0xff] %v5282
    %5411 = vst [vmem:[#allocation10 + $0x3e0] sm:$0xff] %v5283
    %5412 = vst [vmem:[#allocation10 + $0x3e8] sm:$0xff] %v5284
    %5413 = vst [vmem:[#allocation10 + $0x3f0] sm:$0xff] %v5285
    %5414 = vst [vmem:[#allocation10 + $0x3f8] sm:$0xff] %v5286
    // Predicated region
    $region34: #{tpu_custom_call.1} parent=1 // pred_check
      _
    $region35: #{tpu_custom_call.1} parent=1 // pred_check_branch
      %5416 = sbr.rel (0) target = $region37
    $region36: #{tpu_custom_call.1} parent=1 // pred_region
      %s5418 = ssub.s32 16384, 16384
      %5419 = vsyncadd [#allocation4], %s5418
      %s5420 = sshll.u32 [#allocation10], 4
      %s5421 = int_to_ptr.vmem [resolvable:$true] %s5420
      %5426 = dma.vmem_to_hbm [thread:$0]  %s5421, 16384, %s4, [#allocation4], 512, 512, 32
    $region37: #{tpu_custom_call.1} parent=1 // pred_fallthru
      _
    // Predicated region
    $region38: #{tpu_custom_call.1} parent=1 // pred_check
      _
    $region39: #{tpu_custom_call.1} parent=1 // pred_check_branch
      %5428 = sbr.rel (0) target = $region41
    $region40: #{tpu_custom_call.1} parent=1 // pred_region
      %5429 = dma.done [#allocation4], 16384
    $region41: #{tpu_custom_call.1} parent=1 // pred_fallthru
      _
    %5430 = vsyncpa [#allocation3], 1
    %5431 = vsyncpa [#allocation6], 1
    %5432 = vsyncpa [#allocation9], 1
    %5433 = vsyncpa [#allocation4], 1

</llo_original>
